<compile_context>
chip_gen: v6e
topology: v6e:2x2x1
jax: 0.10.0
libtpu: 0.0.40
codegen_flags: <defaults>
</compile_context>

<pallas_src>
import functools

import jax
import jax.numpy as jnp
from jax.experimental import pallas as pl
from jax.experimental.pallas import tpu as pltpu


def _msag_kernel(x_ref, wcol_ref, bias_ref, o_ref, xp_ref, *, C, H, W, PAD):
    """Fused MSAG forward.

    x_ref   : (N, C, H*W)           input, VMEM
    wcol_ref: (1, C, NCOL)          all conv/vote weight columns, VMEM
    bias_ref: (3*C,)                BN-folded branch-conv biases, SMEM
    o_ref   : (N, C, H*W)           output, VMEM
    xp_ref  : (N, C, H*W + 2*PAD)   zero-padded copy of x, VMEM scratch
    """
    N = x_ref.shape[0]
    HW = H * W
    f32 = jnp.float32

    # Static column-table offsets inside wcol.
    OFF1 = 0                  # pointwise 1x1 conv :   C   columns (co)
    OFF2 = OFF1 + C           # ordinary 3x3 conv  : 9*C   columns (co, tap)
    OFF3 = OFF2 + 9 * C       # dilated 3x3 conv   : 9*C   columns (co, tap)
    OFFV = OFF3 + 9 * C       # vote 1x1 conv      : 3*C   columns (branch, co)
    OFFB = OFFV + 3 * C       # vote bias          :   1   column

    # ---- In-kernel zero padding of the flat spatial axis (replaces the
    # ---- wrapper-side jnp.pad -> no extra XLA kernel / HBM round trip).
    xp_ref[:, :, :PAD] = jnp.zeros((N, C, PAD), f32)
    xp_ref[:, :, PAD + HW:] = jnp.zeros((N, C, PAD), f32)
    xp_ref[:, :, PAD:PAD + HW] = x_ref[...]

    # All weight columns fit in a single vreg; load once.
    wc = wcol_ref[...]                              # (1, C, NCOL)

    def col(idx):                                   # (1, C, 1), static idx
        return wc[:, :, idx:idx + 1]

    # w-coordinate of every flattened spatial position (W-border masks; the
    # H borders come for free from the physical zero padding above).
    ww = jax.lax.broadcasted_iota(jnp.int32, (1, 1, HW), 2) % W

    def slab(dh, dw):
        """(N, C, HW) view of x sampled at spatial offset (h+dh, w+dw)."""
        d = dh * W + dw
        v = xp_ref[:, :, PAD + d:PAD + d + HW]
        if dw != 0:
            v = jnp.where((ww + dw >= 0) & (ww + dw < W), v, 0.0)
        return v

    taps3 = [(dh, dw) for dh in (-1, 0, 1) for dw in (-1, 0, 1)]
    branches = (
        (OFF1, [(0, 0)], 0),                                      # pointwise
        (OFF2, taps3, C),                                         # 3x3
        (OFF3, [(2 * dh, 2 * dw) for dh, dw in taps3], 2 * C),    # dilated 3x3
    )

    # Packed voteConv pre-activation accumulator: vp[n, q, :] for vote-output
    # channel q.  Starts from its BN-folded bias column and grows to
    # (N, C, HW) on the first accumulation via broadcasting.
    vp = col(OFFB)

    for b, (off, taps, boff) in enumerate(branches):
        T = len(taps)
        # One tap slab in flight at a time; only C per-co accumulators live.
        accs = [None] * C
        for t, (dh, dw) in enumerate(taps):
            s = slab(dh, dw)
            for co in range(C):
                term = s * col(off + co * T + t)
                accs[co] = term if accs[co] is None else accs[co] + term
        for co in range(C):
            # Reduce over input channels (sublane axis), add folded bias, ReLU.
            ch = jnp.sum(accs[co], axis=1) + bias_ref[boff + co]   # (N, HW)
            ch = jnp.maximum(ch, 0.0)
            # Fused voteConv accumulation; the branch channel is then dead.
            vp = vp + ch[:, None, :] * col(OFFV + b * C + co)

    # Sigmoid gate.  exp runs on the EUP; approx=False keeps f32 accuracy.
    gate = pl.reciprocal(1.0 + jnp.exp(-vp), approx=False)

    # Residual gating, written once as a single full-block (unmasked) store.
    o_ref[...] = (x_ref[...] * (1.0 + gate)).astype(o_ref.dtype)


def _fold_bn(w, b, bn, eps=1e-5):
    """Fold an eval-mode BatchNorm (gamma, beta, mean, var) into conv w/b."""
    gamma, beta, mean, var = bn
    scale = gamma / jnp.sqrt(var + eps)
    w_eff = w * scale.reshape((-1,) + (1,) * (w.ndim - 1))
    b_eff = (b - mean) * scale + beta
    return w_eff, b_eff


@jax.jit
def msag_forward(x, params):
    N, C, H, W = x.shape
    HW = H * W
    PAD = 2 * W + 2                    # covers the farthest dilated-3x3 tap

    w1, b1 = _fold_bn(params["w1"], params["b1"], params["bn1"])
    w2, b2 = _fold_bn(params["w2"], params["b2"], params["bn2"])
    w3, b3 = _fold_bn(params["w3"], params["b3"], params["bn3"])
    wv, bv = _fold_bn(params["wv"], params["bv"], params["bnv"])

    # Every weight the kernel needs, packed into ONE small array of "channel
    # columns" (values vary along the C sublane axis, broadcast along lanes),
    # plus one SMEM bias vector: 3 operand DMAs instead of 10.
    cols = jnp.concatenate([
        w1.reshape(C, C),                               # [co, ci]
        w2.transpose(0, 2, 3, 1).reshape(C * 9, C),     # [co*9 + kh*3+kw, ci]
        w3.transpose(0, 2, 3, 1).reshape(C * 9, C),     # [co*9 + kh*3+kw, ci]
        wv.reshape(C, 3 * C).T,                         # [b*C + co, q]
        bv[None, :],                                    # [0, q]
    ], axis=0).astype(jnp.float32)
    ncol = cols.shape[0]                                # 20*C + 1
    wcol = cols.T[None, :, :]                           # (1, C, NCOL)
    bvec = jnp.concatenate([b1, b2, b3]).astype(jnp.float32)   # (3*C,)

    # NCHW -> (N, C, H*W): pure reshape (H*W on the lane axis), no transpose.
    x_flat = x.reshape(N, C, HW)

    kernel = functools.partial(_msag_kernel, C=C, H=H, W=W, PAD=PAD)

    out_flat = pl.pallas_call(
        kernel,
        out_shape=jax.ShapeDtypeStruct((N, C, HW), x.dtype),
        grid=(1,),                     # whole problem in a single step
        in_specs=[
            pl.BlockSpec((N, C, HW), lambda i: (0, 0, 0)),       # x
            pl.BlockSpec((1, C, ncol), lambda i: (0, 0, 0)),     # weight cols
            pl.BlockSpec(memory_space=pltpu.MemorySpace.SMEM),   # branch biases
        ],
        out_specs=pl.BlockSpec((N, C, HW), lambda i: (0, 0, 0)),
        scratch_shapes=[pltpu.VMEM((N, C, HW + 2 * PAD), jnp.float32)],
        compiler_params=pltpu.CompilerParams(
            dimension_semantics=("arbitrary",)),
        cost_estimate=pl.CostEstimate(
            flops=2 * N * HW * (C * C * 19 + 3 * C * C),
            transcendentals=N * C * HW,
            bytes_accessed=2 * N * C * HW * 4 + (ncol * C + 3 * C) * 4),
    )(x_flat, wcol, bvec)
    return out_flat.reshape(N, C, H, W)


# ----------------------------- pure-JAX reference ---------------------------

def _bn_eval(y, bn, eps=1e-5):
    gamma, beta, mean, var = bn
    inv = gamma / jnp.sqrt(var + eps)
    return ((y - mean[None, :, None, None]) * inv[None, :, None, None]
            + beta[None, :, None, None])


def _conv_nchw(x, w, b, *, padding, dilation=(1, 1)):
    y = jax.lax.conv_general_dilated(
        x, w, window_strides=(1, 1), padding=padding,
        rhs_dilation=dilation,
        dimension_numbers=("NCHW", "OIHW", "NCHW"),
        precision=jax.lax.Precision.HIGHEST)
    return y + b[None, :, None, None]


def msag_reference(x, p):
    x1 = _bn_eval(_conv_nchw(x, p["w1"], p["b1"], padding=[(0, 0), (0, 0)]),
                  p["bn1"])
    x2 = _bn_eval(_conv_nchw(x, p["w2"], p["b2"], padding=[(1, 1), (1, 1)]),
                  p["bn2"])
    x3 = _bn_eval(_conv_nchw(x, p["w3"], p["b3"], padding=[(2, 2), (2, 2)],
                             dilation=(2, 2)), p["bn3"])
    g = jax.nn.relu(jnp.concatenate([x1, x2, x3], axis=1))
    g = _bn_eval(_conv_nchw(g, p["wv"], p["bv"], padding=[(0, 0), (0, 0)]),
                 p["bnv"])
    g = jax.nn.sigmoid(g)
    return x + x * g


if __name__ == "__main__":
    root = jax.random.PRNGKey(0)
    keys = jax.random.split(root, 13)

    N, C, H, W = 2, 4, 16, 16
    x = jax.random.normal(keys[0], (N, C, H, W), dtype=jnp.float32)

    def bn_params(k):
        k1, k2, k3, k4 = jax.random.split(k, 4)
        return (jax.random.uniform(k1, (C,), jnp.float32, 0.5, 1.5),   # gamma
                0.1 * jax.random.normal(k2, (C,), jnp.float32),        # beta
                0.1 * jax.random.normal(k3, (C,), jnp.float32),        # mean
                jax.random.uniform(k4, (C,), jnp.float32, 0.5, 1.5))   # var

    params = {
        "w1": 0.2 * jax.random.normal(keys[1], (C, C, 1, 1), jnp.float32),
        "b1": 0.1 * jax.random.normal(keys[2], (C,), jnp.float32),
        "bn1": bn_params(keys[3]),
        "w2": 0.2 * jax.random.normal(keys[4], (C, C, 3, 3), jnp.float32),
        "b2": 0.1 * jax.random.normal(keys[5], (C,), jnp.float32),
        "bn2": bn_params(keys[6]),
        "w3": 0.2 * jax.random.normal(keys[7], (C, C, 3, 3), jnp.float32),
        "b3": 0.1 * jax.random.normal(keys[8], (C,), jnp.float32),
        "bn3": bn_params(keys[9]),
        "wv": 0.2 * jax.random.normal(keys[10], (C, 3 * C, 1, 1), jnp.float32),
        "bv": 0.1 * jax.random.normal(keys[11], (C,), jnp.float32),
        "bnv": bn_params(keys[12]),
    }

    out = jax.block_until_ready(msag_forward(x, params))
    ref = msag_reference(x, params)

    assert out.shape == x.shape
    err = float(jnp.max(jnp.abs(out - ref)))
    assert err < 1e-4, f"max abs err = {err}"

    print("KERNEL_OK")
</pallas_src>

<mosaic_0001>
module attributes {stable_mosaic.version = 11 : i64} {
  func.func @_msag_kernel(%arg0: i32, %arg1: memref<2x4x256xf32, #tpu.memory_space<vmem>>, %arg2: memref<1x4x89xf32, #tpu.memory_space<vmem>>, %arg3: memref<12xf32, #tpu.memory_space<smem>>, %arg4: memref<2x4x256xf32, #tpu.memory_space<vmem>>, %arg5: memref<2x4x324xf32, #tpu.memory_space<vmem>>) attributes {dimension_semantics = [#tpu.dimension_semantics<arbitrary>], iteration_bounds = array<i64: 1>, scalar_prefetch = 0 : i64, scratch_operands = 1 : i64, tpu.core_type = #tpu.core_type<tc>, window_params = [{pipeline_mode = #tpu.pipeline_mode<synchronous>, transform_indices = @transform_0, window_bounds = array<i64: 2, 4, 256>}, {pipeline_mode = #tpu.pipeline_mode<synchronous>, transform_indices = @transform_1, window_bounds = array<i64: 1, 4, 89>}, {transform_indices = @transform_2, window_bounds = array<i64: 12>}, {pipeline_mode = #tpu.pipeline_mode<synchronous>, transform_indices = @transform_3, window_bounds = array<i64: 2, 4, 256>}]} {
    %cst = arith.constant 0.000000e+00 : f32
    %0 = vector.broadcast %cst : f32 to vector<2x4x34xf32>
    %c0 = arith.constant 0 : index
    %c0_0 = arith.constant 0 : index
    %c0_1 = arith.constant 0 : index
    %1 = vector.load %arg5[%c0, %c0_0, %c0_1] : memref<2x4x324xf32, #tpu.memory_space<vmem>>, vector<2x4x34xf32>
    tpu.vector_store %arg5[%c0, %c0_0, %c0_1], %0 {strides = array<i32>} : memref<2x4x324xf32, #tpu.memory_space<vmem>>, vector<2x4x34xf32>,
    %cst_2 = arith.constant 0.000000e+00 : f32
    %2 = vector.broadcast %cst_2 : f32 to vector<2x4x34xf32>
    %c0_3 = arith.constant 0 : index
    %c0_4 = arith.constant 0 : index
    %c290 = arith.constant 290 : index
    %3 = vector.load %arg5[%c0_3, %c0_4, %c290] : memref<2x4x324xf32, #tpu.memory_space<vmem>>, vector<2x4x34xf32>
    tpu.vector_store %arg5[%c0_3, %c0_4, %c290], %2 {strides = array<i32>} : memref<2x4x324xf32, #tpu.memory_space<vmem>>, vector<2x4x34xf32>,
    %c0_5 = arith.constant 0 : index
    %c0_6 = arith.constant 0 : index
    %c0_7 = arith.constant 0 : index
    %4 = vector.load %arg1[%c0_5, %c0_6, %c0_7] : memref<2x4x256xf32, #tpu.memory_space<vmem>>, vector<2x4x256xf32>
    %c0_8 = arith.constant 0 : index
    %c0_9 = arith.constant 0 : index
    %c34 = arith.constant 34 : index
    %5 = vector.load %arg5[%c0_8, %c0_9, %c34] : memref<2x4x324xf32, #tpu.memory_space<vmem>>, vector<2x4x256xf32>
    tpu.vector_store %arg5[%c0_8, %c0_9, %c34], %4 {strides = array<i32>} : memref<2x4x324xf32, #tpu.memory_space<vmem>>, vector<2x4x256xf32>,
    %c0_10 = arith.constant 0 : index
    %c0_11 = arith.constant 0 : index
    %c0_12 = arith.constant 0 : index
    %6 = vector.load %arg2[%c0_10, %c0_11, %c0_12] : memref<1x4x89xf32, #tpu.memory_space<vmem>>, vector<1x4x89xf32>
    %7 = tpu.iota {dimensions = array<i32: 2>} : vector<1x1x256xi32>
    %c16_i32 = arith.constant 16 : i32
    %c0_i32 = arith.constant 0 : i32
    %8 = arith.cmpi eq, %c16_i32, %c0_i32 : i32
    %c1_i32 = arith.constant 1 : i32
    %9 = arith.select %8, %c1_i32, %c16_i32 : i32
    %10 = vector.broadcast %9 : i32 to vector<1x1x256xi32>
    %11 = arith.remsi %7, %10 : vector<1x1x256xi32>
    %c0_i32_13 = arith.constant 0 : i32
    %12 = vector.broadcast %c0_i32_13 : i32 to vector<1x1x256xi32>
    %13 = arith.cmpi ne, %11, %12 : vector<1x1x256xi32>
    %c0_i32_14 = arith.constant 0 : i32
    %14 = vector.broadcast %c0_i32_14 : i32 to vector<1x1x256xi32>
    %15 = arith.cmpi slt, %11, %14 : vector<1x1x256xi32>
    %c0_i32_15 = arith.constant 0 : i32
    %16 = arith.cmpi slt, %9, %c0_i32_15 : i32
    %17 = vector.broadcast %16 : i1 to vector<1x1x256xi1>
    %18 = vector.broadcast %17 : vector<1x1x256xi1> to vector<1x1x256xi1>
    %19 = arith.xori %15, %18 : vector<1x1x256xi1>
    %20 = arith.andi %19, %13 : vector<1x1x256xi1>
    %21 = vector.broadcast %9 : i32 to vector<1x1x256xi32>
    %22 = arith.addi %11, %21 : vector<1x1x256xi32>
    %23 = arith.select %20, %22, %11 : vector<1x1x256xi1>, vector<1x1x256xi32>
    %24 = vector.extract_strided_slice %6 {offsets = [0, 0, 88], sizes = [1, 4, 1], strides = [1, 1, 1]} : vector<1x4x89xf32> to vector<1x4x1xf32>
    %c0_16 = arith.constant 0 : index
    %c0_17 = arith.constant 0 : index
    %c34_18 = arith.constant 34 : index
    %25 = vector.load %arg5[%c0_16, %c0_17, %c34_18] : memref<2x4x324xf32, #tpu.memory_space<vmem>>, vector<2x4x256xf32>
    %26 = vector.extract_strided_slice %6 {offsets = [0, 0, 0], sizes = [1, 4, 1], strides = [1, 1, 1]} : vector<1x4x89xf32> to vector<1x4x1xf32>
    %27 = vector.broadcast %26 : vector<1x4x1xf32> to vector<2x4x256xf32>
    %28 = arith.mulf %25, %27 : vector<2x4x256xf32>
    %29 = vector.extract_strided_slice %6 {offsets = [0, 0, 1], sizes = [1, 4, 1], strides = [1, 1, 1]} : vector<1x4x89xf32> to vector<1x4x1xf32>
    %30 = vector.broadcast %29 : vector<1x4x1xf32> to vector<2x4x256xf32>
    %31 = arith.mulf %25, %30 : vector<2x4x256xf32>
    %32 = vector.extract_strided_slice %6 {offsets = [0, 0, 2], sizes = [1, 4, 1], strides = [1, 1, 1]} : vector<1x4x89xf32> to vector<1x4x1xf32>
    %33 = vector.broadcast %32 : vector<1x4x1xf32> to vector<2x4x256xf32>
    %34 = arith.mulf %25, %33 : vector<2x4x256xf32>
    %35 = vector.extract_strided_slice %6 {offsets = [0, 0, 3], sizes = [1, 4, 1], strides = [1, 1, 1]} : vector<1x4x89xf32> to vector<1x4x1xf32>
    %36 = vector.broadcast %35 : vector<1x4x1xf32> to vector<2x4x256xf32>
    %37 = arith.mulf %25, %36 : vector<2x4x256xf32>
    %cst_19 = arith.constant dense<0.000000e+00> : vector<2x256xf32>
    %38 = vector.multi_reduction <add>, %28, %cst_19 [1] : vector<2x4x256xf32> to vector<2x256xf32>
    %c0_20 = arith.constant 0 : index
    %39 = memref.load %arg3[%c0_20] : memref<12xf32, #tpu.memory_space<smem>>
    %40 = vector.broadcast %39 : f32 to vector<2x256xf32>
    %41 = arith.addf %38, %40 : vector<2x256xf32>
    %cst_21 = arith.constant 0.000000e+00 : f32
    %42 = vector.broadcast %cst_21 : f32 to vector<2x256xf32>
    %43 = arith.maximumf %41, %42 : vector<2x256xf32>
    %44 = vector.shape_cast %43 : vector<2x256xf32> to vector<2x1x256xf32>
    %45 = vector.extract_strided_slice %6 {offsets = [0, 0, 76], sizes = [1, 4, 1], strides = [1, 1, 1]} : vector<1x4x89xf32> to vector<1x4x1xf32>
    %46 = vector.broadcast %44 : vector<2x1x256xf32> to vector<2x4x256xf32>
    %47 = vector.broadcast %45 : vector<1x4x1xf32> to vector<2x4x256xf32>
    %48 = arith.mulf %46, %47 : vector<2x4x256xf32>
    %49 = vector.broadcast %24 : vector<1x4x1xf32> to vector<2x4x256xf32>
    %50 = arith.addf %49, %48 : vector<2x4x256xf32>
    %cst_22 = arith.constant dense<0.000000e+00> : vector<2x256xf32>
    %51 = vector.multi_reduction <add>, %31, %cst_22 [1] : vector<2x4x256xf32> to vector<2x256xf32>
    %c1 = arith.constant 1 : index
    %52 = memref.load %arg3[%c1] : memref<12xf32, #tpu.memory_space<smem>>
    %53 = vector.broadcast %52 : f32 to vector<2x256xf32>
    %54 = arith.addf %51, %53 : vector<2x256xf32>
    %cst_23 = arith.constant 0.000000e+00 : f32
    %55 = vector.broadcast %cst_23 : f32 to vector<2x256xf32>
    %56 = arith.maximumf %54, %55 : vector<2x256xf32>
    %57 = vector.shape_cast %56 : vector<2x256xf32> to vector<2x1x256xf32>
    %58 = vector.extract_strided_slice %6 {offsets = [0, 0, 77], sizes = [1, 4, 1], strides = [1, 1, 1]} : vector<1x4x89xf32> to vector<1x4x1xf32>
    %59 = vector.broadcast %57 : vector<2x1x256xf32> to vector<2x4x256xf32>
    %60 = vector.broadcast %58 : vector<1x4x1xf32> to vector<2x4x256xf32>
    %61 = arith.mulf %59, %60 : vector<2x4x256xf32>
    %62 = arith.addf %50, %61 : vector<2x4x256xf32>
    %cst_24 = arith.constant dense<0.000000e+00> : vector<2x256xf32>
    %63 = vector.multi_reduction <add>, %34, %cst_24 [1] : vector<2x4x256xf32> to vector<2x256xf32>
    %c2 = arith.constant 2 : index
    %64 = memref.load %arg3[%c2] : memref<12xf32, #tpu.memory_space<smem>>
    %65 = vector.broadcast %64 : f32 to vector<2x256xf32>
    %66 = arith.addf %63, %65 : vector<2x256xf32>
    %cst_25 = arith.constant 0.000000e+00 : f32
    %67 = vector.broadcast %cst_25 : f32 to vector<2x256xf32>
    %68 = arith.maximumf %66, %67 : vector<2x256xf32>
    %69 = vector.shape_cast %68 : vector<2x256xf32> to vector<2x1x256xf32>
    %70 = vector.extract_strided_slice %6 {offsets = [0, 0, 78], sizes = [1, 4, 1], strides = [1, 1, 1]} : vector<1x4x89xf32> to vector<1x4x1xf32>
    %71 = vector.broadcast %69 : vector<2x1x256xf32> to vector<2x4x256xf32>
    %72 = vector.broadcast %70 : vector<1x4x1xf32> to vector<2x4x256xf32>
    %73 = arith.mulf %71, %72 : vector<2x4x256xf32>
    %74 = arith.addf %62, %73 : vector<2x4x256xf32>
    %cst_26 = arith.constant dense<0.000000e+00> : vector<2x256xf32>
    %75 = vector.multi_reduction <add>, %37, %cst_26 [1] : vector<2x4x256xf32> to vector<2x256xf32>
    %c3 = arith.constant 3 : index
    %76 = memref.load %arg3[%c3] : memref<12xf32, #tpu.memory_space<smem>>
    %77 = vector.broadcast %76 : f32 to vector<2x256xf32>
    %78 = arith.addf %75, %77 : vector<2x256xf32>
    %cst_27 = arith.constant 0.000000e+00 : f32
    %79 = vector.broadcast %cst_27 : f32 to vector<2x256xf32>
    %80 = arith.maximumf %78, %79 : vector<2x256xf32>
    %81 = vector.shape_cast %80 : vector<2x256xf32> to vector<2x1x256xf32>
    %82 = vector.extract_strided_slice %6 {offsets = [0, 0, 79], sizes = [1, 4, 1], strides = [1, 1, 1]} : vector<1x4x89xf32> to vector<1x4x1xf32>
    %83 = vector.broadcast %81 : vector<2x1x256xf32> to vector<2x4x256xf32>
    %84 = vector.broadcast %82 : vector<1x4x1xf32> to vector<2x4x256xf32>
    %85 = arith.mulf %83, %84 : vector<2x4x256xf32>
    %86 = arith.addf %74, %85 : vector<2x4x256xf32>
    %c0_28 = arith.constant 0 : index
    %c0_29 = arith.constant 0 : index
    %c17 = arith.constant 17 : index
    %87 = vector.load %arg5[%c0_28, %c0_29, %c17] : memref<2x4x324xf32, #tpu.memory_space<vmem>>, vector<2x4x256xf32>
    %c-1_i32 = arith.constant -1 : i32
    %88 = vector.broadcast %c-1_i32 : i32 to vector<1x1x256xi32>
    %89 = arith.addi %23, %88 : vector<1x1x256xi32>
    %c0_i32_30 = arith.constant 0 : i32
    %90 = vector.broadcast %c0_i32_30 : i32 to vector<1x1x256xi32>
    %91 = arith.cmpi sge, %89, %90 : vector<1x1x256xi32>
    %c-1_i32_31 = arith.constant -1 : i32
    %92 = vector.broadcast %c-1_i32_31 : i32 to vector<1x1x256xi32>
    %93 = arith.addi %23, %92 : vector<1x1x256xi32>
    %c16_i32_32 = arith.constant 16 : i32
    %94 = vector.broadcast %c16_i32_32 : i32 to vector<1x1x256xi32>
    %95 = arith.cmpi slt, %93, %94 : vector<1x1x256xi32>
    %96 = arith.andi %91, %95 : vector<1x1x256xi1>
    %cst_33 = arith.constant 0.000000e+00 : f32
    %97 = vector.shape_cast %96 : vector<1x1x256xi1> to vector<1x1x256xi1>
    %98 = vector.broadcast %97 : vector<1x1x256xi1> to vector<2x4x256xi1>
    %99 = vector.broadcast %cst_33 : f32 to vector<2x4x256xf32>
    %100 = arith.select %98, %87, %99 : vector<2x4x256xi1>, vector<2x4x256xf32>
    %101 = vector.extract_strided_slice %6 {offsets = [0, 0, 4], sizes = [1, 4, 1], strides = [1, 1, 1]} : vector<1x4x89xf32> to vector<1x4x1xf32>
    %102 = vector.broadcast %101 : vector<1x4x1xf32> to vector<2x4x256xf32>
    %103 = arith.mulf %100, %102 : vector<2x4x256xf32>
    %104 = vector.extract_strided_slice %6 {offsets = [0, 0, 13], sizes = [1, 4, 1], strides = [1, 1, 1]} : vector<1x4x89xf32> to vector<1x4x1xf32>
    %105 = vector.broadcast %104 : vector<1x4x1xf32> to vector<2x4x256xf32>
    %106 = arith.mulf %100, %105 : vector<2x4x256xf32>
    %107 = vector.extract_strided_slice %6 {offsets = [0, 0, 22], sizes = [1, 4, 1], strides = [1, 1, 1]} : vector<1x4x89xf32> to vector<1x4x1xf32>
    %108 = vector.broadcast %107 : vector<1x4x1xf32> to vector<2x4x256xf32>
    %109 = arith.mulf %100, %108 : vector<2x4x256xf32>
    %110 = vector.extract_strided_slice %6 {offsets = [0, 0, 31], sizes = [1, 4, 1], strides = [1, 1, 1]} : vector<1x4x89xf32> to vector<1x4x1xf32>
    %111 = vector.broadcast %110 : vector<1x4x1xf32> to vector<2x4x256xf32>
    %112 = arith.mulf %100, %111 : vector<2x4x256xf32>
    %c0_34 = arith.constant 0 : index
    %c0_35 = arith.constant 0 : index
    %c18 = arith.constant 18 : index
    %113 = vector.load %arg5[%c0_34, %c0_35, %c18] : memref<2x4x324xf32, #tpu.memory_space<vmem>>, vector<2x4x256xf32>
    %114 = vector.extract_strided_slice %6 {offsets = [0, 0, 5], sizes = [1, 4, 1], strides = [1, 1, 1]} : vector<1x4x89xf32> to vector<1x4x1xf32>
    %115 = vector.broadcast %114 : vector<1x4x1xf32> to vector<2x4x256xf32>
    %116 = arith.mulf %113, %115 : vector<2x4x256xf32>
    %117 = arith.addf %103, %116 : vector<2x4x256xf32>
    %118 = vector.extract_strided_slice %6 {offsets = [0, 0, 14], sizes = [1, 4, 1], strides = [1, 1, 1]} : vector<1x4x89xf32> to vector<1x4x1xf32>
    %119 = vector.broadcast %118 : vector<1x4x1xf32> to vector<2x4x256xf32>
    %120 = arith.mulf %113, %119 : vector<2x4x256xf32>
    %121 = arith.addf %106, %120 : vector<2x4x256xf32>
    %122 = vector.extract_strided_slice %6 {offsets = [0, 0, 23], sizes = [1, 4, 1], strides = [1, 1, 1]} : vector<1x4x89xf32> to vector<1x4x1xf32>
    %123 = vector.broadcast %122 : vector<1x4x1xf32> to vector<2x4x256xf32>
    %124 = arith.mulf %113, %123 : vector<2x4x256xf32>
    %125 = arith.addf %109, %124 : vector<2x4x256xf32>
    %126 = vector.extract_strided_slice %6 {offsets = [0, 0, 32], sizes = [1, 4, 1], strides = [1, 1, 1]} : vector<1x4x89xf32> to vector<1x4x1xf32>
    %127 = vector.broadcast %126 : vector<1x4x1xf32> to vector<2x4x256xf32>
    %128 = arith.mulf %113, %127 : vector<2x4x256xf32>
    %129 = arith.addf %112, %128 : vector<2x4x256xf32>
    %c0_36 = arith.constant 0 : index
    %c0_37 = arith.constant 0 : index
    %c19 = arith.constant 19 : index
    %130 = vector.load %arg5[%c0_36, %c0_37, %c19] : memref<2x4x324xf32, #tpu.memory_space<vmem>>, vector<2x4x256xf32>
    %c1_i32_38 = arith.constant 1 : i32
    %131 = vector.broadcast %c1_i32_38 : i32 to vector<1x1x256xi32>
    %132 = arith.addi %23, %131 : vector<1x1x256xi32>
    %c0_i32_39 = arith.constant 0 : i32
    %133 = vector.broadcast %c0_i32_39 : i32 to vector<1x1x256xi32>
    %134 = arith.cmpi sge, %132, %133 : vector<1x1x256xi32>
    %c1_i32_40 = arith.constant 1 : i32
    %135 = vector.broadcast %c1_i32_40 : i32 to vector<1x1x256xi32>
    %136 = arith.addi %23, %135 : vector<1x1x256xi32>
    %c16_i32_41 = arith.constant 16 : i32
    %137 = vector.broadcast %c16_i32_41 : i32 to vector<1x1x256xi32>
    %138 = arith.cmpi slt, %136, %137 : vector<1x1x256xi32>
    %139 = arith.andi %134, %138 : vector<1x1x256xi1>
    %cst_42 = arith.constant 0.000000e+00 : f32
    %140 = vector.shape_cast %139 : vector<1x1x256xi1> to vector<1x1x256xi1>
    %141 = vector.broadcast %140 : vector<1x1x256xi1> to vector<2x4x256xi1>
    %142 = vector.broadcast %cst_42 : f32 to vector<2x4x256xf32>
    %143 = arith.select %141, %130, %142 : vector<2x4x256xi1>, vector<2x4x256xf32>
    %144 = vector.extract_strided_slice %6 {offsets = [0, 0, 6], sizes = [1, 4, 1], strides = [1, 1, 1]} : vector<1x4x89xf32> to vector<1x4x1xf32>
    %145 = vector.broadcast %144 : vector<1x4x1xf32> to vector<2x4x256xf32>
    %146 = arith.mulf %143, %145 : vector<2x4x256xf32>
    %147 = arith.addf %117, %146 : vector<2x4x256xf32>
    %148 = vector.extract_strided_slice %6 {offsets = [0, 0, 15], sizes = [1, 4, 1], strides = [1, 1, 1]} : vector<1x4x89xf32> to vector<1x4x1xf32>
    %149 = vector.broadcast %148 : vector<1x4x1xf32> to vector<2x4x256xf32>
    %150 = arith.mulf %143, %149 : vector<2x4x256xf32>
    %151 = arith.addf %121, %150 : vector<2x4x256xf32>
    %152 = vector.extract_strided_slice %6 {offsets = [0, 0, 24], sizes = [1, 4, 1], strides = [1, 1, 1]} : vector<1x4x89xf32> to vector<1x4x1xf32>
    %153 = vector.broadcast %152 : vector<1x4x1xf32> to vector<2x4x256xf32>
    %154 = arith.mulf %143, %153 : vector<2x4x256xf32>
    %155 = arith.addf %125, %154 : vector<2x4x256xf32>
    %156 = vector.extract_strided_slice %6 {offsets = [0, 0, 33], sizes = [1, 4, 1], strides = [1, 1, 1]} : vector<1x4x89xf32> to vector<1x4x1xf32>
    %157 = vector.broadcast %156 : vector<1x4x1xf32> to vector<2x4x256xf32>
    %158 = arith.mulf %143, %157 : vector<2x4x256xf32>
    %159 = arith.addf %129, %158 : vector<2x4x256xf32>
    %c0_43 = arith.constant 0 : index
    %c0_44 = arith.constant 0 : index
    %c33 = arith.constant 33 : index
    %160 = vector.load %arg5[%c0_43, %c0_44, %c33] : memref<2x4x324xf32, #tpu.memory_space<vmem>>, vector<2x4x256xf32>
    %c-1_i32_45 = arith.constant -1 : i32
    %161 = vector.broadcast %c-1_i32_45 : i32 to vector<1x1x256xi32>
    %162 = arith.addi %23, %161 : vector<1x1x256xi32>
    %c0_i32_46 = arith.constant 0 : i32
    %163 = vector.broadcast %c0_i32_46 : i32 to vector<1x1x256xi32>
    %164 = arith.cmpi sge, %162, %163 : vector<1x1x256xi32>
    %c-1_i32_47 = arith.constant -1 : i32
    %165 = vector.broadcast %c-1_i32_47 : i32 to vector<1x1x256xi32>
    %166 = arith.addi %23, %165 : vector<1x1x256xi32>
    %c16_i32_48 = arith.constant 16 : i32
    %167 = vector.broadcast %c16_i32_48 : i32 to vector<1x1x256xi32>
    %168 = arith.cmpi slt, %166, %167 : vector<1x1x256xi32>
    %169 = arith.andi %164, %168 : vector<1x1x256xi1>
    %cst_49 = arith.constant 0.000000e+00 : f32
    %170 = vector.shape_cast %169 : vector<1x1x256xi1> to vector<1x1x256xi1>
    %171 = vector.broadcast %170 : vector<1x1x256xi1> to vector<2x4x256xi1>
    %172 = vector.broadcast %cst_49 : f32 to vector<2x4x256xf32>
    %173 = arith.select %171, %160, %172 : vector<2x4x256xi1>, vector<2x4x256xf32>
    %174 = vector.extract_strided_slice %6 {offsets = [0, 0, 7], sizes = [1, 4, 1], strides = [1, 1, 1]} : vector<1x4x89xf32> to vector<1x4x1xf32>
    %175 = vector.broadcast %174 : vector<1x4x1xf32> to vector<2x4x256xf32>
    %176 = arith.mulf %173, %175 : vector<2x4x256xf32>
    %177 = arith.addf %147, %176 : vector<2x4x256xf32>
    %178 = vector.extract_strided_slice %6 {offsets = [0, 0, 16], sizes = [1, 4, 1], strides = [1, 1, 1]} : vector<1x4x89xf32> to vector<1x4x1xf32>
    %179 = vector.broadcast %178 : vector<1x4x1xf32> to vector<2x4x256xf32>
    %180 = arith.mulf %173, %179 : vector<2x4x256xf32>
    %181 = arith.addf %151, %180 : vector<2x4x256xf32>
    %182 = vector.extract_strided_slice %6 {offsets = [0, 0, 25], sizes = [1, 4, 1], strides = [1, 1, 1]} : vector<1x4x89xf32> to vector<1x4x1xf32>
    %183 = vector.broadcast %182 : vector<1x4x1xf32> to vector<2x4x256xf32>
    %184 = arith.mulf %173, %183 : vector<2x4x256xf32>
    %185 = arith.addf %155, %184 : vector<2x4x256xf32>
    %186 = vector.extract_strided_slice %6 {offsets = [0, 0, 34], sizes = [1, 4, 1], strides = [1, 1, 1]} : vector<1x4x89xf32> to vector<1x4x1xf32>
    %187 = vector.broadcast %186 : vector<1x4x1xf32> to vector<2x4x256xf32>
    %188 = arith.mulf %173, %187 : vector<2x4x256xf32>
    %189 = arith.addf %159, %188 : vector<2x4x256xf32>
    %c0_50 = arith.constant 0 : index
    %c0_51 = arith.constant 0 : index
    %c34_52 = arith.constant 34 : index
    %190 = vector.load %arg5[%c0_50, %c0_51, %c34_52] : memref<2x4x324xf32, #tpu.memory_space<vmem>>, vector<2x4x256xf32>
    %191 = vector.extract_strided_slice %6 {offsets = [0, 0, 8], sizes = [1, 4, 1], strides = [1, 1, 1]} : vector<1x4x89xf32> to vector<1x4x1xf32>
    %192 = vector.broadcast %191 : vector<1x4x1xf32> to vector<2x4x256xf32>
    %193 = arith.mulf %190, %192 : vector<2x4x256xf32>
    %194 = arith.addf %177, %193 : vector<2x4x256xf32>
    %195 = vector.extract_strided_slice %6 {offsets = [0, 0, 17], sizes = [1, 4, 1], strides = [1, 1, 1]} : vector<1x4x89xf32> to vector<1x4x1xf32>
    %196 = vector.broadcast %195 : vector<1x4x1xf32> to vector<2x4x256xf32>
    %197 = arith.mulf %190, %196 : vector<2x4x256xf32>
    %198 = arith.addf %181, %197 : vector<2x4x256xf32>
    %199 = vector.extract_strided_slice %6 {offsets = [0, 0, 26], sizes = [1, 4, 1], strides = [1, 1, 1]} : vector<1x4x89xf32> to vector<1x4x1xf32>
    %200 = vector.broadcast %199 : vector<1x4x1xf32> to vector<2x4x256xf32>
    %201 = arith.mulf %190, %200 : vector<2x4x256xf32>
    %202 = arith.addf %185, %201 : vector<2x4x256xf32>
    %203 = vector.extract_strided_slice %6 {offsets = [0, 0, 35], sizes = [1, 4, 1], strides = [1, 1, 1]} : vector<1x4x89xf32> to vector<1x4x1xf32>
    %204 = vector.broadcast %203 : vector<1x4x1xf32> to vector<2x4x256xf32>
    %205 = arith.mulf %190, %204 : vector<2x4x256xf32>
    %206 = arith.addf %189, %205 : vector<2x4x256xf32>
    %c0_53 = arith.constant 0 : index
    %c0_54 = arith.constant 0 : index
    %c35 = arith.constant 35 : index
    %207 = vector.load %arg5[%c0_53, %c0_54, %c35] : memref<2x4x324xf32, #tpu.memory_space<vmem>>, vector<2x4x256xf32>
    %c1_i32_55 = arith.constant 1 : i32
    %208 = vector.broadcast %c1_i32_55 : i32 to vector<1x1x256xi32>
    %209 = arith.addi %23, %208 : vector<1x1x256xi32>
    %c0_i32_56 = arith.constant 0 : i32
    %210 = vector.broadcast %c0_i32_56 : i32 to vector<1x1x256xi32>
    %211 = arith.cmpi sge, %209, %210 : vector<1x1x256xi32>
    %c1_i32_57 = arith.constant 1 : i32
    %212 = vector.broadcast %c1_i32_57 : i32 to vector<1x1x256xi32>
    %213 = arith.addi %23, %212 : vector<1x1x256xi32>
    %c16_i32_58 = arith.constant 16 : i32
    %214 = vector.broadcast %c16_i32_58 : i32 to vector<1x1x256xi32>
    %215 = arith.cmpi slt, %213, %214 : vector<1x1x256xi32>
    %216 = arith.andi %211, %215 : vector<1x1x256xi1>
    %cst_59 = arith.constant 0.000000e+00 : f32
    %217 = vector.shape_cast %216 : vector<1x1x256xi1> to vector<1x1x256xi1>
    %218 = vector.broadcast %217 : vector<1x1x256xi1> to vector<2x4x256xi1>
    %219 = vector.broadcast %cst_59 : f32 to vector<2x4x256xf32>
    %220 = arith.select %218, %207, %219 : vector<2x4x256xi1>, vector<2x4x256xf32>
    %221 = vector.extract_strided_slice %6 {offsets = [0, 0, 9], sizes = [1, 4, 1], strides = [1, 1, 1]} : vector<1x4x89xf32> to vector<1x4x1xf32>
    %222 = vector.broadcast %221 : vector<1x4x1xf32> to vector<2x4x256xf32>
    %223 = arith.mulf %220, %222 : vector<2x4x256xf32>
    %224 = arith.addf %194, %223 : vector<2x4x256xf32>
    %225 = vector.extract_strided_slice %6 {offsets = [0, 0, 18], sizes = [1, 4, 1], strides = [1, 1, 1]} : vector<1x4x89xf32> to vector<1x4x1xf32>
    %226 = vector.broadcast %225 : vector<1x4x1xf32> to vector<2x4x256xf32>
    %227 = arith.mulf %220, %226 : vector<2x4x256xf32>
    %228 = arith.addf %198, %227 : vector<2x4x256xf32>
    %229 = vector.extract_strided_slice %6 {offsets = [0, 0, 27], sizes = [1, 4, 1], strides = [1, 1, 1]} : vector<1x4x89xf32> to vector<1x4x1xf32>
    %230 = vector.broadcast %229 : vector<1x4x1xf32> to vector<2x4x256xf32>
    %231 = arith.mulf %220, %230 : vector<2x4x256xf32>
    %232 = arith.addf %202, %231 : vector<2x4x256xf32>
    %233 = vector.extract_strided_slice %6 {offsets = [0, 0, 36], sizes = [1, 4, 1], strides = [1, 1, 1]} : vector<1x4x89xf32> to vector<1x4x1xf32>
    %234 = vector.broadcast %233 : vector<1x4x1xf32> to vector<2x4x256xf32>
    %235 = arith.mulf %220, %234 : vector<2x4x256xf32>
    %236 = arith.addf %206, %235 : vector<2x4x256xf32>
    %c0_60 = arith.constant 0 : index
    %c0_61 = arith.constant 0 : index
    %c49 = arith.constant 49 : index
    %237 = vector.load %arg5[%c0_60, %c0_61, %c49] : memref<2x4x324xf32, #tpu.memory_space<vmem>>, vector<2x4x256xf32>
    %c-1_i32_62 = arith.constant -1 : i32
    %238 = vector.broadcast %c-1_i32_62 : i32 to vector<1x1x256xi32>
    %239 = arith.addi %23, %238 : vector<1x1x256xi32>
    %c0_i32_63 = arith.constant 0 : i32
    %240 = vector.broadcast %c0_i32_63 : i32 to vector<1x1x256xi32>
    %241 = arith.cmpi sge, %239, %240 : vector<1x1x256xi32>
    %c-1_i32_64 = arith.constant -1 : i32
    %242 = vector.broadcast %c-1_i32_64 : i32 to vector<1x1x256xi32>
    %243 = arith.addi %23, %242 : vector<1x1x256xi32>
    %c16_i32_65 = arith.constant 16 : i32
    %244 = vector.broadcast %c16_i32_65 : i32 to vector<1x1x256xi32>
    %245 = arith.cmpi slt, %243, %244 : vector<1x1x256xi32>
    %246 = arith.andi %241, %245 : vector<1x1x256xi1>
    %cst_66 = arith.constant 0.000000e+00 : f32
    %247 = vector.shape_cast %246 : vector<1x1x256xi1> to vector<1x1x256xi1>
    %248 = vector.broadcast %247 : vector<1x1x256xi1> to vector<2x4x256xi1>
    %249 = vector.broadcast %cst_66 : f32 to vector<2x4x256xf32>
    %250 = arith.select %248, %237, %249 : vector<2x4x256xi1>, vector<2x4x256xf32>
    %251 = vector.extract_strided_slice %6 {offsets = [0, 0, 10], sizes = [1, 4, 1], strides = [1, 1, 1]} : vector<1x4x89xf32> to vector<1x4x1xf32>
    %252 = vector.broadcast %251 : vector<1x4x1xf32> to vector<2x4x256xf32>
    %253 = arith.mulf %250, %252 : vector<2x4x256xf32>
    %254 = arith.addf %224, %253 : vector<2x4x256xf32>
    %255 = vector.extract_strided_slice %6 {offsets = [0, 0, 19], sizes = [1, 4, 1], strides = [1, 1, 1]} : vector<1x4x89xf32> to vector<1x4x1xf32>
    %256 = vector.broadcast %255 : vector<1x4x1xf32> to vector<2x4x256xf32>
    %257 = arith.mulf %250, %256 : vector<2x4x256xf32>
    %258 = arith.addf %228, %257 : vector<2x4x256xf32>
    %259 = vector.extract_strided_slice %6 {offsets = [0, 0, 28], sizes = [1, 4, 1], strides = [1, 1, 1]} : vector<1x4x89xf32> to vector<1x4x1xf32>
    %260 = vector.broadcast %259 : vector<1x4x1xf32> to vector<2x4x256xf32>
    %261 = arith.mulf %250, %260 : vector<2x4x256xf32>
    %262 = arith.addf %232, %261 : vector<2x4x256xf32>
    %263 = vector.extract_strided_slice %6 {offsets = [0, 0, 37], sizes = [1, 4, 1], strides = [1, 1, 1]} : vector<1x4x89xf32> to vector<1x4x1xf32>
    %264 = vector.broadcast %263 : vector<1x4x1xf32> to vector<2x4x256xf32>
    %265 = arith.mulf %250, %264 : vector<2x4x256xf32>
    %266 = arith.addf %236, %265 : vector<2x4x256xf32>
    %c0_67 = arith.constant 0 : index
    %c0_68 = arith.constant 0 : index
    %c50 = arith.constant 50 : index
    %267 = vector.load %arg5[%c0_67, %c0_68, %c50] : memref<2x4x324xf32, #tpu.memory_space<vmem>>, vector<2x4x256xf32>
    %268 = vector.extract_strided_slice %6 {offsets = [0, 0, 11], sizes = [1, 4, 1], strides = [1, 1, 1]} : vector<1x4x89xf32> to vector<1x4x1xf32>
    %269 = vector.broadcast %268 : vector<1x4x1xf32> to vector<2x4x256xf32>
    %270 = arith.mulf %267, %269 : vector<2x4x256xf32>
    %271 = arith.addf %254, %270 : vector<2x4x256xf32>
    %272 = vector.extract_strided_slice %6 {offsets = [0, 0, 20], sizes = [1, 4, 1], strides = [1, 1, 1]} : vector<1x4x89xf32> to vector<1x4x1xf32>
    %273 = vector.broadcast %272 : vector<1x4x1xf32> to vector<2x4x256xf32>
    %274 = arith.mulf %267, %273 : vector<2x4x256xf32>
    %275 = arith.addf %258, %274 : vector<2x4x256xf32>
    %276 = vector.extract_strided_slice %6 {offsets = [0, 0, 29], sizes = [1, 4, 1], strides = [1, 1, 1]} : vector<1x4x89xf32> to vector<1x4x1xf32>
    %277 = vector.broadcast %276 : vector<1x4x1xf32> to vector<2x4x256xf32>
    %278 = arith.mulf %267, %277 : vector<2x4x256xf32>
    %279 = arith.addf %262, %278 : vector<2x4x256xf32>
    %280 = vector.extract_strided_slice %6 {offsets = [0, 0, 38], sizes = [1, 4, 1], strides = [1, 1, 1]} : vector<1x4x89xf32> to vector<1x4x1xf32>
    %281 = vector.broadcast %280 : vector<1x4x1xf32> to vector<2x4x256xf32>
    %282 = arith.mulf %267, %281 : vector<2x4x256xf32>
    %283 = arith.addf %266, %282 : vector<2x4x256xf32>
    %c0_69 = arith.constant 0 : index
    %c0_70 = arith.constant 0 : index
    %c51 = arith.constant 51 : index
    %284 = vector.load %arg5[%c0_69, %c0_70, %c51] : memref<2x4x324xf32, #tpu.memory_space<vmem>>, vector<2x4x256xf32>
    %c1_i32_71 = arith.constant 1 : i32
    %285 = vector.broadcast %c1_i32_71 : i32 to vector<1x1x256xi32>
    %286 = arith.addi %23, %285 : vector<1x1x256xi32>
    %c0_i32_72 = arith.constant 0 : i32
    %287 = vector.broadcast %c0_i32_72 : i32 to vector<1x1x256xi32>
    %288 = arith.cmpi sge, %286, %287 : vector<1x1x256xi32>
    %c1_i32_73 = arith.constant 1 : i32
    %289 = vector.broadcast %c1_i32_73 : i32 to vector<1x1x256xi32>
    %290 = arith.addi %23, %289 : vector<1x1x256xi32>
    %c16_i32_74 = arith.constant 16 : i32
    %291 = vector.broadcast %c16_i32_74 : i32 to vector<1x1x256xi32>
    %292 = arith.cmpi slt, %290, %291 : vector<1x1x256xi32>
    %293 = arith.andi %288, %292 : vector<1x1x256xi1>
    %cst_75 = arith.constant 0.000000e+00 : f32
    %294 = vector.shape_cast %293 : vector<1x1x256xi1> to vector<1x1x256xi1>
    %295 = vector.broadcast %294 : vector<1x1x256xi1> to vector<2x4x256xi1>
    %296 = vector.broadcast %cst_75 : f32 to vector<2x4x256xf32>
    %297 = arith.select %295, %284, %296 : vector<2x4x256xi1>, vector<2x4x256xf32>
    %298 = vector.extract_strided_slice %6 {offsets = [0, 0, 12], sizes = [1, 4, 1], strides = [1, 1, 1]} : vector<1x4x89xf32> to vector<1x4x1xf32>
    %299 = vector.broadcast %298 : vector<1x4x1xf32> to vector<2x4x256xf32>
    %300 = arith.mulf %297, %299 : vector<2x4x256xf32>
    %301 = arith.addf %271, %300 : vector<2x4x256xf32>
    %302 = vector.extract_strided_slice %6 {offsets = [0, 0, 21], sizes = [1, 4, 1], strides = [1, 1, 1]} : vector<1x4x89xf32> to vector<1x4x1xf32>
    %303 = vector.broadcast %302 : vector<1x4x1xf32> to vector<2x4x256xf32>
    %304 = arith.mulf %297, %303 : vector<2x4x256xf32>
    %305 = arith.addf %275, %304 : vector<2x4x256xf32>
    %306 = vector.extract_strided_slice %6 {offsets = [0, 0, 30], sizes = [1, 4, 1], strides = [1, 1, 1]} : vector<1x4x89xf32> to vector<1x4x1xf32>
    %307 = vector.broadcast %306 : vector<1x4x1xf32> to vector<2x4x256xf32>
    %308 = arith.mulf %297, %307 : vector<2x4x256xf32>
    %309 = arith.addf %279, %308 : vector<2x4x256xf32>
    %310 = vector.extract_strided_slice %6 {offsets = [0, 0, 39], sizes = [1, 4, 1], strides = [1, 1, 1]} : vector<1x4x89xf32> to vector<1x4x1xf32>
    %311 = vector.broadcast %310 : vector<1x4x1xf32> to vector<2x4x256xf32>
    %312 = arith.mulf %297, %311 : vector<2x4x256xf32>
    %313 = arith.addf %283, %312 : vector<2x4x256xf32>
    %cst_76 = arith.constant dense<0.000000e+00> : vector<2x256xf32>
    %314 = vector.multi_reduction <add>, %301, %cst_76 [1] : vector<2x4x256xf32> to vector<2x256xf32>
    %c4 = arith.constant 4 : index
    %315 = memref.load %arg3[%c4] : memref<12xf32, #tpu.memory_space<smem>>
    %316 = vector.broadcast %315 : f32 to vector<2x256xf32>
    %317 = arith.addf %314, %316 : vector<2x256xf32>
    %cst_77 = arith.constant 0.000000e+00 : f32
    %318 = vector.broadcast %cst_77 : f32 to vector<2x256xf32>
    %319 = arith.maximumf %317, %318 : vector<2x256xf32>
    %320 = vector.shape_cast %319 : vector<2x256xf32> to vector<2x1x256xf32>
    %321 = vector.extract_strided_slice %6 {offsets = [0, 0, 80], sizes = [1, 4, 1], strides = [1, 1, 1]} : vector<1x4x89xf32> to vector<1x4x1xf32>
    %322 = vector.broadcast %320 : vector<2x1x256xf32> to vector<2x4x256xf32>
    %323 = vector.broadcast %321 : vector<1x4x1xf32> to vector<2x4x256xf32>
    %324 = arith.mulf %322, %323 : vector<2x4x256xf32>
    %325 = arith.addf %86, %324 : vector<2x4x256xf32>
    %cst_78 = arith.constant dense<0.000000e+00> : vector<2x256xf32>
    %326 = vector.multi_reduction <add>, %305, %cst_78 [1] : vector<2x4x256xf32> to vector<2x256xf32>
    %c5 = arith.constant 5 : index
    %327 = memref.load %arg3[%c5] : memref<12xf32, #tpu.memory_space<smem>>
    %328 = vector.broadcast %327 : f32 to vector<2x256xf32>
    %329 = arith.addf %326, %328 : vector<2x256xf32>
    %cst_79 = arith.constant 0.000000e+00 : f32
    %330 = vector.broadcast %cst_79 : f32 to vector<2x256xf32>
    %331 = arith.maximumf %329, %330 : vector<2x256xf32>
    %332 = vector.shape_cast %331 : vector<2x256xf32> to vector<2x1x256xf32>
    %333 = vector.extract_strided_slice %6 {offsets = [0, 0, 81], sizes = [1, 4, 1], strides = [1, 1, 1]} : vector<1x4x89xf32> to vector<1x4x1xf32>
    %334 = vector.broadcast %332 : vector<2x1x256xf32> to vector<2x4x256xf32>
    %335 = vector.broadcast %333 : vector<1x4x1xf32> to vector<2x4x256xf32>
    %336 = arith.mulf %334, %335 : vector<2x4x256xf32>
    %337 = arith.addf %325, %336 : vector<2x4x256xf32>
    %cst_80 = arith.constant dense<0.000000e+00> : vector<2x256xf32>
    %338 = vector.multi_reduction <add>, %309, %cst_80 [1] : vector<2x4x256xf32> to vector<2x256xf32>
    %c6 = arith.constant 6 : index
    %339 = memref.load %arg3[%c6] : memref<12xf32, #tpu.memory_space<smem>>
    %340 = vector.broadcast %339 : f32 to vector<2x256xf32>
    %341 = arith.addf %338, %340 : vector<2x256xf32>
    %cst_81 = arith.constant 0.000000e+00 : f32
    %342 = vector.broadcast %cst_81 : f32 to vector<2x256xf32>
    %343 = arith.maximumf %341, %342 : vector<2x256xf32>
    %344 = vector.shape_cast %343 : vector<2x256xf32> to vector<2x1x256xf32>
    %345 = vector.extract_strided_slice %6 {offsets = [0, 0, 82], sizes = [1, 4, 1], strides = [1, 1, 1]} : vector<1x4x89xf32> to vector<1x4x1xf32>
    %346 = vector.broadcast %344 : vector<2x1x256xf32> to vector<2x4x256xf32>
    %347 = vector.broadcast %345 : vector<1x4x1xf32> to vector<2x4x256xf32>
    %348 = arith.mulf %346, %347 : vector<2x4x256xf32>
    %349 = arith.addf %337, %348 : vector<2x4x256xf32>
    %cst_82 = arith.constant dense<0.000000e+00> : vector<2x256xf32>
    %350 = vector.multi_reduction <add>, %313, %cst_82 [1] : vector<2x4x256xf32> to vector<2x256xf32>
    %c7 = arith.constant 7 : index
    %351 = memref.load %arg3[%c7] : memref<12xf32, #tpu.memory_space<smem>>
    %352 = vector.broadcast %351 : f32 to vector<2x256xf32>
    %353 = arith.addf %350, %352 : vector<2x256xf32>
    %cst_83 = arith.constant 0.000000e+00 : f32
    %354 = vector.broadcast %cst_83 : f32 to vector<2x256xf32>
    %355 = arith.maximumf %353, %354 : vector<2x256xf32>
    %356 = vector.shape_cast %355 : vector<2x256xf32> to vector<2x1x256xf32>
    %357 = vector.extract_strided_slice %6 {offsets = [0, 0, 83], sizes = [1, 4, 1], strides = [1, 1, 1]} : vector<1x4x89xf32> to vector<1x4x1xf32>
    %358 = vector.broadcast %356 : vector<2x1x256xf32> to vector<2x4x256xf32>
    %359 = vector.broadcast %357 : vector<1x4x1xf32> to vector<2x4x256xf32>
    %360 = arith.mulf %358, %359 : vector<2x4x256xf32>
    %361 = arith.addf %349, %360 : vector<2x4x256xf32>
    %c0_84 = arith.constant 0 : index
    %c0_85 = arith.constant 0 : index
    %c0_86 = arith.constant 0 : index
    %362 = vector.load %arg5[%c0_84, %c0_85, %c0_86] : memref<2x4x324xf32, #tpu.memory_space<vmem>>, vector<2x4x256xf32>
    %c-2_i32 = arith.constant -2 : i32
    %363 = vector.broadcast %c-2_i32 : i32 to vector<1x1x256xi32>
    %364 = arith.addi %23, %363 : vector<1x1x256xi32>
    %c0_i32_87 = arith.constant 0 : i32
    %365 = vector.broadcast %c0_i32_87 : i32 to vector<1x1x256xi32>
    %366 = arith.cmpi sge, %364, %365 : vector<1x1x256xi32>
    %c-2_i32_88 = arith.constant -2 : i32
    %367 = vector.broadcast %c-2_i32_88 : i32 to vector<1x1x256xi32>
    %368 = arith.addi %23, %367 : vector<1x1x256xi32>
    %c16_i32_89 = arith.constant 16 : i32
    %369 = vector.broadcast %c16_i32_89 : i32 to vector<1x1x256xi32>
    %370 = arith.cmpi slt, %368, %369 : vector<1x1x256xi32>
    %371 = arith.andi %366, %370 : vector<1x1x256xi1>
    %cst_90 = arith.constant 0.000000e+00 : f32
    %372 = vector.shape_cast %371 : vector<1x1x256xi1> to vector<1x1x256xi1>
    %373 = vector.broadcast %372 : vector<1x1x256xi1> to vector<2x4x256xi1>
    %374 = vector.broadcast %cst_90 : f32 to vector<2x4x256xf32>
    %375 = arith.select %373, %362, %374 : vector<2x4x256xi1>, vector<2x4x256xf32>
    %376 = vector.extract_strided_slice %6 {offsets = [0, 0, 40], sizes = [1, 4, 1], strides = [1, 1, 1]} : vector<1x4x89xf32> to vector<1x4x1xf32>
    %377 = vector.broadcast %376 : vector<1x4x1xf32> to vector<2x4x256xf32>
    %378 = arith.mulf %375, %377 : vector<2x4x256xf32>
    %379 = vector.extract_strided_slice %6 {offsets = [0, 0, 49], sizes = [1, 4, 1], strides = [1, 1, 1]} : vector<1x4x89xf32> to vector<1x4x1xf32>
    %380 = vector.broadcast %379 : vector<1x4x1xf32> to vector<2x4x256xf32>
    %381 = arith.mulf %375, %380 : vector<2x4x256xf32>
    %382 = vector.extract_strided_slice %6 {offsets = [0, 0, 58], sizes = [1, 4, 1], strides = [1, 1, 1]} : vector<1x4x89xf32> to vector<1x4x1xf32>
    %383 = vector.broadcast %382 : vector<1x4x1xf32> to vector<2x4x256xf32>
    %384 = arith.mulf %375, %383 : vector<2x4x256xf32>
    %385 = vector.extract_strided_slice %6 {offsets = [0, 0, 67], sizes = [1, 4, 1], strides = [1, 1, 1]} : vector<1x4x89xf32> to vector<1x4x1xf32>
    %386 = vector.broadcast %385 : vector<1x4x1xf32> to vector<2x4x256xf32>
    %387 = arith.mulf %375, %386 : vector<2x4x256xf32>
    %c0_91 = arith.constant 0 : index
    %c0_92 = arith.constant 0 : index
    %c2_93 = arith.constant 2 : index
    %388 = vector.load %arg5[%c0_91, %c0_92, %c2_93] : memref<2x4x324xf32, #tpu.memory_space<vmem>>, vector<2x4x256xf32>
    %389 = vector.extract_strided_slice %6 {offsets = [0, 0, 41], sizes = [1, 4, 1], strides = [1, 1, 1]} : vector<1x4x89xf32> to vector<1x4x1xf32>
    %390 = vector.broadcast %389 : vector<1x4x1xf32> to vector<2x4x256xf32>
    %391 = arith.mulf %388, %390 : vector<2x4x256xf32>
    %392 = arith.addf %378, %391 : vector<2x4x256xf32>
    %393 = vector.extract_strided_slice %6 {offsets = [0, 0, 50], sizes = [1, 4, 1], strides = [1, 1, 1]} : vector<1x4x89xf32> to vector<1x4x1xf32>
    %394 = vector.broadcast %393 : vector<1x4x1xf32> to vector<2x4x256xf32>
    %395 = arith.mulf %388, %394 : vector<2x4x256xf32>
    %396 = arith.addf %381, %395 : vector<2x4x256xf32>
    %397 = vector.extract_strided_slice %6 {offsets = [0, 0, 59], sizes = [1, 4, 1], strides = [1, 1, 1]} : vector<1x4x89xf32> to vector<1x4x1xf32>
    %398 = vector.broadcast %397 : vector<1x4x1xf32> to vector<2x4x256xf32>
    %399 = arith.mulf %388, %398 : vector<2x4x256xf32>
    %400 = arith.addf %384, %399 : vector<2x4x256xf32>
    %401 = vector.extract_strided_slice %6 {offsets = [0, 0, 68], sizes = [1, 4, 1], strides = [1, 1, 1]} : vector<1x4x89xf32> to vector<1x4x1xf32>
    %402 = vector.broadcast %401 : vector<1x4x1xf32> to vector<2x4x256xf32>
    %403 = arith.mulf %388, %402 : vector<2x4x256xf32>
    %404 = arith.addf %387, %403 : vector<2x4x256xf32>
    %c0_94 = arith.constant 0 : index
    %c0_95 = arith.constant 0 : index
    %c4_96 = arith.constant 4 : index
    %405 = vector.load %arg5[%c0_94, %c0_95, %c4_96] : memref<2x4x324xf32, #tpu.memory_space<vmem>>, vector<2x4x256xf32>
    %c2_i32 = arith.constant 2 : i32
    %406 = vector.broadcast %c2_i32 : i32 to vector<1x1x256xi32>
    %407 = arith.addi %23, %406 : vector<1x1x256xi32>
    %c0_i32_97 = arith.constant 0 : i32
    %408 = vector.broadcast %c0_i32_97 : i32 to vector<1x1x256xi32>
    %409 = arith.cmpi sge, %407, %408 : vector<1x1x256xi32>
    %c2_i32_98 = arith.constant 2 : i32
    %410 = vector.broadcast %c2_i32_98 : i32 to vector<1x1x256xi32>
    %411 = arith.addi %23, %410 : vector<1x1x256xi32>
    %c16_i32_99 = arith.constant 16 : i32
    %412 = vector.broadcast %c16_i32_99 : i32 to vector<1x1x256xi32>
    %413 = arith.cmpi slt, %411, %412 : vector<1x1x256xi32>
    %414 = arith.andi %409, %413 : vector<1x1x256xi1>
    %cst_100 = arith.constant 0.000000e+00 : f32
    %415 = vector.shape_cast %414 : vector<1x1x256xi1> to vector<1x1x256xi1>
    %416 = vector.broadcast %415 : vector<1x1x256xi1> to vector<2x4x256xi1>
    %417 = vector.broadcast %cst_100 : f32 to vector<2x4x256xf32>
    %418 = arith.select %416, %405, %417 : vector<2x4x256xi1>, vector<2x4x256xf32>
    %419 = vector.extract_strided_slice %6 {offsets = [0, 0, 42], sizes = [1, 4, 1], strides = [1, 1, 1]} : vector<1x4x89xf32> to vector<1x4x1xf32>
    %420 = vector.broadcast %419 : vector<1x4x1xf32> to vector<2x4x256xf32>
    %421 = arith.mulf %418, %420 : vector<2x4x256xf32>
    %422 = arith.addf %392, %421 : vector<2x4x256xf32>
    %423 = vector.extract_strided_slice %6 {offsets = [0, 0, 51], sizes = [1, 4, 1], strides = [1, 1, 1]} : vector<1x4x89xf32> to vector<1x4x1xf32>
    %424 = vector.broadcast %423 : vector<1x4x1xf32> to vector<2x4x256xf32>
    %425 = arith.mulf %418, %424 : vector<2x4x256xf32>
    %426 = arith.addf %396, %425 : vector<2x4x256xf32>
    %427 = vector.extract_strided_slice %6 {offsets = [0, 0, 60], sizes = [1, 4, 1], strides = [1, 1, 1]} : vector<1x4x89xf32> to vector<1x4x1xf32>
    %428 = vector.broadcast %427 : vector<1x4x1xf32> to vector<2x4x256xf32>
    %429 = arith.mulf %418, %428 : vector<2x4x256xf32>
    %430 = arith.addf %400, %429 : vector<2x4x256xf32>
    %431 = vector.extract_strided_slice %6 {offsets = [0, 0, 69], sizes = [1, 4, 1], strides = [1, 1, 1]} : vector<1x4x89xf32> to vector<1x4x1xf32>
    %432 = vector.broadcast %431 : vector<1x4x1xf32> to vector<2x4x256xf32>
    %433 = arith.mulf %418, %432 : vector<2x4x256xf32>
    %434 = arith.addf %404, %433 : vector<2x4x256xf32>
    %c0_101 = arith.constant 0 : index
    %c0_102 = arith.constant 0 : index
    %c32 = arith.constant 32 : index
    %435 = vector.load %arg5[%c0_101, %c0_102, %c32] : memref<2x4x324xf32, #tpu.memory_space<vmem>>, vector<2x4x256xf32>
    %c-2_i32_103 = arith.constant -2 : i32
    %436 = vector.broadcast %c-2_i32_103 : i32 to vector<1x1x256xi32>
    %437 = arith.addi %23, %436 : vector<1x1x256xi32>
    %c0_i32_104 = arith.constant 0 : i32
    %438 = vector.broadcast %c0_i32_104 : i32 to vector<1x1x256xi32>
    %439 = arith.cmpi sge, %437, %438 : vector<1x1x256xi32>
    %c-2_i32_105 = arith.constant -2 : i32
    %440 = vector.broadcast %c-2_i32_105 : i32 to vector<1x1x256xi32>
    %441 = arith.addi %23, %440 : vector<1x1x256xi32>
    %c16_i32_106 = arith.constant 16 : i32
    %442 = vector.broadcast %c16_i32_106 : i32 to vector<1x1x256xi32>
    %443 = arith.cmpi slt, %441, %442 : vector<1x1x256xi32>
    %444 = arith.andi %439, %443 : vector<1x1x256xi1>
    %cst_107 = arith.constant 0.000000e+00 : f32
    %445 = vector.shape_cast %444 : vector<1x1x256xi1> to vector<1x1x256xi1>
    %446 = vector.broadcast %445 : vector<1x1x256xi1> to vector<2x4x256xi1>
    %447 = vector.broadcast %cst_107 : f32 to vector<2x4x256xf32>
    %448 = arith.select %446, %435, %447 : vector<2x4x256xi1>, vector<2x4x256xf32>
    %449 = vector.extract_strided_slice %6 {offsets = [0, 0, 43], sizes = [1, 4, 1], strides = [1, 1, 1]} : vector<1x4x89xf32> to vector<1x4x1xf32>
    %450 = vector.broadcast %449 : vector<1x4x1xf32> to vector<2x4x256xf32>
    %451 = arith.mulf %448, %450 : vector<2x4x256xf32>
    %452 = arith.addf %422, %451 : vector<2x4x256xf32>
    %453 = vector.extract_strided_slice %6 {offsets = [0, 0, 52], sizes = [1, 4, 1], strides = [1, 1, 1]} : vector<1x4x89xf32> to vector<1x4x1xf32>
    %454 = vector.broadcast %453 : vector<1x4x1xf32> to vector<2x4x256xf32>
    %455 = arith.mulf %448, %454 : vector<2x4x256xf32>
    %456 = arith.addf %426, %455 : vector<2x4x256xf32>
    %457 = vector.extract_strided_slice %6 {offsets = [0, 0, 61], sizes = [1, 4, 1], strides = [1, 1, 1]} : vector<1x4x89xf32> to vector<1x4x1xf32>
    %458 = vector.broadcast %457 : vector<1x4x1xf32> to vector<2x4x256xf32>
    %459 = arith.mulf %448, %458 : vector<2x4x256xf32>
    %460 = arith.addf %430, %459 : vector<2x4x256xf32>
    %461 = vector.extract_strided_slice %6 {offsets = [0, 0, 70], sizes = [1, 4, 1], strides = [1, 1, 1]} : vector<1x4x89xf32> to vector<1x4x1xf32>
    %462 = vector.broadcast %461 : vector<1x4x1xf32> to vector<2x4x256xf32>
    %463 = arith.mulf %448, %462 : vector<2x4x256xf32>
    %464 = arith.addf %434, %463 : vector<2x4x256xf32>
    %c0_108 = arith.constant 0 : index
    %c0_109 = arith.constant 0 : index
    %c34_110 = arith.constant 34 : index
    %465 = vector.load %arg5[%c0_108, %c0_109, %c34_110] : memref<2x4x324xf32, #tpu.memory_space<vmem>>, vector<2x4x256xf32>
    %466 = vector.extract_strided_slice %6 {offsets = [0, 0, 44], sizes = [1, 4, 1], strides = [1, 1, 1]} : vector<1x4x89xf32> to vector<1x4x1xf32>
    %467 = vector.broadcast %466 : vector<1x4x1xf32> to vector<2x4x256xf32>
    %468 = arith.mulf %465, %467 : vector<2x4x256xf32>
    %469 = arith.addf %452, %468 : vector<2x4x256xf32>
    %470 = vector.extract_strided_slice %6 {offsets = [0, 0, 53], sizes = [1, 4, 1], strides = [1, 1, 1]} : vector<1x4x89xf32> to vector<1x4x1xf32>
    %471 = vector.broadcast %470 : vector<1x4x1xf32> to vector<2x4x256xf32>
    %472 = arith.mulf %465, %471 : vector<2x4x256xf32>
    %473 = arith.addf %456, %472 : vector<2x4x256xf32>
    %474 = vector.extract_strided_slice %6 {offsets = [0, 0, 62], sizes = [1, 4, 1], strides = [1, 1, 1]} : vector<1x4x89xf32> to vector<1x4x1xf32>
    %475 = vector.broadcast %474 : vector<1x4x1xf32> to vector<2x4x256xf32>
    %476 = arith.mulf %465, %475 : vector<2x4x256xf32>
    %477 = arith.addf %460, %476 : vector<2x4x256xf32>
    %478 = vector.extract_strided_slice %6 {offsets = [0, 0, 71], sizes = [1, 4, 1], strides = [1, 1, 1]} : vector<1x4x89xf32> to vector<1x4x1xf32>
    %479 = vector.broadcast %478 : vector<1x4x1xf32> to vector<2x4x256xf32>
    %480 = arith.mulf %465, %479 : vector<2x4x256xf32>
    %481 = arith.addf %464, %480 : vector<2x4x256xf32>
    %c0_111 = arith.constant 0 : index
    %c0_112 = arith.constant 0 : index
    %c36 = arith.constant 36 : index
    %482 = vector.load %arg5[%c0_111, %c0_112, %c36] : memref<2x4x324xf32, #tpu.memory_space<vmem>>, vector<2x4x256xf32>
    %c2_i32_113 = arith.constant 2 : i32
    %483 = vector.broadcast %c2_i32_113 : i32 to vector<1x1x256xi32>
    %484 = arith.addi %23, %483 : vector<1x1x256xi32>
    %c0_i32_114 = arith.constant 0 : i32
    %485 = vector.broadcast %c0_i32_114 : i32 to vector<1x1x256xi32>
    %486 = arith.cmpi sge, %484, %485 : vector<1x1x256xi32>
    %c2_i32_115 = arith.constant 2 : i32
    %487 = vector.broadcast %c2_i32_115 : i32 to vector<1x1x256xi32>
    %488 = arith.addi %23, %487 : vector<1x1x256xi32>
    %c16_i32_116 = arith.constant 16 : i32
    %489 = vector.broadcast %c16_i32_116 : i32 to vector<1x1x256xi32>
    %490 = arith.cmpi slt, %488, %489 : vector<1x1x256xi32>
    %491 = arith.andi %486, %490 : vector<1x1x256xi1>
    %cst_117 = arith.constant 0.000000e+00 : f32
    %492 = vector.shape_cast %491 : vector<1x1x256xi1> to vector<1x1x256xi1>
    %493 = vector.broadcast %492 : vector<1x1x256xi1> to vector<2x4x256xi1>
    %494 = vector.broadcast %cst_117 : f32 to vector<2x4x256xf32>
    %495 = arith.select %493, %482, %494 : vector<2x4x256xi1>, vector<2x4x256xf32>
    %496 = vector.extract_strided_slice %6 {offsets = [0, 0, 45], sizes = [1, 4, 1], strides = [1, 1, 1]} : vector<1x4x89xf32> to vector<1x4x1xf32>
    %497 = vector.broadcast %496 : vector<1x4x1xf32> to vector<2x4x256xf32>
    %498 = arith.mulf %495, %497 : vector<2x4x256xf32>
    %499 = arith.addf %469, %498 : vector<2x4x256xf32>
    %500 = vector.extract_strided_slice %6 {offsets = [0, 0, 54], sizes = [1, 4, 1], strides = [1, 1, 1]} : vector<1x4x89xf32> to vector<1x4x1xf32>
    %501 = vector.broadcast %500 : vector<1x4x1xf32> to vector<2x4x256xf32>
    %502 = arith.mulf %495, %501 : vector<2x4x256xf32>
    %503 = arith.addf %473, %502 : vector<2x4x256xf32>
    %504 = vector.extract_strided_slice %6 {offsets = [0, 0, 63], sizes = [1, 4, 1], strides = [1, 1, 1]} : vector<1x4x89xf32> to vector<1x4x1xf32>
    %505 = vector.broadcast %504 : vector<1x4x1xf32> to vector<2x4x256xf32>
    %506 = arith.mulf %495, %505 : vector<2x4x256xf32>
    %507 = arith.addf %477, %506 : vector<2x4x256xf32>
    %508 = vector.extract_strided_slice %6 {offsets = [0, 0, 72], sizes = [1, 4, 1], strides = [1, 1, 1]} : vector<1x4x89xf32> to vector<1x4x1xf32>
    %509 = vector.broadcast %508 : vector<1x4x1xf32> to vector<2x4x256xf32>
    %510 = arith.mulf %495, %509 : vector<2x4x256xf32>
    %511 = arith.addf %481, %510 : vector<2x4x256xf32>
    %c0_118 = arith.constant 0 : index
    %c0_119 = arith.constant 0 : index
    %c64 = arith.constant 64 : index
    %512 = vector.load %arg5[%c0_118, %c0_119, %c64] : memref<2x4x324xf32, #tpu.memory_space<vmem>>, vector<2x4x256xf32>
    %c-2_i32_120 = arith.constant -2 : i32
    %513 = vector.broadcast %c-2_i32_120 : i32 to vector<1x1x256xi32>
    %514 = arith.addi %23, %513 : vector<1x1x256xi32>
    %c0_i32_121 = arith.constant 0 : i32
    %515 = vector.broadcast %c0_i32_121 : i32 to vector<1x1x256xi32>
    %516 = arith.cmpi sge, %514, %515 : vector<1x1x256xi32>
    %c-2_i32_122 = arith.constant -2 : i32
    %517 = vector.broadcast %c-2_i32_122 : i32 to vector<1x1x256xi32>
    %518 = arith.addi %23, %517 : vector<1x1x256xi32>
    %c16_i32_123 = arith.constant 16 : i32
    %519 = vector.broadcast %c16_i32_123 : i32 to vector<1x1x256xi32>
    %520 = arith.cmpi slt, %518, %519 : vector<1x1x256xi32>
    %521 = arith.andi %516, %520 : vector<1x1x256xi1>
    %cst_124 = arith.constant 0.000000e+00 : f32
    %522 = vector.shape_cast %521 : vector<1x1x256xi1> to vector<1x1x256xi1>
    %523 = vector.broadcast %522 : vector<1x1x256xi1> to vector<2x4x256xi1>
    %524 = vector.broadcast %cst_124 : f32 to vector<2x4x256xf32>
    %525 = arith.select %523, %512, %524 : vector<2x4x256xi1>, vector<2x4x256xf32>
    %526 = vector.extract_strided_slice %6 {offsets = [0, 0, 46], sizes = [1, 4, 1], strides = [1, 1, 1]} : vector<1x4x89xf32> to vector<1x4x1xf32>
    %527 = vector.broadcast %526 : vector<1x4x1xf32> to vector<2x4x256xf32>
    %528 = arith.mulf %525, %527 : vector<2x4x256xf32>
    %529 = arith.addf %499, %528 : vector<2x4x256xf32>
    %530 = vector.extract_strided_slice %6 {offsets = [0, 0, 55], sizes = [1, 4, 1], strides = [1, 1, 1]} : vector<1x4x89xf32> to vector<1x4x1xf32>
    %531 = vector.broadcast %530 : vector<1x4x1xf32> to vector<2x4x256xf32>
    %532 = arith.mulf %525, %531 : vector<2x4x256xf32>
    %533 = arith.addf %503, %532 : vector<2x4x256xf32>
    %534 = vector.extract_strided_slice %6 {offsets = [0, 0, 64], sizes = [1, 4, 1], strides = [1, 1, 1]} : vector<1x4x89xf32> to vector<1x4x1xf32>
    %535 = vector.broadcast %534 : vector<1x4x1xf32> to vector<2x4x256xf32>
    %536 = arith.mulf %525, %535 : vector<2x4x256xf32>
    %537 = arith.addf %507, %536 : vector<2x4x256xf32>
    %538 = vector.extract_strided_slice %6 {offsets = [0, 0, 73], sizes = [1, 4, 1], strides = [1, 1, 1]} : vector<1x4x89xf32> to vector<1x4x1xf32>
    %539 = vector.broadcast %538 : vector<1x4x1xf32> to vector<2x4x256xf32>
    %540 = arith.mulf %525, %539 : vector<2x4x256xf32>
    %541 = arith.addf %511, %540 : vector<2x4x256xf32>
    %c0_125 = arith.constant 0 : index
    %c0_126 = arith.constant 0 : index
    %c66 = arith.constant 66 : index
    %542 = vector.load %arg5[%c0_125, %c0_126, %c66] : memref<2x4x324xf32, #tpu.memory_space<vmem>>, vector<2x4x256xf32>
    %543 = vector.extract_strided_slice %6 {offsets = [0, 0, 47], sizes = [1, 4, 1], strides = [1, 1, 1]} : vector<1x4x89xf32> to vector<1x4x1xf32>
    %544 = vector.broadcast %543 : vector<1x4x1xf32> to vector<2x4x256xf32>
    %545 = arith.mulf %542, %544 : vector<2x4x256xf32>
    %546 = arith.addf %529, %545 : vector<2x4x256xf32>
    %547 = vector.extract_strided_slice %6 {offsets = [0, 0, 56], sizes = [1, 4, 1], strides = [1, 1, 1]} : vector<1x4x89xf32> to vector<1x4x1xf32>
    %548 = vector.broadcast %547 : vector<1x4x1xf32> to vector<2x4x256xf32>
    %549 = arith.mulf %542, %548 : vector<2x4x256xf32>
    %550 = arith.addf %533, %549 : vector<2x4x256xf32>
    %551 = vector.extract_strided_slice %6 {offsets = [0, 0, 65], sizes = [1, 4, 1], strides = [1, 1, 1]} : vector<1x4x89xf32> to vector<1x4x1xf32>
    %552 = vector.broadcast %551 : vector<1x4x1xf32> to vector<2x4x256xf32>
    %553 = arith.mulf %542, %552 : vector<2x4x256xf32>
    %554 = arith.addf %537, %553 : vector<2x4x256xf32>
    %555 = vector.extract_strided_slice %6 {offsets = [0, 0, 74], sizes = [1, 4, 1], strides = [1, 1, 1]} : vector<1x4x89xf32> to vector<1x4x1xf32>
    %556 = vector.broadcast %555 : vector<1x4x1xf32> to vector<2x4x256xf32>
    %557 = arith.mulf %542, %556 : vector<2x4x256xf32>
    %558 = arith.addf %541, %557 : vector<2x4x256xf32>
    %c0_127 = arith.constant 0 : index
    %c0_128 = arith.constant 0 : index
    %c68 = arith.constant 68 : index
    %559 = vector.load %arg5[%c0_127, %c0_128, %c68] : memref<2x4x324xf32, #tpu.memory_space<vmem>>, vector<2x4x256xf32>
    %c2_i32_129 = arith.constant 2 : i32
    %560 = vector.broadcast %c2_i32_129 : i32 to vector<1x1x256xi32>
    %561 = arith.addi %23, %560 : vector<1x1x256xi32>
    %c0_i32_130 = arith.constant 0 : i32
    %562 = vector.broadcast %c0_i32_130 : i32 to vector<1x1x256xi32>
    %563 = arith.cmpi sge, %561, %562 : vector<1x1x256xi32>
    %c2_i32_131 = arith.constant 2 : i32
    %564 = vector.broadcast %c2_i32_131 : i32 to vector<1x1x256xi32>
    %565 = arith.addi %23, %564 : vector<1x1x256xi32>
    %c16_i32_132 = arith.constant 16 : i32
    %566 = vector.broadcast %c16_i32_132 : i32 to vector<1x1x256xi32>
    %567 = arith.cmpi slt, %565, %566 : vector<1x1x256xi32>
    %568 = arith.andi %563, %567 : vector<1x1x256xi1>
    %cst_133 = arith.constant 0.000000e+00 : f32
    %569 = vector.shape_cast %568 : vector<1x1x256xi1> to vector<1x1x256xi1>
    %570 = vector.broadcast %569 : vector<1x1x256xi1> to vector<2x4x256xi1>
    %571 = vector.broadcast %cst_133 : f32 to vector<2x4x256xf32>
    %572 = arith.select %570, %559, %571 : vector<2x4x256xi1>, vector<2x4x256xf32>
    %573 = vector.extract_strided_slice %6 {offsets = [0, 0, 48], sizes = [1, 4, 1], strides = [1, 1, 1]} : vector<1x4x89xf32> to vector<1x4x1xf32>
    %574 = vector.broadcast %573 : vector<1x4x1xf32> to vector<2x4x256xf32>
    %575 = arith.mulf %572, %574 : vector<2x4x256xf32>
    %576 = arith.addf %546, %575 : vector<2x4x256xf32>
    %577 = vector.extract_strided_slice %6 {offsets = [0, 0, 57], sizes = [1, 4, 1], strides = [1, 1, 1]} : vector<1x4x89xf32> to vector<1x4x1xf32>
    %578 = vector.broadcast %577 : vector<1x4x1xf32> to vector<2x4x256xf32>
    %579 = arith.mulf %572, %578 : vector<2x4x256xf32>
    %580 = arith.addf %550, %579 : vector<2x4x256xf32>
    %581 = vector.extract_strided_slice %6 {offsets = [0, 0, 66], sizes = [1, 4, 1], strides = [1, 1, 1]} : vector<1x4x89xf32> to vector<1x4x1xf32>
    %582 = vector.broadcast %581 : vector<1x4x1xf32> to vector<2x4x256xf32>
    %583 = arith.mulf %572, %582 : vector<2x4x256xf32>
    %584 = arith.addf %554, %583 : vector<2x4x256xf32>
    %585 = vector.extract_strided_slice %6 {offsets = [0, 0, 75], sizes = [1, 4, 1], strides = [1, 1, 1]} : vector<1x4x89xf32> to vector<1x4x1xf32>
    %586 = vector.broadcast %585 : vector<1x4x1xf32> to vector<2x4x256xf32>
    %587 = arith.mulf %572, %586 : vector<2x4x256xf32>
    %588 = arith.addf %558, %587 : vector<2x4x256xf32>
    %cst_134 = arith.constant dense<0.000000e+00> : vector<2x256xf32>
    %589 = vector.multi_reduction <add>, %576, %cst_134 [1] : vector<2x4x256xf32> to vector<2x256xf32>
    %c8 = arith.constant 8 : index
    %590 = memref.load %arg3[%c8] : memref<12xf32, #tpu.memory_space<smem>>
    %591 = vector.broadcast %590 : f32 to vector<2x256xf32>
    %592 = arith.addf %589, %591 : vector<2x256xf32>
    %cst_135 = arith.constant 0.000000e+00 : f32
    %593 = vector.broadcast %cst_135 : f32 to vector<2x256xf32>
    %594 = arith.maximumf %592, %593 : vector<2x256xf32>
    %595 = vector.shape_cast %594 : vector<2x256xf32> to vector<2x1x256xf32>
    %596 = vector.extract_strided_slice %6 {offsets = [0, 0, 84], sizes = [1, 4, 1], strides = [1, 1, 1]} : vector<1x4x89xf32> to vector<1x4x1xf32>
    %597 = vector.broadcast %595 : vector<2x1x256xf32> to vector<2x4x256xf32>
    %598 = vector.broadcast %596 : vector<1x4x1xf32> to vector<2x4x256xf32>
    %599 = arith.mulf %597, %598 : vector<2x4x256xf32>
    %600 = arith.addf %361, %599 : vector<2x4x256xf32>
    %cst_136 = arith.constant dense<0.000000e+00> : vector<2x256xf32>
    %601 = vector.multi_reduction <add>, %580, %cst_136 [1] : vector<2x4x256xf32> to vector<2x256xf32>
    %c9 = arith.constant 9 : index
    %602 = memref.load %arg3[%c9] : memref<12xf32, #tpu.memory_space<smem>>
    %603 = vector.broadcast %602 : f32 to vector<2x256xf32>
    %604 = arith.addf %601, %603 : vector<2x256xf32>
    %cst_137 = arith.constant 0.000000e+00 : f32
    %605 = vector.broadcast %cst_137 : f32 to vector<2x256xf32>
    %606 = arith.maximumf %604, %605 : vector<2x256xf32>
    %607 = vector.shape_cast %606 : vector<2x256xf32> to vector<2x1x256xf32>
    %608 = vector.extract_strided_slice %6 {offsets = [0, 0, 85], sizes = [1, 4, 1], strides = [1, 1, 1]} : vector<1x4x89xf32> to vector<1x4x1xf32>
    %609 = vector.broadcast %607 : vector<2x1x256xf32> to vector<2x4x256xf32>
    %610 = vector.broadcast %608 : vector<1x4x1xf32> to vector<2x4x256xf32>
    %611 = arith.mulf %609, %610 : vector<2x4x256xf32>
    %612 = arith.addf %600, %611 : vector<2x4x256xf32>
    %cst_138 = arith.constant dense<0.000000e+00> : vector<2x256xf32>
    %613 = vector.multi_reduction <add>, %584, %cst_138 [1] : vector<2x4x256xf32> to vector<2x256xf32>
    %c10 = arith.constant 10 : index
    %614 = memref.load %arg3[%c10] : memref<12xf32, #tpu.memory_space<smem>>
    %615 = vector.broadcast %614 : f32 to vector<2x256xf32>
    %616 = arith.addf %613, %615 : vector<2x256xf32>
    %cst_139 = arith.constant 0.000000e+00 : f32
    %617 = vector.broadcast %cst_139 : f32 to vector<2x256xf32>
    %618 = arith.maximumf %616, %617 : vector<2x256xf32>
    %619 = vector.shape_cast %618 : vector<2x256xf32> to vector<2x1x256xf32>
    %620 = vector.extract_strided_slice %6 {offsets = [0, 0, 86], sizes = [1, 4, 1], strides = [1, 1, 1]} : vector<1x4x89xf32> to vector<1x4x1xf32>
    %621 = vector.broadcast %619 : vector<2x1x256xf32> to vector<2x4x256xf32>
    %622 = vector.broadcast %620 : vector<1x4x1xf32> to vector<2x4x256xf32>
    %623 = arith.mulf %621, %622 : vector<2x4x256xf32>
    %624 = arith.addf %612, %623 : vector<2x4x256xf32>
    %cst_140 = arith.constant dense<0.000000e+00> : vector<2x256xf32>
    %625 = vector.multi_reduction <add>, %588, %cst_140 [1] : vector<2x4x256xf32> to vector<2x256xf32>
    %c11 = arith.constant 11 : index
    %626 = memref.load %arg3[%c11] : memref<12xf32, #tpu.memory_space<smem>>
    %627 = vector.broadcast %626 : f32 to vector<2x256xf32>
    %628 = arith.addf %625, %627 : vector<2x256xf32>
    %cst_141 = arith.constant 0.000000e+00 : f32
    %629 = vector.broadcast %cst_141 : f32 to vector<2x256xf32>
    %630 = arith.maximumf %628, %629 : vector<2x256xf32>
    %631 = vector.shape_cast %630 : vector<2x256xf32> to vector<2x1x256xf32>
    %632 = vector.extract_strided_slice %6 {offsets = [0, 0, 87], sizes = [1, 4, 1], strides = [1, 1, 1]} : vector<1x4x89xf32> to vector<1x4x1xf32>
    %633 = vector.broadcast %631 : vector<2x1x256xf32> to vector<2x4x256xf32>
    %634 = vector.broadcast %632 : vector<1x4x1xf32> to vector<2x4x256xf32>
    %635 = arith.mulf %633, %634 : vector<2x4x256xf32>
    %636 = arith.addf %624, %635 : vector<2x4x256xf32>
    %cst_142 = arith.constant 0.000000e+00 : f32
    %637 = vector.broadcast %cst_142 : f32 to vector<2x4x256xf32>
    %638 = arith.subf %637, %636 : vector<2x4x256xf32>
    %639 = math.exp %638 : vector<2x4x256xf32>
    %cst_143 = arith.constant 1.000000e+00 : f32
    %640 = vector.broadcast %cst_143 : f32 to vector<2x4x256xf32>
    %641 = arith.addf %640, %639 : vector<2x4x256xf32>
    %642 = tpu.reciprocal %641 : vector<2x4x256xf32> -> vector<2x4x256xf32>
    %c0_144 = arith.constant 0 : index
    %c0_145 = arith.constant 0 : index
    %c0_146 = arith.constant 0 : index
    %643 = vector.load %arg1[%c0_144, %c0_145, %c0_146] : memref<2x4x256xf32, #tpu.memory_space<vmem>>, vector<2x4x256xf32>
    %cst_147 = arith.constant 1.000000e+00 : f32
    %644 = vector.broadcast %cst_147 : f32 to vector<2x4x256xf32>
    %645 = arith.addf %644, %642 : vector<2x4x256xf32>
    %646 = arith.mulf %643, %645 : vector<2x4x256xf32>
    %c0_148 = arith.constant 0 : index
    %c0_149 = arith.constant 0 : index
    %c0_150 = arith.constant 0 : index
    %647 = vector.load %arg4[%c0_148, %c0_149, %c0_150] : memref<2x4x256xf32, #tpu.memory_space<vmem>>, vector<2x4x256xf32>
    tpu.vector_store %arg4[%c0_148, %c0_149, %c0_150], %646 {strides = array<i32>} : memref<2x4x256xf32, #tpu.memory_space<vmem>>, vector<2x4x256xf32>,
    return
  }
  func.func @transform_0(%arg0: i32) -> (i32, i32, i32) {
    %c0_i32 = arith.constant 0 : i32
    %c0_i32_0 = arith.constant 0 : i32
    %c0_i32_1 = arith.constant 0 : i32
    %c0_i32_2 = arith.constant 0 : i32
    return %c0_i32, %c0_i32_0, %c0_i32_1 : i32, i32, i32
  }
  func.func @transform_1(%arg0: i32) -> (i32, i32, i32) {
    %c0_i32 = arith.constant 0 : i32
    %c0_i32_0 = arith.constant 0 : i32
    %c0_i32_1 = arith.constant 0 : i32
    %c0_i32_2 = arith.constant 0 : i32
    return %c0_i32, %c0_i32_0, %c0_i32_1 : i32, i32, i32
  }
  func.func @transform_2(%arg0: i32) -> i32 {
    %c0_i32 = arith.constant 0 : i32
    %c0_i32_0 = arith.constant 0 : i32
    return %c0_i32 : i32
  }
  func.func @transform_3(%arg0: i32) -> (i32, i32, i32) {
    %c0_i32 = arith.constant 0 : i32
    %c0_i32_0 = arith.constant 0 : i32
    %c0_i32_1 = arith.constant 0 : i32
    %c0_i32_2 = arith.constant 0 : i32
    return %c0_i32, %c0_i32_0, %c0_i32_1 : i32, i32, i32
  }
}

</mosaic_0001>

<llo_original>
// kernel: msag_forward.1
$region0: #{msag_forward.1}
  #allocation0 [shape = 'u32[]', space=smem, size = 0x4, offset = 0x4, fixed_abs, tag = 'smem constant byte address 0x4 - core index']
  #allocation1 [shape = 'u32[144,128]{1,0:T(1,128)}', space=vmem, size = 0x12000, scoped, tag = 'internal scratch']
  #allocation2 [shape = 'f32[2,4,324]{2,1,0:T(4,128)}', space=vmem, size = 0x3000, scoped, tag = 'scratch operand']
  %s0 = inlined_call_operand.vmem [shape: f32[2,4,256], index: 0, kind: input, shape index: {}]
  %s1 = inlined_call_operand.vmem [shape: f32[1,4,89], index: 1, kind: input, shape index: {}]
  %s2 = inlined_call_operand.vmem [shape: f32[12], index: 2, kind: input, shape index: {}]
  %s3 = inlined_call_operand.vmem [shape: f32[2,4,256], index: 3, kind: output, shape index: {}]
  %s4 = sld [smem:[#allocation0]]
  $region26: #{msag_forward.1} parent=0
    _
  %s6 = ssub.s32 1, %s4
  %s7 = scalar_select 0, %s6, %s4
  $region1: #{msag_forward.1} parent=0
    #allocation3 [shape = 'u8[512]{0}', space=smem, size = 0x200, scoped, tag = 'input window, operand 2, single buffered']
    #allocation4 [shape = 's32[1]{0}', space=sflag, size = 0x4, scoped, tag = 'scoped memory for msag_forward.1']
    %8 = vsyncpa [#allocation4], 0
    // Predicated region
    $region2: #{msag_forward.1} parent=1 // pred_check
      _
    $region3: #{msag_forward.1} parent=1 // pred_check_branch
      %10 = sbr.rel (0) target = $region5
    $region4: #{msag_forward.1} parent=1 // pred_region
      _
    $region5: #{msag_forward.1} parent=1 // pred_fallthru
      _
    // Predicated region
    $region6: #{msag_forward.1} parent=1 // pred_check
      _
    $region7: #{msag_forward.1} parent=1 // pred_check_branch
      %12 = sbr.rel (0) target = $region9
    $region8: #{msag_forward.1} parent=1 // pred_region
      _
    $region9: #{msag_forward.1} parent=1 // pred_fallthru
      _
    // Predicated region
    $region10: #{msag_forward.1} parent=1 // pred_check
      _
    $region11: #{msag_forward.1} parent=1 // pred_check_branch
      %14 = sbr.rel (0) target = $region13
    $region12: #{msag_forward.1} parent=1 // pred_region
      %s16 = ssub.s32 16, 16
      %17 = vsyncadd [#allocation4], %s16
      %s19 = sshll.u32 %s2, 4
      %s20 = int_to_ptr.vmem [resolvable:$true] %s19
      %22 = dma.vmem_to_smem %s20, 16, [#allocation3], [#allocation4]
    $region13: #{msag_forward.1} parent=1 // pred_fallthru
      _
    // Predicated region
    $region14: #{msag_forward.1} parent=1 // pred_check
      _
    $region15: #{msag_forward.1} parent=1 // pred_check_branch
      %24 = sbr.rel (0) target = $region17
    $region16: #{msag_forward.1} parent=1 // pred_region
      %25 = dma.done [#allocation4], 16
    $region17: #{msag_forward.1} parent=1 // pred_fallthru
      _
    %26 = sfence
    %vm27 = vcmask 273408
    %28 = vst.msk [vmem:[#allocation2] sm:$0xf] %vm27, 0.0
    %29 = vst.msk [vmem:[#allocation2 + $0xc] sm:$0xf] %vm27, 0.0
    %vm30 = vcmask 552208
    %31 = vst.msk [vmem:[#allocation2 + $0x8] sm:$0xf] %vm30, 0.0
    %32 = vst.msk [vmem:[#allocation2 + $0x14] sm:$0xf] %vm30, 0.0
    %v33 = vld [vmem:[%s0] sm:$0xff]
    %v34 = vld [vmem:[%s0 + $0x8] sm:$0xff]
    %37 = vrot.lane.b32.xlu0 %v33, 34
    %v38 = vpop.permute.xlu0 %37
    %39 = vrot.lane.b32.xlu0 %v34, 34
    %v40 = vpop.permute.xlu0 %39
    %v41 = vrot.slane %v38, 4
    %v42 = vrot.slane %v40, 4
    %vm43 = vcmask 277504
    %v44 = vsel %vm43, %v41, %v38
    %v45 = vsel %vm43, %v42, %v40
    %vm50 = vcmask 1043728
    %vm51 = vcmask 1047556
    %vm52 = vmor %vm51, %vm50
    %53 = vst.msk [vmem:[#allocation2] sm:$0xff] %vm52, %v44
    %54 = vst.msk [vmem:[#allocation2 + $0x8] sm:$0xf] %vm27, %v41
    %55 = vst.msk [vmem:[#allocation2 + $0xc] sm:$0xff] %vm52, %v45
    %56 = vst.msk [vmem:[#allocation2 + $0x14] sm:$0xf] %vm27, %v42
    %v57 = vld [vmem:[%s1] sm:$0xf]
    %v58 = vlaneseq
    %v59 = vand.u32 %v58, 127
    %v60 = vadd.s32 %v59, 128
    %vm61 = vcmp.lt.s32.totalorder %v59, 0
    %v62 = vsub.s32 0, %v59
    %v63 = vsel %vm61, %v62, %v59
    %v64 = vshrl.u32 %v63, 4
    %v65 = vand.u32 %v63, 15
    %v66 = vsub.s32 0, %v65
    %v67 = vsel %vm61, %v66, %v65
    %vm68 = vcmp.lt.s32.totalorder %v60, 0
    %v69 = vsub.s32 0, %v60
    %v70 = vsel %vm68, %v69, %v60
    %v71 = vshrl.u32 %v70, 4
    %v72 = vand.u32 %v70, 15
    %v73 = vsub.s32 0, %v72
    %v74 = vsel %vm68, %v73, %v72
    %vm75 = vcmp.ne.s32.totalorder %v67, 0
    %vm76 = vcmp.ne.s32.totalorder %v74, 0
    %vm77 = vcmp.lt.s32.totalorder %v67, 0
    %vm78 = vcmp.lt.s32.totalorder %v74, 0
    %vm79 = vmand %vm77, %vm75
    %vm80 = vmand %vm78, %vm76
    %v81 = vadd.s32 %v67, 16
    %v82 = vadd.s32 %v74, 16
    %v83 = vsel %vm79, %v81, %v67
    %v84 = vsel %vm80, %v82, %v74
    %v85 = vld [vmem:[#allocation2] sm:$0xff]
    %v86 = vld [vmem:[#allocation2 + $0x8] sm:$0xf]
    %v87 = vld [vmem:[#allocation2 + $0xc] sm:$0xff]
    %v88 = vld [vmem:[#allocation2 + $0x14] sm:$0xf]
    %90 = vset.pattern.permute.xlu0 0
    %91 = vperm.xlu0 %90, %v57
    %v92 = vpop.permute.xlu0 %91
    %v94 = vunpack.c.l.s4 839922192
    %v95 = vunpack.c.0.s8 %v94
    %v96 = vlaneseq
    %v97 = vshrl.u32 %v96, 7
    %v98 = vsub.s32 %v95, %v97
    %v99 = vrot.slane %v92, %v98
    %v101 = vmul.f32 %v85, %v99
    %v102 = vmul.f32 %v86, %v99
    %v103 = vmul.f32 %v87, %v99
    %v104 = vmul.f32 %v88, %v99
    %105 = vset.pattern.permute.xlu0 1
    %106 = vperm.xlu0 %105, %v57
    %v107 = vpop.permute.xlu0 %106
    %v109 = vunpack.c.l.s4 839922192
    %v110 = vunpack.c.0.s8 %v109
    %v111 = vlaneseq
    %v112 = vshrl.u32 %v111, 7
    %v113 = vsub.s32 %v110, %v112
    %v114 = vrot.slane %v107, %v113
    %v116 = vmul.f32 %v85, %v114
    %v117 = vmul.f32 %v86, %v114
    %v118 = vmul.f32 %v87, %v114
    %v119 = vmul.f32 %v88, %v114
    %120 = vset.pattern.permute.xlu0 2
    %121 = vperm.xlu0 %120, %v57
    %v122 = vpop.permute.xlu0 %121
    %v124 = vunpack.c.l.s4 839922192
    %v125 = vunpack.c.0.s8 %v124
    %v126 = vlaneseq
    %v127 = vshrl.u32 %v126, 7
    %v128 = vsub.s32 %v125, %v127
    %v129 = vrot.slane %v122, %v128
    %v131 = vmul.f32 %v85, %v129
    %v132 = vmul.f32 %v86, %v129
    %v133 = vmul.f32 %v87, %v129
    %v134 = vmul.f32 %v88, %v129
    %135 = vset.pattern.permute.xlu0 3
    %136 = vperm.xlu0 %135, %v57
    %v137 = vpop.permute.xlu0 %136
    %v139 = vunpack.c.l.s4 839922192
    %v140 = vunpack.c.0.s8 %v139
    %v141 = vlaneseq
    %v142 = vshrl.u32 %v141, 7
    %v143 = vsub.s32 %v140, %v142
    %v144 = vrot.slane %v137, %v143
    %v146 = vmul.f32 %v85, %v144
    %v147 = vmul.f32 %v86, %v144
    %v148 = vmul.f32 %v87, %v144
    %v149 = vmul.f32 %v88, %v144
    %v152 = vcombine.high %v101, %v101
    %v153 = vcombine.high %v103, %v103
    %v156 = vsel %vm50, %v101, 0.0
    %v157 = vrot.slane %v156, 4
    %v158 = vadd.f32 %v156, %v157
    %v159 = vrot.slane %v158, 2
    %v160 = vadd.f32 %v158, %v159
    %v161 = vrot.slane %v160, 1
    %v162 = vadd.f32 %v160, %v161
    %vm163 = vcmask 1043456
    %v164 = vsel %vm163, %v152, 0.0
    %v165 = vrot.slane %v164, 4
    %v166 = vadd.f32 %v164, %v165
    %v167 = vrot.slane %v166, 2
    %v168 = vadd.f32 %v166, %v167
    %v169 = vrot.slane %v168, 1
    %v170 = vadd.f32 %v168, %v169
    %v171 = vsel %vm27, %v102, 0.0
    %v172 = vrot.slane %v171, 4
    %v173 = vadd.f32 %v171, %v172
    %v174 = vrot.slane %v173, 2
    %v175 = vadd.f32 %v173, %v174
    %v176 = vrot.slane %v175, 1
    %v177 = vadd.f32 %v175, %v176
    %v178 = vsel %vm50, %v103, 0.0
    %v179 = vrot.slane %v178, 4
    %v180 = vadd.f32 %v178, %v179
    %v181 = vrot.slane %v180, 2
    %v182 = vadd.f32 %v180, %v181
    %v183 = vrot.slane %v182, 1
    %v184 = vadd.f32 %v182, %v183
    %v185 = vsel %vm163, %v153, 0.0
    %v186 = vrot.slane %v185, 4
    %v187 = vadd.f32 %v185, %v186
    %v188 = vrot.slane %v187, 2
    %v189 = vadd.f32 %v187, %v188
    %v190 = vrot.slane %v189, 1
    %v191 = vadd.f32 %v189, %v190
    %v192 = vsel %vm27, %v104, 0.0
    %v193 = vrot.slane %v192, 4
    %v194 = vadd.f32 %v192, %v193
    %v195 = vrot.slane %v194, 2
    %v196 = vadd.f32 %v194, %v195
    %v197 = vrot.slane %v196, 1
    %v198 = vadd.f32 %v196, %v197
    %s199 = sld [smem:[#allocation3]]
    %v200 = vstv %s199
    %v201 = vadd.f32 %v162, %v200
    %v202 = vadd.f32 %v170, %v200
    %v203 = vadd.f32 %v177, %v200
    %v204 = vadd.f32 %v184, %v200
    %v205 = vadd.f32 %v191, %v200
    %v206 = vadd.f32 %v198, %v200
    %v207 = vmax.f32 %v201, 0.0
    %v208 = vmax.f32 %v202, 0.0
    %v209 = vmax.f32 %v203, 0.0
    %v210 = vmax.f32 %v204, 0.0
    %v211 = vmax.f32 %v205, 0.0
    %v212 = vmax.f32 %v206, 0.0
    %213 = vset.pattern.permute.xlu0 76
    %214 = vperm.xlu0 %213, %v57
    %v215 = vpop.permute.xlu0 %214
    %v217 = vmul.f32 %v207, %v215
    %v218 = vmul.f32 %v208, %v215
    %v219 = vmul.f32 %v209, %v215
    %v220 = vmul.f32 %v210, %v215
    %v221 = vmul.f32 %v211, %v215
    %v222 = vmul.f32 %v212, %v215
    %223 = vset.pattern.permute.xlu0 88
    %224 = vperm.xlu0 %223, %v57
    %v225 = vpop.permute.xlu0 %224
    %v227 = vadd.f32 %v225, %v217
    %v228 = vadd.f32 %v225, %v218
    %v229 = vadd.f32 %v225, %v219
    %v230 = vadd.f32 %v225, %v220
    %v231 = vadd.f32 %v225, %v221
    %v232 = vadd.f32 %v225, %v222
    %v235 = vcombine.high %v116, %v116
    %v236 = vcombine.high %v118, %v118
    %v239 = vsel %vm50, %v116, 0.0
    %v240 = vrot.slane %v239, 4
    %v241 = vadd.f32 %v239, %v240
    %v242 = vrot.slane %v241, 2
    %v243 = vadd.f32 %v241, %v242
    %v244 = vrot.slane %v243, 1
    %v245 = vadd.f32 %v243, %v244
    %v246 = vsel %vm163, %v235, 0.0
    %v247 = vrot.slane %v246, 4
    %v248 = vadd.f32 %v246, %v247
    %v249 = vrot.slane %v248, 2
    %v250 = vadd.f32 %v248, %v249
    %v251 = vrot.slane %v250, 1
    %v252 = vadd.f32 %v250, %v251
    %v253 = vsel %vm27, %v117, 0.0
    %v254 = vrot.slane %v253, 4
    %v255 = vadd.f32 %v253, %v254
    %v256 = vrot.slane %v255, 2
    %v257 = vadd.f32 %v255, %v256
    %v258 = vrot.slane %v257, 1
    %v259 = vadd.f32 %v257, %v258
    %v260 = vsel %vm50, %v118, 0.0
    %v261 = vrot.slane %v260, 4
    %v262 = vadd.f32 %v260, %v261
    %v263 = vrot.slane %v262, 2
    %v264 = vadd.f32 %v262, %v263
    %v265 = vrot.slane %v264, 1
    %v266 = vadd.f32 %v264, %v265
    %v267 = vsel %vm163, %v236, 0.0
    %v268 = vrot.slane %v267, 4
    %v269 = vadd.f32 %v267, %v268
    %v270 = vrot.slane %v269, 2
    %v271 = vadd.f32 %v269, %v270
    %v272 = vrot.slane %v271, 1
    %v273 = vadd.f32 %v271, %v272
    %v274 = vsel %vm27, %v119, 0.0
    %v275 = vrot.slane %v274, 4
    %v276 = vadd.f32 %v274, %v275
    %v277 = vrot.slane %v276, 2
    %v278 = vadd.f32 %v276, %v277
    %v279 = vrot.slane %v278, 1
    %v280 = vadd.f32 %v278, %v279
    %s281 = sld [smem:[#allocation3 + $0x1]]
    %v282 = vstv %s281
    %v283 = vadd.f32 %v245, %v282
    %v284 = vadd.f32 %v252, %v282
    %v285 = vadd.f32 %v259, %v282
    %v286 = vadd.f32 %v266, %v282
    %v287 = vadd.f32 %v273, %v282
    %v288 = vadd.f32 %v280, %v282
    %v289 = vmax.f32 %v283, 0.0
    %v290 = vmax.f32 %v284, 0.0
    %v291 = vmax.f32 %v285, 0.0
    %v292 = vmax.f32 %v286, 0.0
    %v293 = vmax.f32 %v287, 0.0
    %v294 = vmax.f32 %v288, 0.0
    %295 = vset.pattern.permute.xlu0 77
    %296 = vperm.xlu0 %295, %v57
    %v297 = vpop.permute.xlu0 %296
    %v299 = vmul.f32 %v289, %v297
    %v300 = vmul.f32 %v290, %v297
    %v301 = vmul.f32 %v291, %v297
    %v302 = vmul.f32 %v292, %v297
    %v303 = vmul.f32 %v293, %v297
    %v304 = vmul.f32 %v294, %v297
    %v305 = vadd.f32 %v227, %v299
    %v306 = vadd.f32 %v228, %v300
    %v307 = vadd.f32 %v229, %v301
    %v308 = vadd.f32 %v230, %v302
    %v309 = vadd.f32 %v231, %v303
    %v310 = vadd.f32 %v232, %v304
    %v313 = vcombine.high %v131, %v131
    %v314 = vcombine.high %v133, %v133
    %v317 = vsel %vm50, %v131, 0.0
    %v318 = vrot.slane %v317, 4
    %v319 = vadd.f32 %v317, %v318
    %v320 = vrot.slane %v319, 2
    %v321 = vadd.f32 %v319, %v320
    %v322 = vrot.slane %v321, 1
    %v323 = vadd.f32 %v321, %v322
    %v324 = vsel %vm163, %v313, 0.0
    %v325 = vrot.slane %v324, 4
    %v326 = vadd.f32 %v324, %v325
    %v327 = vrot.slane %v326, 2
    %v328 = vadd.f32 %v326, %v327
    %v329 = vrot.slane %v328, 1
    %v330 = vadd.f32 %v328, %v329
    %v331 = vsel %vm27, %v132, 0.0
    %v332 = vrot.slane %v331, 4
    %v333 = vadd.f32 %v331, %v332
    %v334 = vrot.slane %v333, 2
    %v335 = vadd.f32 %v333, %v334
    %v336 = vrot.slane %v335, 1
    %v337 = vadd.f32 %v335, %v336
    %v338 = vsel %vm50, %v133, 0.0
    %v339 = vrot.slane %v338, 4
    %v340 = vadd.f32 %v338, %v339
    %v341 = vrot.slane %v340, 2
    %v342 = vadd.f32 %v340, %v341
    %v343 = vrot.slane %v342, 1
    %v344 = vadd.f32 %v342, %v343
    %v345 = vsel %vm163, %v314, 0.0
    %v346 = vrot.slane %v345, 4
    %v347 = vadd.f32 %v345, %v346
    %v348 = vrot.slane %v347, 2
    %v349 = vadd.f32 %v347, %v348
    %v350 = vrot.slane %v349, 1
    %v351 = vadd.f32 %v349, %v350
    %v352 = vsel %vm27, %v134, 0.0
    %v353 = vrot.slane %v352, 4
    %v354 = vadd.f32 %v352, %v353
    %v355 = vrot.slane %v354, 2
    %v356 = vadd.f32 %v354, %v355
    %v357 = vrot.slane %v356, 1
    %v358 = vadd.f32 %v356, %v357
    %s359 = sld [smem:[#allocation3 + $0x2]]
    %v360 = vstv %s359
    %v361 = vadd.f32 %v323, %v360
    %v362 = vadd.f32 %v330, %v360
    %v363 = vadd.f32 %v337, %v360
    %v364 = vadd.f32 %v344, %v360
    %v365 = vadd.f32 %v351, %v360
    %v366 = vadd.f32 %v358, %v360
    %v367 = vmax.f32 %v361, 0.0
    %v368 = vmax.f32 %v362, 0.0
    %v369 = vmax.f32 %v363, 0.0
    %v370 = vmax.f32 %v364, 0.0
    %v371 = vmax.f32 %v365, 0.0
    %v372 = vmax.f32 %v366, 0.0
    %373 = vset.pattern.permute.xlu0 78
    %374 = vperm.xlu0 %373, %v57
    %v375 = vpop.permute.xlu0 %374
    %v377 = vmul.f32 %v367, %v375
    %v378 = vmul.f32 %v368, %v375
    %v379 = vmul.f32 %v369, %v375
    %v380 = vmul.f32 %v370, %v375
    %v381 = vmul.f32 %v371, %v375
    %v382 = vmul.f32 %v372, %v375
    %v383 = vadd.f32 %v305, %v377
    %v384 = vadd.f32 %v306, %v378
    %v385 = vadd.f32 %v307, %v379
    %v386 = vadd.f32 %v308, %v380
    %v387 = vadd.f32 %v309, %v381
    %v388 = vadd.f32 %v310, %v382
    %v391 = vcombine.high %v146, %v146
    %v392 = vcombine.high %v148, %v148
    %v395 = vsel %vm50, %v146, 0.0
    %v396 = vrot.slane %v395, 4
    %v397 = vadd.f32 %v395, %v396
    %v398 = vrot.slane %v397, 2
    %v399 = vadd.f32 %v397, %v398
    %v400 = vrot.slane %v399, 1
    %v401 = vadd.f32 %v399, %v400
    %v402 = vsel %vm163, %v391, 0.0
    %v403 = vrot.slane %v402, 4
    %v404 = vadd.f32 %v402, %v403
    %v405 = vrot.slane %v404, 2
    %v406 = vadd.f32 %v404, %v405
    %v407 = vrot.slane %v406, 1
    %v408 = vadd.f32 %v406, %v407
    %v409 = vsel %vm27, %v147, 0.0
    %v410 = vrot.slane %v409, 4
    %v411 = vadd.f32 %v409, %v410
    %v412 = vrot.slane %v411, 2
    %v413 = vadd.f32 %v411, %v412
    %v414 = vrot.slane %v413, 1
    %v415 = vadd.f32 %v413, %v414
    %v416 = vsel %vm50, %v148, 0.0
    %v417 = vrot.slane %v416, 4
    %v418 = vadd.f32 %v416, %v417
    %v419 = vrot.slane %v418, 2
    %v420 = vadd.f32 %v418, %v419
    %v421 = vrot.slane %v420, 1
    %v422 = vadd.f32 %v420, %v421
    %v423 = vsel %vm163, %v392, 0.0
    %v424 = vrot.slane %v423, 4
    %v425 = vadd.f32 %v423, %v424
    %v426 = vrot.slane %v425, 2
    %v427 = vadd.f32 %v425, %v426
    %v428 = vrot.slane %v427, 1
    %v429 = vadd.f32 %v427, %v428
    %v430 = vsel %vm27, %v149, 0.0
    %v431 = vrot.slane %v430, 4
    %v432 = vadd.f32 %v430, %v431
    %v433 = vrot.slane %v432, 2
    %v434 = vadd.f32 %v432, %v433
    %v435 = vrot.slane %v434, 1
    %v436 = vadd.f32 %v434, %v435
    %s437 = sld [smem:[#allocation3 + $0x3]]
    %v438 = vstv %s437
    %v439 = vadd.f32 %v401, %v438
    %v440 = vadd.f32 %v408, %v438
    %v441 = vadd.f32 %v415, %v438
    %v442 = vadd.f32 %v422, %v438
    %v443 = vadd.f32 %v429, %v438
    %v444 = vadd.f32 %v436, %v438
    %v445 = vmax.f32 %v439, 0.0
    %v446 = vmax.f32 %v440, 0.0
    %v447 = vmax.f32 %v441, 0.0
    %v448 = vmax.f32 %v442, 0.0
    %v449 = vmax.f32 %v443, 0.0
    %v450 = vmax.f32 %v444, 0.0
    %451 = vset.pattern.permute.xlu0 79
    %452 = vperm.xlu0 %451, %v57
    %v453 = vpop.permute.xlu0 %452
    %v455 = vmul.f32 %v445, %v453
    %v456 = vmul.f32 %v446, %v453
    %v457 = vmul.f32 %v447, %v453
    %v458 = vmul.f32 %v448, %v453
    %v459 = vmul.f32 %v449, %v453
    %v460 = vmul.f32 %v450, %v453
    %v461 = vadd.f32 %v383, %v455
    %v462 = vadd.f32 %v384, %v456
    %v463 = vadd.f32 %v385, %v457
    %v464 = vadd.f32 %v386, %v458
    %v465 = vadd.f32 %v387, %v459
    %v466 = vadd.f32 %v388, %v460
    %v467 = vld [vmem:[#allocation2] sm:$0xff]
    %v468 = vld [vmem:[#allocation2 + $0x8] sm:$0xf]
    %v469 = vld [vmem:[#allocation2 + $0xc] sm:$0xff]
    %v470 = vld [vmem:[#allocation2 + $0x14] sm:$0xf]
    %v471 = vadd.s32 %v83, 4294967295
    %v472 = vadd.s32 %v84, 4294967295
    %vm473 = vcmp.ge.s32.totalorder %v471, 0
    %vm474 = vcmp.ge.s32.totalorder %v472, 0
    %vm475 = vcmp.lt.s32.totalorder %v471, 16
    %vm476 = vcmp.lt.s32.totalorder %v472, 16
    %vm477 = vmand %vm473, %vm475
    %vm478 = vmand %vm474, %vm476
    %v479 = vsel %vm477, 1, 0
    %v480 = vsel %vm478, 1, 0
    %vm481 = vcmp.eq.s32.totalorder %v479, 1
    %vm482 = vcmp.eq.s32.totalorder %v480, 1
    %v487 = vcombine.high %v467, %v467
    %v488 = vcombine.high %v469, %v469
    %489 = vrot.lane.b32.xlu0 %v467, 111
    %v490 = vpop.permute.xlu0 %489
    %491 = vrot.lane.b32.xlu0 %v487, 111
    %v492 = vpop.permute.xlu0 %491
    %493 = vrot.lane.b32.xlu0 %v468, 111
    %v494 = vpop.permute.xlu0 %493
    %495 = vrot.lane.b32.xlu0 %v469, 111
    %v496 = vpop.permute.xlu0 %495
    %497 = vrot.lane.b32.xlu0 %v488, 111
    %v498 = vpop.permute.xlu0 %497
    %499 = vrot.lane.b32.xlu0 %v470, 111
    %v500 = vpop.permute.xlu0 %499
    %vm501 = vcmask 908288
    %v502 = vsel %vm501, %v490, %v492
    %v503 = vsel %vm501, %v492, %v494
    %v504 = vsel %vm501, %v496, %v498
    %v505 = vsel %vm501, %v498, %v500
    %v510 = vsel %vm481, %v502, 0.0
    %v511 = vsel %vm482, %v503, 0.0
    %v512 = vsel %vm481, %v504, 0.0
    %v513 = vsel %vm482, %v505, 0.0
    %514 = vset.pattern.permute.xlu0 4
    %515 = vperm.xlu0 %514, %v57
    %v516 = vpop.permute.xlu0 %515
    %v518 = vmul.f32 %v510, %v516
    %v519 = vmul.f32 %v511, %v516
    %v520 = vmul.f32 %v512, %v516
    %v521 = vmul.f32 %v513, %v516
    %522 = vset.pattern.permute.xlu0 13
    %523 = vperm.xlu0 %522, %v57
    %v524 = vpop.permute.xlu0 %523
    %v526 = vmul.f32 %v510, %v524
    %v527 = vmul.f32 %v511, %v524
    %v528 = vmul.f32 %v512, %v524
    %v529 = vmul.f32 %v513, %v524
    %530 = vset.pattern.permute.xlu0 22
    %531 = vperm.xlu0 %530, %v57
    %v532 = vpop.permute.xlu0 %531
    %v534 = vmul.f32 %v510, %v532
    %v535 = vmul.f32 %v511, %v532
    %v536 = vmul.f32 %v512, %v532
    %v537 = vmul.f32 %v513, %v532
    %538 = vset.pattern.permute.xlu0 31
    %539 = vperm.xlu0 %538, %v57
    %v540 = vpop.permute.xlu0 %539
    %v542 = vmul.f32 %v510, %v540
    %v543 = vmul.f32 %v511, %v540
    %v544 = vmul.f32 %v512, %v540
    %v545 = vmul.f32 %v513, %v540
    %v546 = vld [vmem:[#allocation2] sm:$0xff]
    %v547 = vld [vmem:[#allocation2 + $0x8] sm:$0xf]
    %v548 = vld [vmem:[#allocation2 + $0xc] sm:$0xff]
    %v549 = vld [vmem:[#allocation2 + $0x14] sm:$0xf]
    %550 = vset.pattern.permute.xlu0 5
    %551 = vperm.xlu0 %550, %v57
    %v552 = vpop.permute.xlu0 %551
    %v554 = vunpack.c.l.s4 839922192
    %v555 = vunpack.c.0.s8 %v554
    %v556 = vlaneseq
    %v557 = vshrl.u32 %v556, 7
    %v558 = vsub.s32 %v555, %v557
    %v559 = vrot.slane %v552, %v558
    %v561 = vmul.f32 %v546, %v559
    %v562 = vmul.f32 %v547, %v559
    %v563 = vmul.f32 %v548, %v559
    %v564 = vmul.f32 %v549, %v559
    %v569 = vcombine.high %v561, %v561
    %v570 = vcombine.high %v563, %v563
    %571 = vrot.lane.b32.xlu0 %v561, 110
    %v572 = vpop.permute.xlu0 %571
    %573 = vrot.lane.b32.xlu0 %v569, 110
    %v574 = vpop.permute.xlu0 %573
    %575 = vrot.lane.b32.xlu0 %v562, 110
    %v576 = vpop.permute.xlu0 %575
    %577 = vrot.lane.b32.xlu0 %v563, 110
    %v578 = vpop.permute.xlu0 %577
    %579 = vrot.lane.b32.xlu0 %v570, 110
    %v580 = vpop.permute.xlu0 %579
    %581 = vrot.lane.b32.xlu0 %v564, 110
    %v582 = vpop.permute.xlu0 %581
    %vm583 = vcmask 900096
    %v584 = vsel %vm583, %v572, %v574
    %v585 = vsel %vm583, %v574, %v576
    %v586 = vsel %vm583, %v578, %v580
    %v587 = vsel %vm583, %v580, %v582
    %v592 = vadd.f32 %v518, %v584
    %v593 = vadd.f32 %v519, %v585
    %v594 = vadd.f32 %v520, %v586
    %v595 = vadd.f32 %v521, %v587
    %596 = vset.pattern.permute.xlu0 14
    %597 = vperm.xlu0 %596, %v57
    %v598 = vpop.permute.xlu0 %597
    %v600 = vunpack.c.l.s4 839922192
    %v601 = vunpack.c.0.s8 %v600
    %v602 = vlaneseq
    %v603 = vshrl.u32 %v602, 7
    %v604 = vsub.s32 %v601, %v603
    %v605 = vrot.slane %v598, %v604
    %v607 = vmul.f32 %v546, %v605
    %v608 = vmul.f32 %v547, %v605
    %v609 = vmul.f32 %v548, %v605
    %v610 = vmul.f32 %v549, %v605
    %v615 = vcombine.high %v607, %v607
    %v616 = vcombine.high %v609, %v609
    %617 = vrot.lane.b32.xlu0 %v607, 110
    %v618 = vpop.permute.xlu0 %617
    %619 = vrot.lane.b32.xlu0 %v615, 110
    %v620 = vpop.permute.xlu0 %619
    %621 = vrot.lane.b32.xlu0 %v608, 110
    %v622 = vpop.permute.xlu0 %621
    %623 = vrot.lane.b32.xlu0 %v609, 110
    %v624 = vpop.permute.xlu0 %623
    %625 = vrot.lane.b32.xlu0 %v616, 110
    %v626 = vpop.permute.xlu0 %625
    %627 = vrot.lane.b32.xlu0 %v610, 110
    %v628 = vpop.permute.xlu0 %627
    %v629 = vsel %vm583, %v618, %v620
    %v630 = vsel %vm583, %v620, %v622
    %v631 = vsel %vm583, %v624, %v626
    %v632 = vsel %vm583, %v626, %v628
    %v637 = vadd.f32 %v526, %v629
    %v638 = vadd.f32 %v527, %v630
    %v639 = vadd.f32 %v528, %v631
    %v640 = vadd.f32 %v529, %v632
    %641 = vset.pattern.permute.xlu0 23
    %642 = vperm.xlu0 %641, %v57
    %v643 = vpop.permute.xlu0 %642
    %v645 = vunpack.c.l.s4 839922192
    %v646 = vunpack.c.0.s8 %v645
    %v647 = vlaneseq
    %v648 = vshrl.u32 %v647, 7
    %v649 = vsub.s32 %v646, %v648
    %v650 = vrot.slane %v643, %v649
    %v652 = vmul.f32 %v546, %v650
    %v653 = vmul.f32 %v547, %v650
    %v654 = vmul.f32 %v548, %v650
    %v655 = vmul.f32 %v549, %v650
    %v660 = vcombine.high %v652, %v652
    %v661 = vcombine.high %v654, %v654
    %662 = vrot.lane.b32.xlu0 %v652, 110
    %v663 = vpop.permute.xlu0 %662
    %664 = vrot.lane.b32.xlu0 %v660, 110
    %v665 = vpop.permute.xlu0 %664
    %666 = vrot.lane.b32.xlu0 %v653, 110
    %v667 = vpop.permute.xlu0 %666
    %668 = vrot.lane.b32.xlu0 %v654, 110
    %v669 = vpop.permute.xlu0 %668
    %670 = vrot.lane.b32.xlu0 %v661, 110
    %v671 = vpop.permute.xlu0 %670
    %672 = vrot.lane.b32.xlu0 %v655, 110
    %v673 = vpop.permute.xlu0 %672
    %v674 = vsel %vm583, %v663, %v665
    %v675 = vsel %vm583, %v665, %v667
    %v676 = vsel %vm583, %v669, %v671
    %v677 = vsel %vm583, %v671, %v673
    %v682 = vadd.f32 %v534, %v674
    %v683 = vadd.f32 %v535, %v675
    %v684 = vadd.f32 %v536, %v676
    %v685 = vadd.f32 %v537, %v677
    %686 = vset.pattern.permute.xlu0 32
    %687 = vperm.xlu0 %686, %v57
    %v688 = vpop.permute.xlu0 %687
    %v690 = vunpack.c.l.s4 839922192
    %v691 = vunpack.c.0.s8 %v690
    %v692 = vlaneseq
    %v693 = vshrl.u32 %v692, 7
    %v694 = vsub.s32 %v691, %v693
    %v695 = vrot.slane %v688, %v694
    %v697 = vmul.f32 %v546, %v695
    %v698 = vmul.f32 %v547, %v695
    %v699 = vmul.f32 %v548, %v695
    %v700 = vmul.f32 %v549, %v695
    %v705 = vcombine.high %v697, %v697
    %v706 = vcombine.high %v699, %v699
    %707 = vrot.lane.b32.xlu0 %v697, 110
    %v708 = vpop.permute.xlu0 %707
    %709 = vrot.lane.b32.xlu0 %v705, 110
    %v710 = vpop.permute.xlu0 %709
    %711 = vrot.lane.b32.xlu0 %v698, 110
    %v712 = vpop.permute.xlu0 %711
    %713 = vrot.lane.b32.xlu0 %v699, 110
    %v714 = vpop.permute.xlu0 %713
    %715 = vrot.lane.b32.xlu0 %v706, 110
    %v716 = vpop.permute.xlu0 %715
    %717 = vrot.lane.b32.xlu0 %v700, 110
    %v718 = vpop.permute.xlu0 %717
    %v719 = vsel %vm583, %v708, %v710
    %v720 = vsel %vm583, %v710, %v712
    %v721 = vsel %vm583, %v714, %v716
    %v722 = vsel %vm583, %v716, %v718
    %v727 = vadd.f32 %v542, %v719
    %v728 = vadd.f32 %v543, %v720
    %v729 = vadd.f32 %v544, %v721
    %v730 = vadd.f32 %v545, %v722
    %v731 = vld [vmem:[#allocation2] sm:$0xff]
    %v732 = vld [vmem:[#allocation2 + $0x8] sm:$0xf]
    %v733 = vld [vmem:[#allocation2 + $0xc] sm:$0xff]
    %v734 = vld [vmem:[#allocation2 + $0x14] sm:$0xf]
    %v735 = vadd.s32 %v83, 1
    %v736 = vadd.s32 %v84, 1
    %vm737 = vcmp.ge.s32.totalorder %v735, 0
    %vm738 = vcmp.ge.s32.totalorder %v736, 0
    %vm739 = vcmp.lt.s32.totalorder %v735, 16
    %vm740 = vcmp.lt.s32.totalorder %v736, 16
    %vm741 = vmand %vm737, %vm739
    %vm742 = vmand %vm738, %vm740
    %v743 = vsel %vm741, 1, 0
    %v744 = vsel %vm742, 1, 0
    %vm745 = vcmp.eq.s32.totalorder %v743, 1
    %vm746 = vcmp.eq.s32.totalorder %v744, 1
    %v751 = vcombine.high %v731, %v731
    %v752 = vcombine.high %v733, %v733
    %753 = vrot.lane.b32.xlu0 %v731, 109
    %v754 = vpop.permute.xlu0 %753
    %755 = vrot.lane.b32.xlu0 %v751, 109
    %v756 = vpop.permute.xlu0 %755
    %757 = vrot.lane.b32.xlu0 %v732, 109
    %v758 = vpop.permute.xlu0 %757
    %759 = vrot.lane.b32.xlu0 %v733, 109
    %v760 = vpop.permute.xlu0 %759
    %761 = vrot.lane.b32.xlu0 %v752, 109
    %v762 = vpop.permute.xlu0 %761
    %763 = vrot.lane.b32.xlu0 %v734, 109
    %v764 = vpop.permute.xlu0 %763
    %vm765 = vcmask 891904
    %v766 = vsel %vm765, %v754, %v756
    %v767 = vsel %vm765, %v756, %v758
    %v768 = vsel %vm765, %v760, %v762
    %v769 = vsel %vm765, %v762, %v764
    %v774 = vsel %vm745, %v766, 0.0
    %v775 = vsel %vm746, %v767, 0.0
    %v776 = vsel %vm745, %v768, 0.0
    %v777 = vsel %vm746, %v769, 0.0
    %778 = vset.pattern.permute.xlu0 6
    %779 = vperm.xlu0 %778, %v57
    %v780 = vpop.permute.xlu0 %779
    %v782 = vmul.f32 %v774, %v780
    %v783 = vmul.f32 %v775, %v780
    %v784 = vmul.f32 %v776, %v780
    %v785 = vmul.f32 %v777, %v780
    %v786 = vadd.f32 %v592, %v782
    %v787 = vadd.f32 %v593, %v783
    %v788 = vadd.f32 %v594, %v784
    %v789 = vadd.f32 %v595, %v785
    %790 = vset.pattern.permute.xlu0 15
    %791 = vperm.xlu0 %790, %v57
    %v792 = vpop.permute.xlu0 %791
    %v794 = vmul.f32 %v774, %v792
    %v795 = vmul.f32 %v775, %v792
    %v796 = vmul.f32 %v776, %v792
    %v797 = vmul.f32 %v777, %v792
    %v798 = vadd.f32 %v637, %v794
    %v799 = vadd.f32 %v638, %v795
    %v800 = vadd.f32 %v639, %v796
    %v801 = vadd.f32 %v640, %v797
    %802 = vset.pattern.permute.xlu0 24
    %803 = vperm.xlu0 %802, %v57
    %v804 = vpop.permute.xlu0 %803
    %v806 = vmul.f32 %v774, %v804
    %v807 = vmul.f32 %v775, %v804
    %v808 = vmul.f32 %v776, %v804
    %v809 = vmul.f32 %v777, %v804
    %v810 = vadd.f32 %v682, %v806
    %v811 = vadd.f32 %v683, %v807
    %v812 = vadd.f32 %v684, %v808
    %v813 = vadd.f32 %v685, %v809
    %814 = vset.pattern.permute.xlu0 33
    %815 = vperm.xlu0 %814, %v57
    %v816 = vpop.permute.xlu0 %815
    %v818 = vmul.f32 %v774, %v816
    %v819 = vmul.f32 %v775, %v816
    %v820 = vmul.f32 %v776, %v816
    %v821 = vmul.f32 %v777, %v816
    %v822 = vadd.f32 %v727, %v818
    %v823 = vadd.f32 %v728, %v819
    %v824 = vadd.f32 %v729, %v820
    %v825 = vadd.f32 %v730, %v821
    %v826 = vld [vmem:[#allocation2] sm:$0xff]
    %v827 = vld [vmem:[#allocation2 + $0x8] sm:$0xf]
    %v828 = vld [vmem:[#allocation2 + $0xc] sm:$0xff]
    %v829 = vld [vmem:[#allocation2 + $0x14] sm:$0xf]
    %v834 = vcombine.high %v826, %v826
    %v835 = vcombine.high %v828, %v828
    %836 = vrot.lane.b32.xlu0 %v826, 95
    %v837 = vpop.permute.xlu0 %836
    %838 = vrot.lane.b32.xlu0 %v834, 95
    %v839 = vpop.permute.xlu0 %838
    %840 = vrot.lane.b32.xlu0 %v827, 95
    %v841 = vpop.permute.xlu0 %840
    %842 = vrot.lane.b32.xlu0 %v828, 95
    %v843 = vpop.permute.xlu0 %842
    %844 = vrot.lane.b32.xlu0 %v835, 95
    %v845 = vpop.permute.xlu0 %844
    %846 = vrot.lane.b32.xlu0 %v829, 95
    %v847 = vpop.permute.xlu0 %846
    %vm848 = vcmask 777216
    %v849 = vsel %vm848, %v837, %v839
    %v850 = vsel %vm848, %v839, %v841
    %v851 = vsel %vm848, %v843, %v845
    %v852 = vsel %vm848, %v845, %v847
    %v857 = vsel %vm481, %v849, 0.0
    %v858 = vsel %vm482, %v850, 0.0
    %v859 = vsel %vm481, %v851, 0.0
    %v860 = vsel %vm482, %v852, 0.0
    %861 = vset.pattern.permute.xlu0 7
    %862 = vperm.xlu0 %861, %v57
    %v863 = vpop.permute.xlu0 %862
    %v865 = vmul.f32 %v857, %v863
    %v866 = vmul.f32 %v858, %v863
    %v867 = vmul.f32 %v859, %v863
    %v868 = vmul.f32 %v860, %v863
    %v869 = vadd.f32 %v786, %v865
    %v870 = vadd.f32 %v787, %v866
    %v871 = vadd.f32 %v788, %v867
    %v872 = vadd.f32 %v789, %v868
    %873 = vset.pattern.permute.xlu0 16
    %874 = vperm.xlu0 %873, %v57
    %v875 = vpop.permute.xlu0 %874
    %v877 = vmul.f32 %v857, %v875
    %v878 = vmul.f32 %v858, %v875
    %v879 = vmul.f32 %v859, %v875
    %v880 = vmul.f32 %v860, %v875
    %v881 = vadd.f32 %v798, %v877
    %v882 = vadd.f32 %v799, %v878
    %v883 = vadd.f32 %v800, %v879
    %v884 = vadd.f32 %v801, %v880
    %885 = vset.pattern.permute.xlu0 25
    %886 = vperm.xlu0 %885, %v57
    %v887 = vpop.permute.xlu0 %886
    %v889 = vmul.f32 %v857, %v887
    %v890 = vmul.f32 %v858, %v887
    %v891 = vmul.f32 %v859, %v887
    %v892 = vmul.f32 %v860, %v887
    %v893 = vadd.f32 %v810, %v889
    %v894 = vadd.f32 %v811, %v890
    %v895 = vadd.f32 %v812, %v891
    %v896 = vadd.f32 %v813, %v892
    %897 = vset.pattern.permute.xlu0 34
    %898 = vperm.xlu0 %897, %v57
    %v899 = vpop.permute.xlu0 %898
    %v901 = vmul.f32 %v857, %v899
    %v902 = vmul.f32 %v858, %v899
    %v903 = vmul.f32 %v859, %v899
    %v904 = vmul.f32 %v860, %v899
    %v905 = vadd.f32 %v822, %v901
    %v906 = vadd.f32 %v823, %v902
    %v907 = vadd.f32 %v824, %v903
    %v908 = vadd.f32 %v825, %v904
    %909 = vset.pattern.permute.xlu0 8
    %910 = vperm.xlu0 %909, %v57
    %v911 = vpop.permute.xlu0 %910
    %v913 = vunpack.c.l.s4 839922192
    %v914 = vunpack.c.0.s8 %v913
    %v915 = vlaneseq
    %v916 = vshrl.u32 %v915, 7
    %v917 = vsub.s32 %v914, %v916
    %v918 = vrot.slane %v911, %v917
    %v920 = vmul.f32 %v85, %v918
    %v921 = vmul.f32 %v86, %v918
    %v922 = vmul.f32 %v87, %v918
    %v923 = vmul.f32 %v88, %v918
    %v928 = vcombine.high %v920, %v920
    %v929 = vcombine.high %v922, %v922
    %930 = vrot.lane.b32.xlu0 %v920, 94
    %v931 = vpop.permute.xlu0 %930
    %932 = vrot.lane.b32.xlu0 %v928, 94
    %v933 = vpop.permute.xlu0 %932
    %934 = vrot.lane.b32.xlu0 %v921, 94
    %v935 = vpop.permute.xlu0 %934
    %936 = vrot.lane.b32.xlu0 %v922, 94
    %v937 = vpop.permute.xlu0 %936
    %938 = vrot.lane.b32.xlu0 %v929, 94
    %v939 = vpop.permute.xlu0 %938
    %940 = vrot.lane.b32.xlu0 %v923, 94
    %v941 = vpop.permute.xlu0 %940
    %vm942 = vcmask 769024
    %v943 = vsel %vm942, %v931, %v933
    %v944 = vsel %vm942, %v933, %v935
    %v945 = vsel %vm942, %v937, %v939
    %v946 = vsel %vm942, %v939, %v941
    %v951 = vadd.f32 %v869, %v943
    %v952 = vadd.f32 %v870, %v944
    %v953 = vadd.f32 %v871, %v945
    %v954 = vadd.f32 %v872, %v946
    %955 = vset.pattern.permute.xlu0 17
    %956 = vperm.xlu0 %955, %v57
    %v957 = vpop.permute.xlu0 %956
    %v959 = vunpack.c.l.s4 839922192
    %v960 = vunpack.c.0.s8 %v959
    %v961 = vlaneseq
    %v962 = vshrl.u32 %v961, 7
    %v963 = vsub.s32 %v960, %v962
    %v964 = vrot.slane %v957, %v963
    %v966 = vmul.f32 %v85, %v964
    %v967 = vmul.f32 %v86, %v964
    %v968 = vmul.f32 %v87, %v964
    %v969 = vmul.f32 %v88, %v964
    %v974 = vcombine.high %v966, %v966
    %v975 = vcombine.high %v968, %v968
    %976 = vrot.lane.b32.xlu0 %v966, 94
    %v977 = vpop.permute.xlu0 %976
    %978 = vrot.lane.b32.xlu0 %v974, 94
    %v979 = vpop.permute.xlu0 %978
    %980 = vrot.lane.b32.xlu0 %v967, 94
    %v981 = vpop.permute.xlu0 %980
    %982 = vrot.lane.b32.xlu0 %v968, 94
    %v983 = vpop.permute.xlu0 %982
    %984 = vrot.lane.b32.xlu0 %v975, 94
    %v985 = vpop.permute.xlu0 %984
    %986 = vrot.lane.b32.xlu0 %v969, 94
    %v987 = vpop.permute.xlu0 %986
    %v988 = vsel %vm942, %v977, %v979
    %v989 = vsel %vm942, %v979, %v981
    %v990 = vsel %vm942, %v983, %v985
    %v991 = vsel %vm942, %v985, %v987
    %v996 = vadd.f32 %v881, %v988
    %v997 = vadd.f32 %v882, %v989
    %v998 = vadd.f32 %v883, %v990
    %v999 = vadd.f32 %v884, %v991
    %1000 = vset.pattern.permute.xlu0 26
    %1001 = vperm.xlu0 %1000, %v57
    %v1002 = vpop.permute.xlu0 %1001
    %v1004 = vunpack.c.l.s4 839922192
    %v1005 = vunpack.c.0.s8 %v1004
    %v1006 = vlaneseq
    %v1007 = vshrl.u32 %v1006, 7
    %v1008 = vsub.s32 %v1005, %v1007
    %v1009 = vrot.slane %v1002, %v1008
    %v1011 = vmul.f32 %v85, %v1009
    %v1012 = vmul.f32 %v86, %v1009
    %v1013 = vmul.f32 %v87, %v1009
    %v1014 = vmul.f32 %v88, %v1009
    %v1019 = vcombine.high %v1011, %v1011
    %v1020 = vcombine.high %v1013, %v1013
    %1021 = vrot.lane.b32.xlu0 %v1011, 94
    %v1022 = vpop.permute.xlu0 %1021
    %1023 = vrot.lane.b32.xlu0 %v1019, 94
    %v1024 = vpop.permute.xlu0 %1023
    %1025 = vrot.lane.b32.xlu0 %v1012, 94
    %v1026 = vpop.permute.xlu0 %1025
    %1027 = vrot.lane.b32.xlu0 %v1013, 94
    %v1028 = vpop.permute.xlu0 %1027
    %1029 = vrot.lane.b32.xlu0 %v1020, 94
    %v1030 = vpop.permute.xlu0 %1029
    %1031 = vrot.lane.b32.xlu0 %v1014, 94
    %v1032 = vpop.permute.xlu0 %1031
    %v1033 = vsel %vm942, %v1022, %v1024
    %v1034 = vsel %vm942, %v1024, %v1026
    %v1035 = vsel %vm942, %v1028, %v1030
    %v1036 = vsel %vm942, %v1030, %v1032
    %v1041 = vadd.f32 %v893, %v1033
    %v1042 = vadd.f32 %v894, %v1034
    %v1043 = vadd.f32 %v895, %v1035
    %v1044 = vadd.f32 %v896, %v1036
    %1045 = vset.pattern.permute.xlu0 35
    %1046 = vperm.xlu0 %1045, %v57
    %v1047 = vpop.permute.xlu0 %1046
    %v1049 = vunpack.c.l.s4 839922192
    %v1050 = vunpack.c.0.s8 %v1049
    %v1051 = vlaneseq
    %v1052 = vshrl.u32 %v1051, 7
    %v1053 = vsub.s32 %v1050, %v1052
    %v1054 = vrot.slane %v1047, %v1053
    %v1056 = vmul.f32 %v85, %v1054
    %v1057 = vmul.f32 %v86, %v1054
    %v1058 = vmul.f32 %v87, %v1054
    %v1059 = vmul.f32 %v88, %v1054
    %v1064 = vcombine.high %v1056, %v1056
    %v1065 = vcombine.high %v1058, %v1058
    %1066 = vrot.lane.b32.xlu0 %v1056, 94
    %v1067 = vpop.permute.xlu0 %1066
    %1068 = vrot.lane.b32.xlu0 %v1064, 94
    %v1069 = vpop.permute.xlu0 %1068
    %1070 = vrot.lane.b32.xlu0 %v1057, 94
    %v1071 = vpop.permute.xlu0 %1070
    %1072 = vrot.lane.b32.xlu0 %v1058, 94
    %v1073 = vpop.permute.xlu0 %1072
    %1074 = vrot.lane.b32.xlu0 %v1065, 94
    %v1075 = vpop.permute.xlu0 %1074
    %1076 = vrot.lane.b32.xlu0 %v1059, 94
    %v1077 = vpop.permute.xlu0 %1076
    %v1078 = vsel %vm942, %v1067, %v1069
    %v1079 = vsel %vm942, %v1069, %v1071
    %v1080 = vsel %vm942, %v1073, %v1075
    %v1081 = vsel %vm942, %v1075, %v1077
    %v1086 = vadd.f32 %v905, %v1078
    %v1087 = vadd.f32 %v906, %v1079
    %v1088 = vadd.f32 %v907, %v1080
    %v1089 = vadd.f32 %v908, %v1081
    %v1090 = vld [vmem:[#allocation2] sm:$0xff]
    %v1091 = vld [vmem:[#allocation2 + $0x8] sm:$0xf]
    %v1092 = vld [vmem:[#allocation2 + $0xc] sm:$0xff]
    %v1093 = vld [vmem:[#allocation2 + $0x14] sm:$0xf]
    %v1098 = vcombine.high %v1090, %v1090
    %v1099 = vcombine.high %v1092, %v1092
    %1100 = vrot.lane.b32.xlu0 %v1090, 93
    %v1101 = vpop.permute.xlu0 %1100
    %1102 = vrot.lane.b32.xlu0 %v1098, 93
    %v1103 = vpop.permute.xlu0 %1102
    %1104 = vrot.lane.b32.xlu0 %v1091, 93
    %v1105 = vpop.permute.xlu0 %1104
    %1106 = vrot.lane.b32.xlu0 %v1092, 93
    %v1107 = vpop.permute.xlu0 %1106
    %1108 = vrot.lane.b32.xlu0 %v1099, 93
    %v1109 = vpop.permute.xlu0 %1108
    %1110 = vrot.lane.b32.xlu0 %v1093, 93
    %v1111 = vpop.permute.xlu0 %1110
    %vm1112 = vcmask 760832
    %v1113 = vsel %vm1112, %v1101, %v1103
    %v1114 = vsel %vm1112, %v1103, %v1105
    %v1115 = vsel %vm1112, %v1107, %v1109
    %v1116 = vsel %vm1112, %v1109, %v1111
    %v1121 = vsel %vm745, %v1113, 0.0
    %v1122 = vsel %vm746, %v1114, 0.0
    %v1123 = vsel %vm745, %v1115, 0.0
    %v1124 = vsel %vm746, %v1116, 0.0
    %1125 = vset.pattern.permute.xlu0 9
    %1126 = vperm.xlu0 %1125, %v57
    %v1127 = vpop.permute.xlu0 %1126
    %v1129 = vmul.f32 %v1121, %v1127
    %v1130 = vmul.f32 %v1122, %v1127
    %v1131 = vmul.f32 %v1123, %v1127
    %v1132 = vmul.f32 %v1124, %v1127
    %v1133 = vadd.f32 %v951, %v1129
    %v1134 = vadd.f32 %v952, %v1130
    %v1135 = vadd.f32 %v953, %v1131
    %v1136 = vadd.f32 %v954, %v1132
    %1137 = vset.pattern.permute.xlu0 18
    %1138 = vperm.xlu0 %1137, %v57
    %v1139 = vpop.permute.xlu0 %1138
    %v1141 = vmul.f32 %v1121, %v1139
    %v1142 = vmul.f32 %v1122, %v1139
    %v1143 = vmul.f32 %v1123, %v1139
    %v1144 = vmul.f32 %v1124, %v1139
    %v1145 = vadd.f32 %v996, %v1141
    %v1146 = vadd.f32 %v997, %v1142
    %v1147 = vadd.f32 %v998, %v1143
    %v1148 = vadd.f32 %v999, %v1144
    %1149 = vset.pattern.permute.xlu0 27
    %1150 = vperm.xlu0 %1149, %v57
    %v1151 = vpop.permute.xlu0 %1150
    %v1153 = vmul.f32 %v1121, %v1151
    %v1154 = vmul.f32 %v1122, %v1151
    %v1155 = vmul.f32 %v1123, %v1151
    %v1156 = vmul.f32 %v1124, %v1151
    %v1157 = vadd.f32 %v1041, %v1153
    %v1158 = vadd.f32 %v1042, %v1154
    %v1159 = vadd.f32 %v1043, %v1155
    %v1160 = vadd.f32 %v1044, %v1156
    %1161 = vset.pattern.permute.xlu0 36
    %1162 = vperm.xlu0 %1161, %v57
    %v1163 = vpop.permute.xlu0 %1162
    %v1165 = vmul.f32 %v1121, %v1163
    %v1166 = vmul.f32 %v1122, %v1163
    %v1167 = vmul.f32 %v1123, %v1163
    %v1168 = vmul.f32 %v1124, %v1163
    %v1169 = vadd.f32 %v1086, %v1165
    %v1170 = vadd.f32 %v1087, %v1166
    %v1171 = vadd.f32 %v1088, %v1167
    %v1172 = vadd.f32 %v1089, %v1168
    %v1173 = vld [vmem:[#allocation2] sm:$0xff]
    %v1174 = vld [vmem:[#allocation2 + $0x8] sm:$0xf]
    %v1175 = vld [vmem:[#allocation2 + $0xc] sm:$0xff]
    %v1176 = vld [vmem:[#allocation2 + $0x14] sm:$0xf]
    %v1181 = vcombine.high %v1173, %v1173
    %v1182 = vcombine.high %v1175, %v1175
    %1183 = vrot.lane.b32.xlu0 %v1173, 79
    %v1184 = vpop.permute.xlu0 %1183
    %1185 = vrot.lane.b32.xlu0 %v1181, 79
    %v1186 = vpop.permute.xlu0 %1185
    %1187 = vrot.lane.b32.xlu0 %v1174, 79
    %v1188 = vpop.permute.xlu0 %1187
    %1189 = vrot.lane.b32.xlu0 %v1175, 79
    %v1190 = vpop.permute.xlu0 %1189
    %1191 = vrot.lane.b32.xlu0 %v1182, 79
    %v1192 = vpop.permute.xlu0 %1191
    %1193 = vrot.lane.b32.xlu0 %v1176, 79
    %v1194 = vpop.permute.xlu0 %1193
    %vm1195 = vcmask 646144
    %v1196 = vsel %vm1195, %v1184, %v1186
    %v1197 = vsel %vm1195, %v1186, %v1188
    %v1198 = vsel %vm1195, %v1190, %v1192
    %v1199 = vsel %vm1195, %v1192, %v1194
    %v1204 = vsel %vm481, %v1196, 0.0
    %v1205 = vsel %vm482, %v1197, 0.0
    %v1206 = vsel %vm481, %v1198, 0.0
    %v1207 = vsel %vm482, %v1199, 0.0
    %1208 = vset.pattern.permute.xlu0 10
    %1209 = vperm.xlu0 %1208, %v57
    %v1210 = vpop.permute.xlu0 %1209
    %v1212 = vmul.f32 %v1204, %v1210
    %v1213 = vmul.f32 %v1205, %v1210
    %v1214 = vmul.f32 %v1206, %v1210
    %v1215 = vmul.f32 %v1207, %v1210
    %v1216 = vadd.f32 %v1133, %v1212
    %v1217 = vadd.f32 %v1134, %v1213
    %v1218 = vadd.f32 %v1135, %v1214
    %v1219 = vadd.f32 %v1136, %v1215
    %1220 = vset.pattern.permute.xlu0 19
    %1221 = vperm.xlu0 %1220, %v57
    %v1222 = vpop.permute.xlu0 %1221
    %v1224 = vmul.f32 %v1204, %v1222
    %v1225 = vmul.f32 %v1205, %v1222
    %v1226 = vmul.f32 %v1206, %v1222
    %v1227 = vmul.f32 %v1207, %v1222
    %v1228 = vadd.f32 %v1145, %v1224
    %v1229 = vadd.f32 %v1146, %v1225
    %v1230 = vadd.f32 %v1147, %v1226
    %v1231 = vadd.f32 %v1148, %v1227
    %1232 = vset.pattern.permute.xlu0 28
    %1233 = vperm.xlu0 %1232, %v57
    %v1234 = vpop.permute.xlu0 %1233
    %v1236 = vmul.f32 %v1204, %v1234
    %v1237 = vmul.f32 %v1205, %v1234
    %v1238 = vmul.f32 %v1206, %v1234
    %v1239 = vmul.f32 %v1207, %v1234
    %v1240 = vadd.f32 %v1157, %v1236
    %v1241 = vadd.f32 %v1158, %v1237
    %v1242 = vadd.f32 %v1159, %v1238
    %v1243 = vadd.f32 %v1160, %v1239
    %1244 = vset.pattern.permute.xlu0 37
    %1245 = vperm.xlu0 %1244, %v57
    %v1246 = vpop.permute.xlu0 %1245
    %v1248 = vmul.f32 %v1204, %v1246
    %v1249 = vmul.f32 %v1205, %v1246
    %v1250 = vmul.f32 %v1206, %v1246
    %v1251 = vmul.f32 %v1207, %v1246
    %v1252 = vadd.f32 %v1169, %v1248
    %v1253 = vadd.f32 %v1170, %v1249
    %v1254 = vadd.f32 %v1171, %v1250
    %v1255 = vadd.f32 %v1172, %v1251
    %v1256 = vld [vmem:[#allocation2] sm:$0xff]
    %v1257 = vld [vmem:[#allocation2 + $0x8] sm:$0xf]
    %v1258 = vld [vmem:[#allocation2 + $0xc] sm:$0xff]
    %v1259 = vld [vmem:[#allocation2 + $0x14] sm:$0xf]
    %1260 = vset.pattern.permute.xlu0 11
    %1261 = vperm.xlu0 %1260, %v57
    %v1262 = vpop.permute.xlu0 %1261
    %v1264 = vunpack.c.l.s4 839922192
    %v1265 = vunpack.c.0.s8 %v1264
    %v1266 = vlaneseq
    %v1267 = vshrl.u32 %v1266, 7
    %v1268 = vsub.s32 %v1265, %v1267
    %v1269 = vrot.slane %v1262, %v1268
    %v1271 = vmul.f32 %v1256, %v1269
    %v1272 = vmul.f32 %v1257, %v1269
    %v1273 = vmul.f32 %v1258, %v1269
    %v1274 = vmul.f32 %v1259, %v1269
    %v1279 = vcombine.high %v1271, %v1271
    %v1280 = vcombine.high %v1273, %v1273
    %1281 = vrot.lane.b32.xlu0 %v1271, 78
    %v1282 = vpop.permute.xlu0 %1281
    %1283 = vrot.lane.b32.xlu0 %v1279, 78
    %v1284 = vpop.permute.xlu0 %1283
    %1285 = vrot.lane.b32.xlu0 %v1272, 78
    %v1286 = vpop.permute.xlu0 %1285
    %1287 = vrot.lane.b32.xlu0 %v1273, 78
    %v1288 = vpop.permute.xlu0 %1287
    %1289 = vrot.lane.b32.xlu0 %v1280, 78
    %v1290 = vpop.permute.xlu0 %1289
    %1291 = vrot.lane.b32.xlu0 %v1274, 78
    %v1292 = vpop.permute.xlu0 %1291
    %vm1293 = vcmask 637952
    %v1294 = vsel %vm1293, %v1282, %v1284
    %v1295 = vsel %vm1293, %v1284, %v1286
    %v1296 = vsel %vm1293, %v1288, %v1290
    %v1297 = vsel %vm1293, %v1290, %v1292
    %v1302 = vadd.f32 %v1216, %v1294
    %v1303 = vadd.f32 %v1217, %v1295
    %v1304 = vadd.f32 %v1218, %v1296
    %v1305 = vadd.f32 %v1219, %v1297
    %1306 = vset.pattern.permute.xlu0 20
    %1307 = vperm.xlu0 %1306, %v57
    %v1308 = vpop.permute.xlu0 %1307
    %v1310 = vunpack.c.l.s4 839922192
    %v1311 = vunpack.c.0.s8 %v1310
    %v1312 = vlaneseq
    %v1313 = vshrl.u32 %v1312, 7
    %v1314 = vsub.s32 %v1311, %v1313
    %v1315 = vrot.slane %v1308, %v1314
    %v1317 = vmul.f32 %v1256, %v1315
    %v1318 = vmul.f32 %v1257, %v1315
    %v1319 = vmul.f32 %v1258, %v1315
    %v1320 = vmul.f32 %v1259, %v1315
    %v1325 = vcombine.high %v1317, %v1317
    %v1326 = vcombine.high %v1319, %v1319
    %1327 = vrot.lane.b32.xlu0 %v1317, 78
    %v1328 = vpop.permute.xlu0 %1327
    %1329 = vrot.lane.b32.xlu0 %v1325, 78
    %v1330 = vpop.permute.xlu0 %1329
    %1331 = vrot.lane.b32.xlu0 %v1318, 78
    %v1332 = vpop.permute.xlu0 %1331
    %1333 = vrot.lane.b32.xlu0 %v1319, 78
    %v1334 = vpop.permute.xlu0 %1333
    %1335 = vrot.lane.b32.xlu0 %v1326, 78
    %v1336 = vpop.permute.xlu0 %1335
    %1337 = vrot.lane.b32.xlu0 %v1320, 78
    %v1338 = vpop.permute.xlu0 %1337
    %v1339 = vsel %vm1293, %v1328, %v1330
    %v1340 = vsel %vm1293, %v1330, %v1332
    %v1341 = vsel %vm1293, %v1334, %v1336
    %v1342 = vsel %vm1293, %v1336, %v1338
    %v1347 = vadd.f32 %v1228, %v1339
    %v1348 = vadd.f32 %v1229, %v1340
    %v1349 = vadd.f32 %v1230, %v1341
    %v1350 = vadd.f32 %v1231, %v1342
    %1351 = vset.pattern.permute.xlu0 29
    %1352 = vperm.xlu0 %1351, %v57
    %v1353 = vpop.permute.xlu0 %1352
    %v1355 = vunpack.c.l.s4 839922192
    %v1356 = vunpack.c.0.s8 %v1355
    %v1357 = vlaneseq
    %v1358 = vshrl.u32 %v1357, 7
    %v1359 = vsub.s32 %v1356, %v1358
    %v1360 = vrot.slane %v1353, %v1359
    %v1362 = vmul.f32 %v1256, %v1360
    %v1363 = vmul.f32 %v1257, %v1360
    %v1364 = vmul.f32 %v1258, %v1360
    %v1365 = vmul.f32 %v1259, %v1360
    %v1370 = vcombine.high %v1362, %v1362
    %v1371 = vcombine.high %v1364, %v1364
    %1372 = vrot.lane.b32.xlu0 %v1362, 78
    %v1373 = vpop.permute.xlu0 %1372
    %1374 = vrot.lane.b32.xlu0 %v1370, 78
    %v1375 = vpop.permute.xlu0 %1374
    %1376 = vrot.lane.b32.xlu0 %v1363, 78
    %v1377 = vpop.permute.xlu0 %1376
    %1378 = vrot.lane.b32.xlu0 %v1364, 78
    %v1379 = vpop.permute.xlu0 %1378
    %1380 = vrot.lane.b32.xlu0 %v1371, 78
    %v1381 = vpop.permute.xlu0 %1380
    %1382 = vrot.lane.b32.xlu0 %v1365, 78
    %v1383 = vpop.permute.xlu0 %1382
    %v1384 = vsel %vm1293, %v1373, %v1375
    %v1385 = vsel %vm1293, %v1375, %v1377
    %v1386 = vsel %vm1293, %v1379, %v1381
    %v1387 = vsel %vm1293, %v1381, %v1383
    %v1392 = vadd.f32 %v1240, %v1384
    %v1393 = vadd.f32 %v1241, %v1385
    %v1394 = vadd.f32 %v1242, %v1386
    %v1395 = vadd.f32 %v1243, %v1387
    %1396 = vset.pattern.permute.xlu0 38
    %1397 = vperm.xlu0 %1396, %v57
    %v1398 = vpop.permute.xlu0 %1397
    %v1400 = vunpack.c.l.s4 839922192
    %v1401 = vunpack.c.0.s8 %v1400
    %v1402 = vlaneseq
    %v1403 = vshrl.u32 %v1402, 7
    %v1404 = vsub.s32 %v1401, %v1403
    %v1405 = vrot.slane %v1398, %v1404
    %v1407 = vmul.f32 %v1256, %v1405
    %v1408 = vmul.f32 %v1257, %v1405
    %v1409 = vmul.f32 %v1258, %v1405
    %v1410 = vmul.f32 %v1259, %v1405
    %v1415 = vcombine.high %v1407, %v1407
    %v1416 = vcombine.high %v1409, %v1409
    %1417 = vrot.lane.b32.xlu0 %v1407, 78
    %v1418 = vpop.permute.xlu0 %1417
    %1419 = vrot.lane.b32.xlu0 %v1415, 78
    %v1420 = vpop.permute.xlu0 %1419
    %1421 = vrot.lane.b32.xlu0 %v1408, 78
    %v1422 = vpop.permute.xlu0 %1421
    %1423 = vrot.lane.b32.xlu0 %v1409, 78
    %v1424 = vpop.permute.xlu0 %1423
    %1425 = vrot.lane.b32.xlu0 %v1416, 78
    %v1426 = vpop.permute.xlu0 %1425
    %1427 = vrot.lane.b32.xlu0 %v1410, 78
    %v1428 = vpop.permute.xlu0 %1427
    %v1429 = vsel %vm1293, %v1418, %v1420
    %v1430 = vsel %vm1293, %v1420, %v1422
    %v1431 = vsel %vm1293, %v1424, %v1426
    %v1432 = vsel %vm1293, %v1426, %v1428
    %v1437 = vadd.f32 %v1252, %v1429
    %v1438 = vadd.f32 %v1253, %v1430
    %v1439 = vadd.f32 %v1254, %v1431
    %v1440 = vadd.f32 %v1255, %v1432
    %v1441 = vld [vmem:[#allocation2] sm:$0xff]
    %v1442 = vld [vmem:[#allocation2 + $0x8] sm:$0xf]
    %v1443 = vld [vmem:[#allocation2 + $0xc] sm:$0xff]
    %v1444 = vld [vmem:[#allocation2 + $0x14] sm:$0xf]
    %v1449 = vcombine.high %v1441, %v1441
    %v1450 = vcombine.high %v1443, %v1443
    %1451 = vrot.lane.b32.xlu0 %v1441, 77
    %v1452 = vpop.permute.xlu0 %1451
    %1453 = vrot.lane.b32.xlu0 %v1449, 77
    %v1454 = vpop.permute.xlu0 %1453
    %1455 = vrot.lane.b32.xlu0 %v1442, 77
    %v1456 = vpop.permute.xlu0 %1455
    %1457 = vrot.lane.b32.xlu0 %v1443, 77
    %v1458 = vpop.permute.xlu0 %1457
    %1459 = vrot.lane.b32.xlu0 %v1450, 77
    %v1460 = vpop.permute.xlu0 %1459
    %1461 = vrot.lane.b32.xlu0 %v1444, 77
    %v1462 = vpop.permute.xlu0 %1461
    %vm1463 = vcmask 629760
    %v1464 = vsel %vm1463, %v1452, %v1454
    %v1465 = vsel %vm1463, %v1454, %v1456
    %v1466 = vsel %vm1463, %v1458, %v1460
    %v1467 = vsel %vm1463, %v1460, %v1462
    %v1472 = vsel %vm745, %v1464, 0.0
    %v1473 = vsel %vm746, %v1465, 0.0
    %v1474 = vsel %vm745, %v1466, 0.0
    %v1475 = vsel %vm746, %v1467, 0.0
    %1476 = vset.pattern.permute.xlu0 12
    %1477 = vperm.xlu0 %1476, %v57
    %v1478 = vpop.permute.xlu0 %1477
    %v1480 = vmul.f32 %v1472, %v1478
    %v1481 = vmul.f32 %v1473, %v1478
    %v1482 = vmul.f32 %v1474, %v1478
    %v1483 = vmul.f32 %v1475, %v1478
    %v1484 = vadd.f32 %v1302, %v1480
    %v1485 = vadd.f32 %v1303, %v1481
    %v1486 = vadd.f32 %v1304, %v1482
    %v1487 = vadd.f32 %v1305, %v1483
    %1488 = vset.pattern.permute.xlu0 21
    %1489 = vperm.xlu0 %1488, %v57
    %v1490 = vpop.permute.xlu0 %1489
    %v1492 = vmul.f32 %v1472, %v1490
    %v1493 = vmul.f32 %v1473, %v1490
    %v1494 = vmul.f32 %v1474, %v1490
    %v1495 = vmul.f32 %v1475, %v1490
    %v1496 = vadd.f32 %v1347, %v1492
    %v1497 = vadd.f32 %v1348, %v1493
    %v1498 = vadd.f32 %v1349, %v1494
    %v1499 = vadd.f32 %v1350, %v1495
    %1500 = vset.pattern.permute.xlu0 30
    %1501 = vperm.xlu0 %1500, %v57
    %v1502 = vpop.permute.xlu0 %1501
    %v1504 = vmul.f32 %v1472, %v1502
    %v1505 = vmul.f32 %v1473, %v1502
    %v1506 = vmul.f32 %v1474, %v1502
    %v1507 = vmul.f32 %v1475, %v1502
    %v1508 = vadd.f32 %v1392, %v1504
    %v1509 = vadd.f32 %v1393, %v1505
    %v1510 = vadd.f32 %v1394, %v1506
    %v1511 = vadd.f32 %v1395, %v1507
    %1512 = vset.pattern.permute.xlu0 39
    %1513 = vperm.xlu0 %1512, %v57
    %v1514 = vpop.permute.xlu0 %1513
    %v1516 = vmul.f32 %v1472, %v1514
    %v1517 = vmul.f32 %v1473, %v1514
    %v1518 = vmul.f32 %v1474, %v1514
    %v1519 = vmul.f32 %v1475, %v1514
    %v1520 = vadd.f32 %v1437, %v1516
    %v1521 = vadd.f32 %v1438, %v1517
    %v1522 = vadd.f32 %v1439, %v1518
    %v1523 = vadd.f32 %v1440, %v1519
    %v1524 = vsel %vm163, %v1484, 0.0
    %v1525 = vrot.slane %v1524, 4
    %v1526 = vadd.f32 %v1524, %v1525
    %v1527 = vrot.slane %v1526, 2
    %v1528 = vadd.f32 %v1526, %v1527
    %v1529 = vrot.slane %v1528, 1
    %v1530 = vadd.f32 %v1528, %v1529
    %v1531 = vsel %vm163, %v1485, 0.0
    %v1532 = vrot.slane %v1531, 4
    %v1533 = vadd.f32 %v1531, %v1532
    %v1534 = vrot.slane %v1533, 2
    %v1535 = vadd.f32 %v1533, %v1534
    %v1536 = vrot.slane %v1535, 1
    %v1537 = vadd.f32 %v1535, %v1536
    %v1538 = vsel %vm163, %v1486, 0.0
    %v1539 = vrot.slane %v1538, 4
    %v1540 = vadd.f32 %v1538, %v1539
    %v1541 = vrot.slane %v1540, 2
    %v1542 = vadd.f32 %v1540, %v1541
    %v1543 = vrot.slane %v1542, 1
    %v1544 = vadd.f32 %v1542, %v1543
    %v1545 = vsel %vm163, %v1487, 0.0
    %v1546 = vrot.slane %v1545, 4
    %v1547 = vadd.f32 %v1545, %v1546
    %v1548 = vrot.slane %v1547, 2
    %v1549 = vadd.f32 %v1547, %v1548
    %v1550 = vrot.slane %v1549, 1
    %v1551 = vadd.f32 %v1549, %v1550
    %s1552 = sld [smem:[#allocation3 + $0x4]]
    %v1553 = vstv %s1552
    %v1554 = vadd.f32 %v1530, %v1553
    %v1555 = vadd.f32 %v1537, %v1553
    %v1556 = vadd.f32 %v1544, %v1553
    %v1557 = vadd.f32 %v1551, %v1553
    %v1558 = vmax.f32 %v1554, 0.0
    %v1559 = vmax.f32 %v1555, 0.0
    %v1560 = vmax.f32 %v1556, 0.0
    %v1561 = vmax.f32 %v1557, 0.0
    %1562 = vset.pattern.permute.xlu0 80
    %1563 = vperm.xlu0 %1562, %v57
    %v1564 = vpop.permute.xlu0 %1563
    %v1566 = vmul.f32 %v1558, %v1564
    %v1567 = vmul.f32 %v1559, %v1564
    %v1568 = vmul.f32 %v1560, %v1564
    %v1569 = vmul.f32 %v1561, %v1564
    %1574 = vrot.lane.b32.xlu0 %v1566, 34
    %v1575 = vpop.permute.xlu0 %1574
    %1576 = vrot.lane.b32.xlu0 %v1567, 34
    %v1577 = vpop.permute.xlu0 %1576
    %1578 = vrot.lane.b32.xlu0 %v1568, 34
    %v1579 = vpop.permute.xlu0 %1578
    %1580 = vrot.lane.b32.xlu0 %v1569, 34
    %v1581 = vpop.permute.xlu0 %1580
    %v1582 = vsel %vm43, %v1575, %v1577
    %v1583 = vsel %vm43, %v1579, %v1581
    %v1590 = vadd.f32 %v461, %v1575
    %v1591 = vadd.f32 %v462, %v1582
    %v1592 = vadd.f32 %v463, %v1577
    %v1593 = vadd.f32 %v464, %v1579
    %v1594 = vadd.f32 %v465, %v1583
    %v1595 = vadd.f32 %v466, %v1581
    %v1596 = vsel %vm163, %v1496, 0.0
    %v1597 = vrot.slane %v1596, 4
    %v1598 = vadd.f32 %v1596, %v1597
    %v1599 = vrot.slane %v1598, 2
    %v1600 = vadd.f32 %v1598, %v1599
    %v1601 = vrot.slane %v1600, 1
    %v1602 = vadd.f32 %v1600, %v1601
    %v1603 = vsel %vm163, %v1497, 0.0
    %v1604 = vrot.slane %v1603, 4
    %v1605 = vadd.f32 %v1603, %v1604
    %v1606 = vrot.slane %v1605, 2
    %v1607 = vadd.f32 %v1605, %v1606
    %v1608 = vrot.slane %v1607, 1
    %v1609 = vadd.f32 %v1607, %v1608
    %v1610 = vsel %vm163, %v1498, 0.0
    %v1611 = vrot.slane %v1610, 4
    %v1612 = vadd.f32 %v1610, %v1611
    %v1613 = vrot.slane %v1612, 2
    %v1614 = vadd.f32 %v1612, %v1613
    %v1615 = vrot.slane %v1614, 1
    %v1616 = vadd.f32 %v1614, %v1615
    %v1617 = vsel %vm163, %v1499, 0.0
    %v1618 = vrot.slane %v1617, 4
    %v1619 = vadd.f32 %v1617, %v1618
    %v1620 = vrot.slane %v1619, 2
    %v1621 = vadd.f32 %v1619, %v1620
    %v1622 = vrot.slane %v1621, 1
    %v1623 = vadd.f32 %v1621, %v1622
    %s1624 = sld [smem:[#allocation3 + $0x5]]
    %v1625 = vstv %s1624
    %v1626 = vadd.f32 %v1602, %v1625
    %v1627 = vadd.f32 %v1609, %v1625
    %v1628 = vadd.f32 %v1616, %v1625
    %v1629 = vadd.f32 %v1623, %v1625
    %v1630 = vmax.f32 %v1626, 0.0
    %v1631 = vmax.f32 %v1627, 0.0
    %v1632 = vmax.f32 %v1628, 0.0
    %v1633 = vmax.f32 %v1629, 0.0
    %1634 = vset.pattern.permute.xlu0 81
    %1635 = vperm.xlu0 %1634, %v57
    %v1636 = vpop.permute.xlu0 %1635
    %v1638 = vmul.f32 %v1630, %v1636
    %v1639 = vmul.f32 %v1631, %v1636
    %v1640 = vmul.f32 %v1632, %v1636
    %v1641 = vmul.f32 %v1633, %v1636
    %1646 = vrot.lane.b32.xlu0 %v1638, 34
    %v1647 = vpop.permute.xlu0 %1646
    %1648 = vrot.lane.b32.xlu0 %v1639, 34
    %v1649 = vpop.permute.xlu0 %1648
    %1650 = vrot.lane.b32.xlu0 %v1640, 34
    %v1651 = vpop.permute.xlu0 %1650
    %1652 = vrot.lane.b32.xlu0 %v1641, 34
    %v1653 = vpop.permute.xlu0 %1652
    %v1654 = vsel %vm43, %v1647, %v1649
    %v1655 = vsel %vm43, %v1651, %v1653
    %v1662 = vadd.f32 %v1590, %v1647
    %v1663 = vadd.f32 %v1591, %v1654
    %v1664 = vadd.f32 %v1592, %v1649
    %v1665 = vadd.f32 %v1593, %v1651
    %v1666 = vadd.f32 %v1594, %v1655
    %v1667 = vadd.f32 %v1595, %v1653
    %v1668 = vsel %vm163, %v1508, 0.0
    %v1669 = vrot.slane %v1668, 4
    %v1670 = vadd.f32 %v1668, %v1669
    %v1671 = vrot.slane %v1670, 2
    %v1672 = vadd.f32 %v1670, %v1671
    %v1673 = vrot.slane %v1672, 1
    %v1674 = vadd.f32 %v1672, %v1673
    %v1675 = vsel %vm163, %v1509, 0.0
    %v1676 = vrot.slane %v1675, 4
    %v1677 = vadd.f32 %v1675, %v1676
    %v1678 = vrot.slane %v1677, 2
    %v1679 = vadd.f32 %v1677, %v1678
    %v1680 = vrot.slane %v1679, 1
    %v1681 = vadd.f32 %v1679, %v1680
    %v1682 = vsel %vm163, %v1510, 0.0
    %v1683 = vrot.slane %v1682, 4
    %v1684 = vadd.f32 %v1682, %v1683
    %v1685 = vrot.slane %v1684, 2
    %v1686 = vadd.f32 %v1684, %v1685
    %v1687 = vrot.slane %v1686, 1
    %v1688 = vadd.f32 %v1686, %v1687
    %v1689 = vsel %vm163, %v1511, 0.0
    %v1690 = vrot.slane %v1689, 4
    %v1691 = vadd.f32 %v1689, %v1690
    %v1692 = vrot.slane %v1691, 2
    %v1693 = vadd.f32 %v1691, %v1692
    %v1694 = vrot.slane %v1693, 1
    %v1695 = vadd.f32 %v1693, %v1694
    %s1696 = sld [smem:[#allocation3 + $0x6]]
    %v1697 = vstv %s1696
    %v1698 = vadd.f32 %v1674, %v1697
    %v1699 = vadd.f32 %v1681, %v1697
    %v1700 = vadd.f32 %v1688, %v1697
    %v1701 = vadd.f32 %v1695, %v1697
    %v1702 = vmax.f32 %v1698, 0.0
    %v1703 = vmax.f32 %v1699, 0.0
    %v1704 = vmax.f32 %v1700, 0.0
    %v1705 = vmax.f32 %v1701, 0.0
    %1706 = vset.pattern.permute.xlu0 82
    %1707 = vperm.xlu0 %1706, %v57
    %v1708 = vpop.permute.xlu0 %1707
    %v1710 = vmul.f32 %v1702, %v1708
    %v1711 = vmul.f32 %v1703, %v1708
    %v1712 = vmul.f32 %v1704, %v1708
    %v1713 = vmul.f32 %v1705, %v1708
    %1718 = vrot.lane.b32.xlu0 %v1710, 34
    %v1719 = vpop.permute.xlu0 %1718
    %1720 = vrot.lane.b32.xlu0 %v1711, 34
    %v1721 = vpop.permute.xlu0 %1720
    %1722 = vrot.lane.b32.xlu0 %v1712, 34
    %v1723 = vpop.permute.xlu0 %1722
    %1724 = vrot.lane.b32.xlu0 %v1713, 34
    %v1725 = vpop.permute.xlu0 %1724
    %v1726 = vsel %vm43, %v1719, %v1721
    %v1727 = vsel %vm43, %v1723, %v1725
    %v1734 = vadd.f32 %v1662, %v1719
    %v1735 = vadd.f32 %v1663, %v1726
    %v1736 = vadd.f32 %v1664, %v1721
    %v1737 = vadd.f32 %v1665, %v1723
    %v1738 = vadd.f32 %v1666, %v1727
    %v1739 = vadd.f32 %v1667, %v1725
    %v1740 = vsel %vm163, %v1520, 0.0
    %v1741 = vrot.slane %v1740, 4
    %v1742 = vadd.f32 %v1740, %v1741
    %v1743 = vrot.slane %v1742, 2
    %v1744 = vadd.f32 %v1742, %v1743
    %v1745 = vrot.slane %v1744, 1
    %v1746 = vadd.f32 %v1744, %v1745
    %v1747 = vsel %vm163, %v1521, 0.0
    %v1748 = vrot.slane %v1747, 4
    %v1749 = vadd.f32 %v1747, %v1748
    %v1750 = vrot.slane %v1749, 2
    %v1751 = vadd.f32 %v1749, %v1750
    %v1752 = vrot.slane %v1751, 1
    %v1753 = vadd.f32 %v1751, %v1752
    %v1754 = vsel %vm163, %v1522, 0.0
    %v1755 = vrot.slane %v1754, 4
    %v1756 = vadd.f32 %v1754, %v1755
    %v1757 = vrot.slane %v1756, 2
    %v1758 = vadd.f32 %v1756, %v1757
    %v1759 = vrot.slane %v1758, 1
    %v1760 = vadd.f32 %v1758, %v1759
    %v1761 = vsel %vm163, %v1523, 0.0
    %v1762 = vrot.slane %v1761, 4
    %v1763 = vadd.f32 %v1761, %v1762
    %v1764 = vrot.slane %v1763, 2
    %v1765 = vadd.f32 %v1763, %v1764
    %v1766 = vrot.slane %v1765, 1
    %v1767 = vadd.f32 %v1765, %v1766
    %s1768 = sld [smem:[#allocation3 + $0x7]]
    %v1769 = vstv %s1768
    %v1770 = vadd.f32 %v1746, %v1769
    %v1771 = vadd.f32 %v1753, %v1769
    %v1772 = vadd.f32 %v1760, %v1769
    %v1773 = vadd.f32 %v1767, %v1769
    %v1774 = vmax.f32 %v1770, 0.0
    %v1775 = vmax.f32 %v1771, 0.0
    %v1776 = vmax.f32 %v1772, 0.0
    %v1777 = vmax.f32 %v1773, 0.0
    %1778 = vset.pattern.permute.xlu0 83
    %1779 = vperm.xlu0 %1778, %v57
    %v1780 = vpop.permute.xlu0 %1779
    %v1782 = vmul.f32 %v1774, %v1780
    %v1783 = vmul.f32 %v1775, %v1780
    %v1784 = vmul.f32 %v1776, %v1780
    %v1785 = vmul.f32 %v1777, %v1780
    %1790 = vrot.lane.b32.xlu0 %v1782, 34
    %v1791 = vpop.permute.xlu0 %1790
    %1792 = vrot.lane.b32.xlu0 %v1783, 34
    %v1793 = vpop.permute.xlu0 %1792
    %1794 = vrot.lane.b32.xlu0 %v1784, 34
    %v1795 = vpop.permute.xlu0 %1794
    %1796 = vrot.lane.b32.xlu0 %v1785, 34
    %v1797 = vpop.permute.xlu0 %1796
    %v1798 = vsel %vm43, %v1791, %v1793
    %v1799 = vsel %vm43, %v1795, %v1797
    %v1806 = vadd.f32 %v1734, %v1791
    %v1807 = vadd.f32 %v1735, %v1798
    %v1808 = vadd.f32 %v1736, %v1793
    %v1809 = vadd.f32 %v1737, %v1795
    %v1810 = vadd.f32 %v1738, %v1799
    %v1811 = vadd.f32 %v1739, %v1797
    %v1812 = vld [vmem:[#allocation2] sm:$0xff]
    %v1813 = vld [vmem:[#allocation2 + $0xc] sm:$0xff]
    %v1814 = vadd.s32 %v83, 4294967294
    %v1815 = vadd.s32 %v84, 4294967294
    %vm1816 = vcmp.ge.s32.totalorder %v1814, 0
    %vm1817 = vcmp.ge.s32.totalorder %v1815, 0
    %vm1818 = vcmp.lt.s32.totalorder %v1814, 16
    %vm1819 = vcmp.lt.s32.totalorder %v1815, 16
    %vm1820 = vmand %vm1816, %vm1818
    %vm1821 = vmand %vm1817, %vm1819
    %v1822 = vsel %vm1820, 1, 0
    %v1823 = vsel %vm1821, 1, 0
    %vm1824 = vcmp.eq.s32.totalorder %v1822, 1
    %vm1825 = vcmp.eq.s32.totalorder %v1823, 1
    %v1828 = vcombine.high %v1812, %v1812
    %v1829 = vcombine.high %v1813, %v1813
    %v1832 = vsel %vm1824, %v1812, 0.0
    %v1833 = vsel %vm1825, %v1828, 0.0
    %v1834 = vsel %vm1824, %v1813, 0.0
    %v1835 = vsel %vm1825, %v1829, 0.0
    %1836 = vset.pattern.permute.xlu0 40
    %1837 = vperm.xlu0 %1836, %v57
    %v1838 = vpop.permute.xlu0 %1837
    %v1840 = vmul.f32 %v1832, %v1838
    %v1841 = vmul.f32 %v1833, %v1838
    %v1842 = vmul.f32 %v1834, %v1838
    %v1843 = vmul.f32 %v1835, %v1838
    %1844 = vset.pattern.permute.xlu0 49
    %1845 = vperm.xlu0 %1844, %v57
    %v1846 = vpop.permute.xlu0 %1845
    %v1848 = vmul.f32 %v1832, %v1846
    %v1849 = vmul.f32 %v1833, %v1846
    %v1850 = vmul.f32 %v1834, %v1846
    %v1851 = vmul.f32 %v1835, %v1846
    %1852 = vset.pattern.permute.xlu0 58
    %1853 = vperm.xlu0 %1852, %v57
    %v1854 = vpop.permute.xlu0 %1853
    %v1856 = vmul.f32 %v1832, %v1854
    %v1857 = vmul.f32 %v1833, %v1854
    %v1858 = vmul.f32 %v1834, %v1854
    %v1859 = vmul.f32 %v1835, %v1854
    %1860 = vset.pattern.permute.xlu0 67
    %1861 = vperm.xlu0 %1860, %v57
    %v1862 = vpop.permute.xlu0 %1861
    %v1864 = vmul.f32 %v1832, %v1862
    %v1865 = vmul.f32 %v1833, %v1862
    %v1866 = vmul.f32 %v1834, %v1862
    %v1867 = vmul.f32 %v1835, %v1862
    %v1868 = vld [vmem:[#allocation2] sm:$0xff]
    %v1869 = vld [vmem:[#allocation2 + $0x8] sm:$0xf]
    %v1870 = vld [vmem:[#allocation2 + $0xc] sm:$0xff]
    %v1871 = vld [vmem:[#allocation2 + $0x14] sm:$0xf]
    %1872 = vset.pattern.permute.xlu0 41
    %1873 = vperm.xlu0 %1872, %v57
    %v1874 = vpop.permute.xlu0 %1873
    %v1876 = vunpack.c.l.s4 839922192
    %v1877 = vunpack.c.0.s8 %v1876
    %v1878 = vlaneseq
    %v1879 = vshrl.u32 %v1878, 7
    %v1880 = vsub.s32 %v1877, %v1879
    %v1881 = vrot.slane %v1874, %v1880
    %v1883 = vmul.f32 %v1868, %v1881
    %v1884 = vmul.f32 %v1869, %v1881
    %v1885 = vmul.f32 %v1870, %v1881
    %v1886 = vmul.f32 %v1871, %v1881
    %v1891 = vcombine.high %v1883, %v1883
    %v1892 = vcombine.high %v1885, %v1885
    %1893 = vrot.lane.b32.xlu0 %v1883, 126
    %v1894 = vpop.permute.xlu0 %1893
    %1895 = vrot.lane.b32.xlu0 %v1891, 126
    %v1896 = vpop.permute.xlu0 %1895
    %1897 = vrot.lane.b32.xlu0 %v1884, 126
    %v1898 = vpop.permute.xlu0 %1897
    %1899 = vrot.lane.b32.xlu0 %v1885, 126
    %v1900 = vpop.permute.xlu0 %1899
    %1901 = vrot.lane.b32.xlu0 %v1892, 126
    %v1902 = vpop.permute.xlu0 %1901
    %1903 = vrot.lane.b32.xlu0 %v1886, 126
    %v1904 = vpop.permute.xlu0 %1903
    %vm1905 = vcmask 1031168
    %v1906 = vsel %vm1905, %v1894, %v1896
    %v1907 = vsel %vm1905, %v1896, %v1898
    %v1908 = vsel %vm1905, %v1900, %v1902
    %v1909 = vsel %vm1905, %v1902, %v1904
    %v1914 = vadd.f32 %v1840, %v1906
    %v1915 = vadd.f32 %v1841, %v1907
    %v1916 = vadd.f32 %v1842, %v1908
    %v1917 = vadd.f32 %v1843, %v1909
    %1918 = vset.pattern.permute.xlu0 50
    %1919 = vperm.xlu0 %1918, %v57
    %v1920 = vpop.permute.xlu0 %1919
    %v1922 = vunpack.c.l.s4 839922192
    %v1923 = vunpack.c.0.s8 %v1922
    %v1924 = vlaneseq
    %v1925 = vshrl.u32 %v1924, 7
    %v1926 = vsub.s32 %v1923, %v1925
    %v1927 = vrot.slane %v1920, %v1926
    %v1929 = vmul.f32 %v1868, %v1927
    %v1930 = vmul.f32 %v1869, %v1927
    %v1931 = vmul.f32 %v1870, %v1927
    %v1932 = vmul.f32 %v1871, %v1927
    %v1937 = vcombine.high %v1929, %v1929
    %v1938 = vcombine.high %v1931, %v1931
    %1939 = vrot.lane.b32.xlu0 %v1929, 126
    %v1940 = vpop.permute.xlu0 %1939
    %1941 = vrot.lane.b32.xlu0 %v1937, 126
    %v1942 = vpop.permute.xlu0 %1941
    %1943 = vrot.lane.b32.xlu0 %v1930, 126
    %v1944 = vpop.permute.xlu0 %1943
    %1945 = vrot.lane.b32.xlu0 %v1931, 126
    %v1946 = vpop.permute.xlu0 %1945
    %1947 = vrot.lane.b32.xlu0 %v1938, 126
    %v1948 = vpop.permute.xlu0 %1947
    %1949 = vrot.lane.b32.xlu0 %v1932, 126
    %v1950 = vpop.permute.xlu0 %1949
    %v1951 = vsel %vm1905, %v1940, %v1942
    %v1952 = vsel %vm1905, %v1942, %v1944
    %v1953 = vsel %vm1905, %v1946, %v1948
    %v1954 = vsel %vm1905, %v1948, %v1950
    %v1959 = vadd.f32 %v1848, %v1951
    %v1960 = vadd.f32 %v1849, %v1952
    %v1961 = vadd.f32 %v1850, %v1953
    %v1962 = vadd.f32 %v1851, %v1954
    %1963 = vset.pattern.permute.xlu0 59
    %1964 = vperm.xlu0 %1963, %v57
    %v1965 = vpop.permute.xlu0 %1964
    %v1967 = vunpack.c.l.s4 839922192
    %v1968 = vunpack.c.0.s8 %v1967
    %v1969 = vlaneseq
    %v1970 = vshrl.u32 %v1969, 7
    %v1971 = vsub.s32 %v1968, %v1970
    %v1972 = vrot.slane %v1965, %v1971
    %v1974 = vmul.f32 %v1868, %v1972
    %v1975 = vmul.f32 %v1869, %v1972
    %v1976 = vmul.f32 %v1870, %v1972
    %v1977 = vmul.f32 %v1871, %v1972
    %v1982 = vcombine.high %v1974, %v1974
    %v1983 = vcombine.high %v1976, %v1976
    %1984 = vrot.lane.b32.xlu0 %v1974, 126
    %v1985 = vpop.permute.xlu0 %1984
    %1986 = vrot.lane.b32.xlu0 %v1982, 126
    %v1987 = vpop.permute.xlu0 %1986
    %1988 = vrot.lane.b32.xlu0 %v1975, 126
    %v1989 = vpop.permute.xlu0 %1988
    %1990 = vrot.lane.b32.xlu0 %v1976, 126
    %v1991 = vpop.permute.xlu0 %1990
    %1992 = vrot.lane.b32.xlu0 %v1983, 126
    %v1993 = vpop.permute.xlu0 %1992
    %1994 = vrot.lane.b32.xlu0 %v1977, 126
    %v1995 = vpop.permute.xlu0 %1994
    %v1996 = vsel %vm1905, %v1985, %v1987
    %v1997 = vsel %vm1905, %v1987, %v1989
    %v1998 = vsel %vm1905, %v1991, %v1993
    %v1999 = vsel %vm1905, %v1993, %v1995
    %v2004 = vadd.f32 %v1856, %v1996
    %v2005 = vadd.f32 %v1857, %v1997
    %v2006 = vadd.f32 %v1858, %v1998
    %v2007 = vadd.f32 %v1859, %v1999
    %2008 = vset.pattern.permute.xlu0 68
    %2009 = vperm.xlu0 %2008, %v57
    %v2010 = vpop.permute.xlu0 %2009
    %v2012 = vunpack.c.l.s4 839922192
    %v2013 = vunpack.c.0.s8 %v2012
    %v2014 = vlaneseq
    %v2015 = vshrl.u32 %v2014, 7
    %v2016 = vsub.s32 %v2013, %v2015
    %v2017 = vrot.slane %v2010, %v2016
    %v2019 = vmul.f32 %v1868, %v2017
    %v2020 = vmul.f32 %v1869, %v2017
    %v2021 = vmul.f32 %v1870, %v2017
    %v2022 = vmul.f32 %v1871, %v2017
    %v2027 = vcombine.high %v2019, %v2019
    %v2028 = vcombine.high %v2021, %v2021
    %2029 = vrot.lane.b32.xlu0 %v2019, 126
    %v2030 = vpop.permute.xlu0 %2029
    %2031 = vrot.lane.b32.xlu0 %v2027, 126
    %v2032 = vpop.permute.xlu0 %2031
    %2033 = vrot.lane.b32.xlu0 %v2020, 126
    %v2034 = vpop.permute.xlu0 %2033
    %2035 = vrot.lane.b32.xlu0 %v2021, 126
    %v2036 = vpop.permute.xlu0 %2035
    %2037 = vrot.lane.b32.xlu0 %v2028, 126
    %v2038 = vpop.permute.xlu0 %2037
    %2039 = vrot.lane.b32.xlu0 %v2022, 126
    %v2040 = vpop.permute.xlu0 %2039
    %v2041 = vsel %vm1905, %v2030, %v2032
    %v2042 = vsel %vm1905, %v2032, %v2034
    %v2043 = vsel %vm1905, %v2036, %v2038
    %v2044 = vsel %vm1905, %v2038, %v2040
    %v2049 = vadd.f32 %v1864, %v2041
    %v2050 = vadd.f32 %v1865, %v2042
    %v2051 = vadd.f32 %v1866, %v2043
    %v2052 = vadd.f32 %v1867, %v2044
    %v2053 = vld [vmem:[#allocation2] sm:$0xff]
    %v2054 = vld [vmem:[#allocation2 + $0x8] sm:$0xf]
    %v2055 = vld [vmem:[#allocation2 + $0xc] sm:$0xff]
    %v2056 = vld [vmem:[#allocation2 + $0x14] sm:$0xf]
    %v2057 = vadd.s32 %v83, 2
    %v2058 = vadd.s32 %v84, 2
    %vm2059 = vcmp.ge.s32.totalorder %v2057, 0
    %vm2060 = vcmp.ge.s32.totalorder %v2058, 0
    %vm2061 = vcmp.lt.s32.totalorder %v2057, 16
    %vm2062 = vcmp.lt.s32.totalorder %v2058, 16
    %vm2063 = vmand %vm2059, %vm2061
    %vm2064 = vmand %vm2060, %vm2062
    %v2065 = vsel %vm2063, 1, 0
    %v2066 = vsel %vm2064, 1, 0
    %vm2067 = vcmp.eq.s32.totalorder %v2065, 1
    %vm2068 = vcmp.eq.s32.totalorder %v2066, 1
    %v2073 = vcombine.high %v2053, %v2053
    %v2074 = vcombine.high %v2055, %v2055
    %2075 = vrot.lane.b32.xlu0 %v2053, 124
    %v2076 = vpop.permute.xlu0 %2075
    %2077 = vrot.lane.b32.xlu0 %v2073, 124
    %v2078 = vpop.permute.xlu0 %2077
    %2079 = vrot.lane.b32.xlu0 %v2054, 124
    %v2080 = vpop.permute.xlu0 %2079
    %2081 = vrot.lane.b32.xlu0 %v2055, 124
    %v2082 = vpop.permute.xlu0 %2081
    %2083 = vrot.lane.b32.xlu0 %v2074, 124
    %v2084 = vpop.permute.xlu0 %2083
    %2085 = vrot.lane.b32.xlu0 %v2056, 124
    %v2086 = vpop.permute.xlu0 %2085
    %vm2087 = vcmask 1014784
    %v2088 = vsel %vm2087, %v2076, %v2078
    %v2089 = vsel %vm2087, %v2078, %v2080
    %v2090 = vsel %vm2087, %v2082, %v2084
    %v2091 = vsel %vm2087, %v2084, %v2086
    %v2096 = vsel %vm2067, %v2088, 0.0
    %v2097 = vsel %vm2068, %v2089, 0.0
    %v2098 = vsel %vm2067, %v2090, 0.0
    %v2099 = vsel %vm2068, %v2091, 0.0
    %2100 = vset.pattern.permute.xlu0 42
    %2101 = vperm.xlu0 %2100, %v57
    %v2102 = vpop.permute.xlu0 %2101
    %v2104 = vmul.f32 %v2096, %v2102
    %v2105 = vmul.f32 %v2097, %v2102
    %v2106 = vmul.f32 %v2098, %v2102
    %v2107 = vmul.f32 %v2099, %v2102
    %v2108 = vadd.f32 %v1914, %v2104
    %v2109 = vadd.f32 %v1915, %v2105
    %v2110 = vadd.f32 %v1916, %v2106
    %v2111 = vadd.f32 %v1917, %v2107
    %2112 = vset.pattern.permute.xlu0 51
    %2113 = vperm.xlu0 %2112, %v57
    %v2114 = vpop.permute.xlu0 %2113
    %v2116 = vmul.f32 %v2096, %v2114
    %v2117 = vmul.f32 %v2097, %v2114
    %v2118 = vmul.f32 %v2098, %v2114
    %v2119 = vmul.f32 %v2099, %v2114
    %v2120 = vadd.f32 %v1959, %v2116
    %v2121 = vadd.f32 %v1960, %v2117
    %v2122 = vadd.f32 %v1961, %v2118
    %v2123 = vadd.f32 %v1962, %v2119
    %2124 = vset.pattern.permute.xlu0 60
    %2125 = vperm.xlu0 %2124, %v57
    %v2126 = vpop.permute.xlu0 %2125
    %v2128 = vmul.f32 %v2096, %v2126
    %v2129 = vmul.f32 %v2097, %v2126
    %v2130 = vmul.f32 %v2098, %v2126
    %v2131 = vmul.f32 %v2099, %v2126
    %v2132 = vadd.f32 %v2004, %v2128
    %v2133 = vadd.f32 %v2005, %v2129
    %v2134 = vadd.f32 %v2006, %v2130
    %v2135 = vadd.f32 %v2007, %v2131
    %2136 = vset.pattern.permute.xlu0 69
    %2137 = vperm.xlu0 %2136, %v57
    %v2138 = vpop.permute.xlu0 %2137
    %v2140 = vmul.f32 %v2096, %v2138
    %v2141 = vmul.f32 %v2097, %v2138
    %v2142 = vmul.f32 %v2098, %v2138
    %v2143 = vmul.f32 %v2099, %v2138
    %v2144 = vadd.f32 %v2049, %v2140
    %v2145 = vadd.f32 %v2050, %v2141
    %v2146 = vadd.f32 %v2051, %v2142
    %v2147 = vadd.f32 %v2052, %v2143
    %v2148 = vld [vmem:[#allocation2] sm:$0xff]
    %v2149 = vld [vmem:[#allocation2 + $0x8] sm:$0xf]
    %v2150 = vld [vmem:[#allocation2 + $0xc] sm:$0xff]
    %v2151 = vld [vmem:[#allocation2 + $0x14] sm:$0xf]
    %v2156 = vcombine.high %v2148, %v2148
    %v2157 = vcombine.high %v2150, %v2150
    %2158 = vrot.lane.b32.xlu0 %v2148, 96
    %v2159 = vpop.permute.xlu0 %2158
    %2160 = vrot.lane.b32.xlu0 %v2156, 96
    %v2161 = vpop.permute.xlu0 %2160
    %2162 = vrot.lane.b32.xlu0 %v2149, 96
    %v2163 = vpop.permute.xlu0 %2162
    %2164 = vrot.lane.b32.xlu0 %v2150, 96
    %v2165 = vpop.permute.xlu0 %2164
    %2166 = vrot.lane.b32.xlu0 %v2157, 96
    %v2167 = vpop.permute.xlu0 %2166
    %2168 = vrot.lane.b32.xlu0 %v2151, 96
    %v2169 = vpop.permute.xlu0 %2168
    %vm2170 = vcmask 785408
    %v2171 = vsel %vm2170, %v2159, %v2161
    %v2172 = vsel %vm2170, %v2161, %v2163
    %v2173 = vsel %vm2170, %v2165, %v2167
    %v2174 = vsel %vm2170, %v2167, %v2169
    %v2179 = vsel %vm1824, %v2171, 0.0
    %v2180 = vsel %vm1825, %v2172, 0.0
    %v2181 = vsel %vm1824, %v2173, 0.0
    %v2182 = vsel %vm1825, %v2174, 0.0
    %2183 = vset.pattern.permute.xlu0 43
    %2184 = vperm.xlu0 %2183, %v57
    %v2185 = vpop.permute.xlu0 %2184
    %v2187 = vmul.f32 %v2179, %v2185
    %v2188 = vmul.f32 %v2180, %v2185
    %v2189 = vmul.f32 %v2181, %v2185
    %v2190 = vmul.f32 %v2182, %v2185
    %v2191 = vadd.f32 %v2108, %v2187
    %v2192 = vadd.f32 %v2109, %v2188
    %v2193 = vadd.f32 %v2110, %v2189
    %v2194 = vadd.f32 %v2111, %v2190
    %2195 = vset.pattern.permute.xlu0 52
    %2196 = vperm.xlu0 %2195, %v57
    %v2197 = vpop.permute.xlu0 %2196
    %v2199 = vmul.f32 %v2179, %v2197
    %v2200 = vmul.f32 %v2180, %v2197
    %v2201 = vmul.f32 %v2181, %v2197
    %v2202 = vmul.f32 %v2182, %v2197
    %v2203 = vadd.f32 %v2120, %v2199
    %v2204 = vadd.f32 %v2121, %v2200
    %v2205 = vadd.f32 %v2122, %v2201
    %v2206 = vadd.f32 %v2123, %v2202
    %2207 = vset.pattern.permute.xlu0 61
    %2208 = vperm.xlu0 %2207, %v57
    %v2209 = vpop.permute.xlu0 %2208
    %v2211 = vmul.f32 %v2179, %v2209
    %v2212 = vmul.f32 %v2180, %v2209
    %v2213 = vmul.f32 %v2181, %v2209
    %v2214 = vmul.f32 %v2182, %v2209
    %v2215 = vadd.f32 %v2132, %v2211
    %v2216 = vadd.f32 %v2133, %v2212
    %v2217 = vadd.f32 %v2134, %v2213
    %v2218 = vadd.f32 %v2135, %v2214
    %2219 = vset.pattern.permute.xlu0 70
    %2220 = vperm.xlu0 %2219, %v57
    %v2221 = vpop.permute.xlu0 %2220
    %v2223 = vmul.f32 %v2179, %v2221
    %v2224 = vmul.f32 %v2180, %v2221
    %v2225 = vmul.f32 %v2181, %v2221
    %v2226 = vmul.f32 %v2182, %v2221
    %v2227 = vadd.f32 %v2144, %v2223
    %v2228 = vadd.f32 %v2145, %v2224
    %v2229 = vadd.f32 %v2146, %v2225
    %v2230 = vadd.f32 %v2147, %v2226
    %2231 = vset.pattern.permute.xlu0 44
    %2232 = vperm.xlu0 %2231, %v57
    %v2233 = vpop.permute.xlu0 %2232
    %v2235 = vunpack.c.l.s4 839922192
    %v2236 = vunpack.c.0.s8 %v2235
    %v2237 = vlaneseq
    %v2238 = vshrl.u32 %v2237, 7
    %v2239 = vsub.s32 %v2236, %v2238
    %v2240 = vrot.slane %v2233, %v2239
    %v2242 = vmul.f32 %v85, %v2240
    %v2243 = vmul.f32 %v86, %v2240
    %v2244 = vmul.f32 %v87, %v2240
    %v2245 = vmul.f32 %v88, %v2240
    %v2250 = vcombine.high %v2242, %v2242
    %v2251 = vcombine.high %v2244, %v2244
    %2252 = vrot.lane.b32.xlu0 %v2242, 94
    %v2253 = vpop.permute.xlu0 %2252
    %2254 = vrot.lane.b32.xlu0 %v2250, 94
    %v2255 = vpop.permute.xlu0 %2254
    %2256 = vrot.lane.b32.xlu0 %v2243, 94
    %v2257 = vpop.permute.xlu0 %2256
    %2258 = vrot.lane.b32.xlu0 %v2244, 94
    %v2259 = vpop.permute.xlu0 %2258
    %2260 = vrot.lane.b32.xlu0 %v2251, 94
    %v2261 = vpop.permute.xlu0 %2260
    %2262 = vrot.lane.b32.xlu0 %v2245, 94
    %v2263 = vpop.permute.xlu0 %2262
    %v2264 = vsel %vm942, %v2253, %v2255
    %v2265 = vsel %vm942, %v2255, %v2257
    %v2266 = vsel %vm942, %v2259, %v2261
    %v2267 = vsel %vm942, %v2261, %v2263
    %v2272 = vadd.f32 %v2191, %v2264
    %v2273 = vadd.f32 %v2192, %v2265
    %v2274 = vadd.f32 %v2193, %v2266
    %v2275 = vadd.f32 %v2194, %v2267
    %2276 = vset.pattern.permute.xlu0 53
    %2277 = vperm.xlu0 %2276, %v57
    %v2278 = vpop.permute.xlu0 %2277
    %v2280 = vunpack.c.l.s4 839922192
    %v2281 = vunpack.c.0.s8 %v2280
    %v2282 = vlaneseq
    %v2283 = vshrl.u32 %v2282, 7
    %v2284 = vsub.s32 %v2281, %v2283
    %v2285 = vrot.slane %v2278, %v2284
    %v2287 = vmul.f32 %v85, %v2285
    %v2288 = vmul.f32 %v86, %v2285
    %v2289 = vmul.f32 %v87, %v2285
    %v2290 = vmul.f32 %v88, %v2285
    %v2295 = vcombine.high %v2287, %v2287
    %v2296 = vcombine.high %v2289, %v2289
    %2297 = vrot.lane.b32.xlu0 %v2287, 94
    %v2298 = vpop.permute.xlu0 %2297
    %2299 = vrot.lane.b32.xlu0 %v2295, 94
    %v2300 = vpop.permute.xlu0 %2299
    %2301 = vrot.lane.b32.xlu0 %v2288, 94
    %v2302 = vpop.permute.xlu0 %2301
    %2303 = vrot.lane.b32.xlu0 %v2289, 94
    %v2304 = vpop.permute.xlu0 %2303
    %2305 = vrot.lane.b32.xlu0 %v2296, 94
    %v2306 = vpop.permute.xlu0 %2305
    %2307 = vrot.lane.b32.xlu0 %v2290, 94
    %v2308 = vpop.permute.xlu0 %2307
    %v2309 = vsel %vm942, %v2298, %v2300
    %v2310 = vsel %vm942, %v2300, %v2302
    %v2311 = vsel %vm942, %v2304, %v2306
    %v2312 = vsel %vm942, %v2306, %v2308
    %v2317 = vadd.f32 %v2203, %v2309
    %v2318 = vadd.f32 %v2204, %v2310
    %v2319 = vadd.f32 %v2205, %v2311
    %v2320 = vadd.f32 %v2206, %v2312
    %2321 = vset.pattern.permute.xlu0 62
    %2322 = vperm.xlu0 %2321, %v57
    %v2323 = vpop.permute.xlu0 %2322
    %v2325 = vunpack.c.l.s4 839922192
    %v2326 = vunpack.c.0.s8 %v2325
    %v2327 = vlaneseq
    %v2328 = vshrl.u32 %v2327, 7
    %v2329 = vsub.s32 %v2326, %v2328
    %v2330 = vrot.slane %v2323, %v2329
    %v2332 = vmul.f32 %v85, %v2330
    %v2333 = vmul.f32 %v86, %v2330
    %v2334 = vmul.f32 %v87, %v2330
    %v2335 = vmul.f32 %v88, %v2330
    %v2340 = vcombine.high %v2332, %v2332
    %v2341 = vcombine.high %v2334, %v2334
    %2342 = vrot.lane.b32.xlu0 %v2332, 94
    %v2343 = vpop.permute.xlu0 %2342
    %2344 = vrot.lane.b32.xlu0 %v2340, 94
    %v2345 = vpop.permute.xlu0 %2344
    %2346 = vrot.lane.b32.xlu0 %v2333, 94
    %v2347 = vpop.permute.xlu0 %2346
    %2348 = vrot.lane.b32.xlu0 %v2334, 94
    %v2349 = vpop.permute.xlu0 %2348
    %2350 = vrot.lane.b32.xlu0 %v2341, 94
    %v2351 = vpop.permute.xlu0 %2350
    %2352 = vrot.lane.b32.xlu0 %v2335, 94
    %v2353 = vpop.permute.xlu0 %2352
    %v2354 = vsel %vm942, %v2343, %v2345
    %v2355 = vsel %vm942, %v2345, %v2347
    %v2356 = vsel %vm942, %v2349, %v2351
    %v2357 = vsel %vm942, %v2351, %v2353
    %v2362 = vadd.f32 %v2215, %v2354
    %v2363 = vadd.f32 %v2216, %v2355
    %v2364 = vadd.f32 %v2217, %v2356
    %v2365 = vadd.f32 %v2218, %v2357
    %2366 = vset.pattern.permute.xlu0 71
    %2367 = vperm.xlu0 %2366, %v57
    %v2368 = vpop.permute.xlu0 %2367
    %v2370 = vunpack.c.l.s4 839922192
    %v2371 = vunpack.c.0.s8 %v2370
    %v2372 = vlaneseq
    %v2373 = vshrl.u32 %v2372, 7
    %v2374 = vsub.s32 %v2371, %v2373
    %v2375 = vrot.slane %v2368, %v2374
    %v2377 = vmul.f32 %v85, %v2375
    %v2378 = vmul.f32 %v86, %v2375
    %v2379 = vmul.f32 %v87, %v2375
    %v2380 = vmul.f32 %v88, %v2375
    %v2385 = vcombine.high %v2377, %v2377
    %v2386 = vcombine.high %v2379, %v2379
    %2387 = vrot.lane.b32.xlu0 %v2377, 94
    %v2388 = vpop.permute.xlu0 %2387
    %2389 = vrot.lane.b32.xlu0 %v2385, 94
    %v2390 = vpop.permute.xlu0 %2389
    %2391 = vrot.lane.b32.xlu0 %v2378, 94
    %v2392 = vpop.permute.xlu0 %2391
    %2393 = vrot.lane.b32.xlu0 %v2379, 94
    %v2394 = vpop.permute.xlu0 %2393
    %2395 = vrot.lane.b32.xlu0 %v2386, 94
    %v2396 = vpop.permute.xlu0 %2395
    %2397 = vrot.lane.b32.xlu0 %v2380, 94
    %v2398 = vpop.permute.xlu0 %2397
    %v2399 = vsel %vm942, %v2388, %v2390
    %v2400 = vsel %vm942, %v2390, %v2392
    %v2401 = vsel %vm942, %v2394, %v2396
    %v2402 = vsel %vm942, %v2396, %v2398
    %v2407 = vadd.f32 %v2227, %v2399
    %v2408 = vadd.f32 %v2228, %v2400
    %v2409 = vadd.f32 %v2229, %v2401
    %v2410 = vadd.f32 %v2230, %v2402
    %v2411 = vld [vmem:[#allocation2] sm:$0xff]
    %v2412 = vld [vmem:[#allocation2 + $0x8] sm:$0xf]
    %v2413 = vld [vmem:[#allocation2 + $0xc] sm:$0xff]
    %v2414 = vld [vmem:[#allocation2 + $0x14] sm:$0xf]
    %v2419 = vcombine.high %v2411, %v2411
    %v2420 = vcombine.high %v2413, %v2413
    %2421 = vrot.lane.b32.xlu0 %v2411, 92
    %v2422 = vpop.permute.xlu0 %2421
    %2423 = vrot.lane.b32.xlu0 %v2419, 92
    %v2424 = vpop.permute.xlu0 %2423
    %2425 = vrot.lane.b32.xlu0 %v2412, 92
    %v2426 = vpop.permute.xlu0 %2425
    %2427 = vrot.lane.b32.xlu0 %v2413, 92
    %v2428 = vpop.permute.xlu0 %2427
    %2429 = vrot.lane.b32.xlu0 %v2420, 92
    %v2430 = vpop.permute.xlu0 %2429
    %2431 = vrot.lane.b32.xlu0 %v2414, 92
    %v2432 = vpop.permute.xlu0 %2431
    %vm2433 = vcmask 752640
    %v2434 = vsel %vm2433, %v2422, %v2424
    %v2435 = vsel %vm2433, %v2424, %v2426
    %v2436 = vsel %vm2433, %v2428, %v2430
    %v2437 = vsel %vm2433, %v2430, %v2432
    %v2442 = vsel %vm2067, %v2434, 0.0
    %v2443 = vsel %vm2068, %v2435, 0.0
    %v2444 = vsel %vm2067, %v2436, 0.0
    %v2445 = vsel %vm2068, %v2437, 0.0
    %2446 = vset.pattern.permute.xlu0 45
    %2447 = vperm.xlu0 %2446, %v57
    %v2448 = vpop.permute.xlu0 %2447
    %v2450 = vmul.f32 %v2442, %v2448
    %v2451 = vmul.f32 %v2443, %v2448
    %v2452 = vmul.f32 %v2444, %v2448
    %v2453 = vmul.f32 %v2445, %v2448
    %v2454 = vadd.f32 %v2272, %v2450
    %v2455 = vadd.f32 %v2273, %v2451
    %v2456 = vadd.f32 %v2274, %v2452
    %v2457 = vadd.f32 %v2275, %v2453
    %2458 = vset.pattern.permute.xlu0 54
    %2459 = vperm.xlu0 %2458, %v57
    %v2460 = vpop.permute.xlu0 %2459
    %v2462 = vmul.f32 %v2442, %v2460
    %v2463 = vmul.f32 %v2443, %v2460
    %v2464 = vmul.f32 %v2444, %v2460
    %v2465 = vmul.f32 %v2445, %v2460
    %v2466 = vadd.f32 %v2317, %v2462
    %v2467 = vadd.f32 %v2318, %v2463
    %v2468 = vadd.f32 %v2319, %v2464
    %v2469 = vadd.f32 %v2320, %v2465
    %2470 = vset.pattern.permute.xlu0 63
    %2471 = vperm.xlu0 %2470, %v57
    %v2472 = vpop.permute.xlu0 %2471
    %v2474 = vmul.f32 %v2442, %v2472
    %v2475 = vmul.f32 %v2443, %v2472
    %v2476 = vmul.f32 %v2444, %v2472
    %v2477 = vmul.f32 %v2445, %v2472
    %v2478 = vadd.f32 %v2362, %v2474
    %v2479 = vadd.f32 %v2363, %v2475
    %v2480 = vadd.f32 %v2364, %v2476
    %v2481 = vadd.f32 %v2365, %v2477
    %2482 = vset.pattern.permute.xlu0 72
    %2483 = vperm.xlu0 %2482, %v57
    %v2484 = vpop.permute.xlu0 %2483
    %v2486 = vmul.f32 %v2442, %v2484
    %v2487 = vmul.f32 %v2443, %v2484
    %v2488 = vmul.f32 %v2444, %v2484
    %v2489 = vmul.f32 %v2445, %v2484
    %v2490 = vadd.f32 %v2407, %v2486
    %v2491 = vadd.f32 %v2408, %v2487
    %v2492 = vadd.f32 %v2409, %v2488
    %v2493 = vadd.f32 %v2410, %v2489
    %v2494 = vld [vmem:[#allocation2] sm:$0xff]
    %v2495 = vld [vmem:[#allocation2 + $0x8] sm:$0xf]
    %v2496 = vld [vmem:[#allocation2 + $0xc] sm:$0xff]
    %v2497 = vld [vmem:[#allocation2 + $0x14] sm:$0xf]
    %v2502 = vcombine.high %v2494, %v2494
    %v2503 = vcombine.high %v2496, %v2496
    %2504 = vrot.lane.b32.xlu0 %v2494, 64
    %v2505 = vpop.permute.xlu0 %2504
    %2506 = vrot.lane.b32.xlu0 %v2502, 64
    %v2507 = vpop.permute.xlu0 %2506
    %2508 = vrot.lane.b32.xlu0 %v2495, 64
    %v2509 = vpop.permute.xlu0 %2508
    %2510 = vrot.lane.b32.xlu0 %v2496, 64
    %v2511 = vpop.permute.xlu0 %2510
    %2512 = vrot.lane.b32.xlu0 %v2503, 64
    %v2513 = vpop.permute.xlu0 %2512
    %2514 = vrot.lane.b32.xlu0 %v2497, 64
    %v2515 = vpop.permute.xlu0 %2514
    %vm2516 = vcmask 523264
    %v2517 = vsel %vm2516, %v2505, %v2507
    %v2518 = vsel %vm2516, %v2507, %v2509
    %v2519 = vsel %vm2516, %v2511, %v2513
    %v2520 = vsel %vm2516, %v2513, %v2515
    %v2525 = vsel %vm1824, %v2517, 0.0
    %v2526 = vsel %vm1825, %v2518, 0.0
    %v2527 = vsel %vm1824, %v2519, 0.0
    %v2528 = vsel %vm1825, %v2520, 0.0
    %2529 = vset.pattern.permute.xlu0 46
    %2530 = vperm.xlu0 %2529, %v57
    %v2531 = vpop.permute.xlu0 %2530
    %v2533 = vmul.f32 %v2525, %v2531
    %v2534 = vmul.f32 %v2526, %v2531
    %v2535 = vmul.f32 %v2527, %v2531
    %v2536 = vmul.f32 %v2528, %v2531
    %v2537 = vadd.f32 %v2454, %v2533
    %v2538 = vadd.f32 %v2455, %v2534
    %v2539 = vadd.f32 %v2456, %v2535
    %v2540 = vadd.f32 %v2457, %v2536
    %2541 = vset.pattern.permute.xlu0 55
    %2542 = vperm.xlu0 %2541, %v57
    %v2543 = vpop.permute.xlu0 %2542
    %v2545 = vmul.f32 %v2525, %v2543
    %v2546 = vmul.f32 %v2526, %v2543
    %v2547 = vmul.f32 %v2527, %v2543
    %v2548 = vmul.f32 %v2528, %v2543
    %v2549 = vadd.f32 %v2466, %v2545
    %v2550 = vadd.f32 %v2467, %v2546
    %v2551 = vadd.f32 %v2468, %v2547
    %v2552 = vadd.f32 %v2469, %v2548
    %2553 = vset.pattern.permute.xlu0 64
    %2554 = vperm.xlu0 %2553, %v57
    %v2555 = vpop.permute.xlu0 %2554
    %v2557 = vmul.f32 %v2525, %v2555
    %v2558 = vmul.f32 %v2526, %v2555
    %v2559 = vmul.f32 %v2527, %v2555
    %v2560 = vmul.f32 %v2528, %v2555
    %v2561 = vadd.f32 %v2478, %v2557
    %v2562 = vadd.f32 %v2479, %v2558
    %v2563 = vadd.f32 %v2480, %v2559
    %v2564 = vadd.f32 %v2481, %v2560
    %2565 = vset.pattern.permute.xlu0 73
    %2566 = vperm.xlu0 %2565, %v57
    %v2567 = vpop.permute.xlu0 %2566
    %v2569 = vmul.f32 %v2525, %v2567
    %v2570 = vmul.f32 %v2526, %v2567
    %v2571 = vmul.f32 %v2527, %v2567
    %v2572 = vmul.f32 %v2528, %v2567
    %v2573 = vadd.f32 %v2490, %v2569
    %v2574 = vadd.f32 %v2491, %v2570
    %v2575 = vadd.f32 %v2492, %v2571
    %v2576 = vadd.f32 %v2493, %v2572
    %v2577 = vld [vmem:[#allocation2] sm:$0xff]
    %v2578 = vld [vmem:[#allocation2 + $0x8] sm:$0xf]
    %v2579 = vld [vmem:[#allocation2 + $0xc] sm:$0xff]
    %v2580 = vld [vmem:[#allocation2 + $0x14] sm:$0xf]
    %2581 = vset.pattern.permute.xlu0 47
    %2582 = vperm.xlu0 %2581, %v57
    %v2583 = vpop.permute.xlu0 %2582
    %v2585 = vunpack.c.l.s4 839922192
    %v2586 = vunpack.c.0.s8 %v2585
    %v2587 = vlaneseq
    %v2588 = vshrl.u32 %v2587, 7
    %v2589 = vsub.s32 %v2586, %v2588
    %v2590 = vrot.slane %v2583, %v2589
    %v2592 = vmul.f32 %v2577, %v2590
    %v2593 = vmul.f32 %v2578, %v2590
    %v2594 = vmul.f32 %v2579, %v2590
    %v2595 = vmul.f32 %v2580, %v2590
    %v2600 = vcombine.high %v2592, %v2592
    %v2601 = vcombine.high %v2594, %v2594
    %2602 = vrot.lane.b32.xlu0 %v2592, 62
    %v2603 = vpop.permute.xlu0 %2602
    %2604 = vrot.lane.b32.xlu0 %v2600, 62
    %v2605 = vpop.permute.xlu0 %2604
    %2606 = vrot.lane.b32.xlu0 %v2593, 62
    %v2607 = vpop.permute.xlu0 %2606
    %2608 = vrot.lane.b32.xlu0 %v2594, 62
    %v2609 = vpop.permute.xlu0 %2608
    %2610 = vrot.lane.b32.xlu0 %v2601, 62
    %v2611 = vpop.permute.xlu0 %2610
    %2612 = vrot.lane.b32.xlu0 %v2595, 62
    %v2613 = vpop.permute.xlu0 %2612
    %vm2614 = vcmask 506880
    %v2615 = vsel %vm2614, %v2603, %v2605
    %v2616 = vsel %vm2614, %v2605, %v2607
    %v2617 = vsel %vm2614, %v2609, %v2611
    %v2618 = vsel %vm2614, %v2611, %v2613
    %v2623 = vadd.f32 %v2537, %v2615
    %v2624 = vadd.f32 %v2538, %v2616
    %v2625 = vadd.f32 %v2539, %v2617
    %v2626 = vadd.f32 %v2540, %v2618
    %2627 = vset.pattern.permute.xlu0 56
    %2628 = vperm.xlu0 %2627, %v57
    %v2629 = vpop.permute.xlu0 %2628
    %v2631 = vunpack.c.l.s4 839922192
    %v2632 = vunpack.c.0.s8 %v2631
    %v2633 = vlaneseq
    %v2634 = vshrl.u32 %v2633, 7
    %v2635 = vsub.s32 %v2632, %v2634
    %v2636 = vrot.slane %v2629, %v2635
    %v2638 = vmul.f32 %v2577, %v2636
    %v2639 = vmul.f32 %v2578, %v2636
    %v2640 = vmul.f32 %v2579, %v2636
    %v2641 = vmul.f32 %v2580, %v2636
    %v2646 = vcombine.high %v2638, %v2638
    %v2647 = vcombine.high %v2640, %v2640
    %2648 = vrot.lane.b32.xlu0 %v2638, 62
    %v2649 = vpop.permute.xlu0 %2648
    %2650 = vrot.lane.b32.xlu0 %v2646, 62
    %v2651 = vpop.permute.xlu0 %2650
    %2652 = vrot.lane.b32.xlu0 %v2639, 62
    %v2653 = vpop.permute.xlu0 %2652
    %2654 = vrot.lane.b32.xlu0 %v2640, 62
    %v2655 = vpop.permute.xlu0 %2654
    %2656 = vrot.lane.b32.xlu0 %v2647, 62
    %v2657 = vpop.permute.xlu0 %2656
    %2658 = vrot.lane.b32.xlu0 %v2641, 62
    %v2659 = vpop.permute.xlu0 %2658
    %v2660 = vsel %vm2614, %v2649, %v2651
    %v2661 = vsel %vm2614, %v2651, %v2653
    %v2662 = vsel %vm2614, %v2655, %v2657
    %v2663 = vsel %vm2614, %v2657, %v2659
    %v2668 = vadd.f32 %v2549, %v2660
    %v2669 = vadd.f32 %v2550, %v2661
    %v2670 = vadd.f32 %v2551, %v2662
    %v2671 = vadd.f32 %v2552, %v2663
    %2672 = vset.pattern.permute.xlu0 65
    %2673 = vperm.xlu0 %2672, %v57
    %v2674 = vpop.permute.xlu0 %2673
    %v2676 = vunpack.c.l.s4 839922192
    %v2677 = vunpack.c.0.s8 %v2676
    %v2678 = vlaneseq
    %v2679 = vshrl.u32 %v2678, 7
    %v2680 = vsub.s32 %v2677, %v2679
    %v2681 = vrot.slane %v2674, %v2680
    %v2683 = vmul.f32 %v2577, %v2681
    %v2684 = vmul.f32 %v2578, %v2681
    %v2685 = vmul.f32 %v2579, %v2681
    %v2686 = vmul.f32 %v2580, %v2681
    %v2691 = vcombine.high %v2683, %v2683
    %v2692 = vcombine.high %v2685, %v2685
    %2693 = vrot.lane.b32.xlu0 %v2683, 62
    %v2694 = vpop.permute.xlu0 %2693
    %2695 = vrot.lane.b32.xlu0 %v2691, 62
    %v2696 = vpop.permute.xlu0 %2695
    %2697 = vrot.lane.b32.xlu0 %v2684, 62
    %v2698 = vpop.permute.xlu0 %2697
    %2699 = vrot.lane.b32.xlu0 %v2685, 62
    %v2700 = vpop.permute.xlu0 %2699
    %2701 = vrot.lane.b32.xlu0 %v2692, 62
    %v2702 = vpop.permute.xlu0 %2701
    %2703 = vrot.lane.b32.xlu0 %v2686, 62
    %v2704 = vpop.permute.xlu0 %2703
    %v2705 = vsel %vm2614, %v2694, %v2696
    %v2706 = vsel %vm2614, %v2696, %v2698
    %v2707 = vsel %vm2614, %v2700, %v2702
    %v2708 = vsel %vm2614, %v2702, %v2704
    %v2713 = vadd.f32 %v2561, %v2705
    %v2714 = vadd.f32 %v2562, %v2706
    %v2715 = vadd.f32 %v2563, %v2707
    %v2716 = vadd.f32 %v2564, %v2708
    %2717 = vset.pattern.permute.xlu0 74
    %2718 = vperm.xlu0 %2717, %v57
    %v2719 = vpop.permute.xlu0 %2718
    %v2721 = vunpack.c.l.s4 839922192
    %v2722 = vunpack.c.0.s8 %v2721
    %v2723 = vlaneseq
    %v2724 = vshrl.u32 %v2723, 7
    %v2725 = vsub.s32 %v2722, %v2724
    %v2726 = vrot.slane %v2719, %v2725
    %v2728 = vmul.f32 %v2577, %v2726
    %v2729 = vmul.f32 %v2578, %v2726
    %v2730 = vmul.f32 %v2579, %v2726
    %v2731 = vmul.f32 %v2580, %v2726
    %v2736 = vcombine.high %v2728, %v2728
    %v2737 = vcombine.high %v2730, %v2730
    %2738 = vrot.lane.b32.xlu0 %v2728, 62
    %v2739 = vpop.permute.xlu0 %2738
    %2740 = vrot.lane.b32.xlu0 %v2736, 62
    %v2741 = vpop.permute.xlu0 %2740
    %2742 = vrot.lane.b32.xlu0 %v2729, 62
    %v2743 = vpop.permute.xlu0 %2742
    %2744 = vrot.lane.b32.xlu0 %v2730, 62
    %v2745 = vpop.permute.xlu0 %2744
    %2746 = vrot.lane.b32.xlu0 %v2737, 62
    %v2747 = vpop.permute.xlu0 %2746
    %2748 = vrot.lane.b32.xlu0 %v2731, 62
    %v2749 = vpop.permute.xlu0 %2748
    %v2750 = vsel %vm2614, %v2739, %v2741
    %v2751 = vsel %vm2614, %v2741, %v2743
    %v2752 = vsel %vm2614, %v2745, %v2747
    %v2753 = vsel %vm2614, %v2747, %v2749
    %v2758 = vadd.f32 %v2573, %v2750
    %v2759 = vadd.f32 %v2574, %v2751
    %v2760 = vadd.f32 %v2575, %v2752
    %v2761 = vadd.f32 %v2576, %v2753
    %v2762 = vld [vmem:[#allocation2] sm:$0xff]
    %v2763 = vld [vmem:[#allocation2 + $0x8] sm:$0xf]
    %v2764 = vld [vmem:[#allocation2 + $0xc] sm:$0xff]
    %v2765 = vld [vmem:[#allocation2 + $0x14] sm:$0xf]
    %v2770 = vcombine.high %v2762, %v2762
    %v2771 = vcombine.high %v2764, %v2764
    %2772 = vrot.lane.b32.xlu0 %v2762, 60
    %v2773 = vpop.permute.xlu0 %2772
    %2774 = vrot.lane.b32.xlu0 %v2770, 60
    %v2775 = vpop.permute.xlu0 %2774
    %2776 = vrot.lane.b32.xlu0 %v2763, 60
    %v2777 = vpop.permute.xlu0 %2776
    %2778 = vrot.lane.b32.xlu0 %v2764, 60
    %v2779 = vpop.permute.xlu0 %2778
    %2780 = vrot.lane.b32.xlu0 %v2771, 60
    %v2781 = vpop.permute.xlu0 %2780
    %2782 = vrot.lane.b32.xlu0 %v2765, 60
    %v2783 = vpop.permute.xlu0 %2782
    %vm2784 = vcmask 490496
    %v2785 = vsel %vm2784, %v2773, %v2775
    %v2786 = vsel %vm2784, %v2775, %v2777
    %v2787 = vsel %vm2784, %v2779, %v2781
    %v2788 = vsel %vm2784, %v2781, %v2783
    %v2793 = vsel %vm2067, %v2785, 0.0
    %v2794 = vsel %vm2068, %v2786, 0.0
    %v2795 = vsel %vm2067, %v2787, 0.0
    %v2796 = vsel %vm2068, %v2788, 0.0
    %2797 = vset.pattern.permute.xlu0 48
    %2798 = vperm.xlu0 %2797, %v57
    %v2799 = vpop.permute.xlu0 %2798
    %v2801 = vmul.f32 %v2793, %v2799
    %v2802 = vmul.f32 %v2794, %v2799
    %v2803 = vmul.f32 %v2795, %v2799
    %v2804 = vmul.f32 %v2796, %v2799
    %v2805 = vadd.f32 %v2623, %v2801
    %v2806 = vadd.f32 %v2624, %v2802
    %v2807 = vadd.f32 %v2625, %v2803
    %v2808 = vadd.f32 %v2626, %v2804
    %2809 = vset.pattern.permute.xlu0 57
    %2810 = vperm.xlu0 %2809, %v57
    %v2811 = vpop.permute.xlu0 %2810
    %v2813 = vmul.f32 %v2793, %v2811
    %v2814 = vmul.f32 %v2794, %v2811
    %v2815 = vmul.f32 %v2795, %v2811
    %v2816 = vmul.f32 %v2796, %v2811
    %v2817 = vadd.f32 %v2668, %v2813
    %v2818 = vadd.f32 %v2669, %v2814
    %v2819 = vadd.f32 %v2670, %v2815
    %v2820 = vadd.f32 %v2671, %v2816
    %2821 = vset.pattern.permute.xlu0 66
    %2822 = vperm.xlu0 %2821, %v57
    %v2823 = vpop.permute.xlu0 %2822
    %v2825 = vmul.f32 %v2793, %v2823
    %v2826 = vmul.f32 %v2794, %v2823
    %v2827 = vmul.f32 %v2795, %v2823
    %v2828 = vmul.f32 %v2796, %v2823
    %v2829 = vadd.f32 %v2713, %v2825
    %v2830 = vadd.f32 %v2714, %v2826
    %v2831 = vadd.f32 %v2715, %v2827
    %v2832 = vadd.f32 %v2716, %v2828
    %2833 = vset.pattern.permute.xlu0 75
    %2834 = vperm.xlu0 %2833, %v57
    %v2835 = vpop.permute.xlu0 %2834
    %v2837 = vmul.f32 %v2793, %v2835
    %v2838 = vmul.f32 %v2794, %v2835
    %v2839 = vmul.f32 %v2795, %v2835
    %v2840 = vmul.f32 %v2796, %v2835
    %v2841 = vadd.f32 %v2758, %v2837
    %v2842 = vadd.f32 %v2759, %v2838
    %v2843 = vadd.f32 %v2760, %v2839
    %v2844 = vadd.f32 %v2761, %v2840
    %v2845 = vsel %vm163, %v2805, 0.0
    %v2846 = vrot.slane %v2845, 4
    %v2847 = vadd.f32 %v2845, %v2846
    %v2848 = vrot.slane %v2847, 2
    %v2849 = vadd.f32 %v2847, %v2848
    %v2850 = vrot.slane %v2849, 1
    %v2851 = vadd.f32 %v2849, %v2850
    %v2852 = vsel %vm163, %v2806, 0.0
    %v2853 = vrot.slane %v2852, 4
    %v2854 = vadd.f32 %v2852, %v2853
    %v2855 = vrot.slane %v2854, 2
    %v2856 = vadd.f32 %v2854, %v2855
    %v2857 = vrot.slane %v2856, 1
    %v2858 = vadd.f32 %v2856, %v2857
    %v2859 = vsel %vm163, %v2807, 0.0
    %v2860 = vrot.slane %v2859, 4
    %v2861 = vadd.f32 %v2859, %v2860
    %v2862 = vrot.slane %v2861, 2
    %v2863 = vadd.f32 %v2861, %v2862
    %v2864 = vrot.slane %v2863, 1
    %v2865 = vadd.f32 %v2863, %v2864
    %v2866 = vsel %vm163, %v2808, 0.0
    %v2867 = vrot.slane %v2866, 4
    %v2868 = vadd.f32 %v2866, %v2867
    %v2869 = vrot.slane %v2868, 2
    %v2870 = vadd.f32 %v2868, %v2869
    %v2871 = vrot.slane %v2870, 1
    %v2872 = vadd.f32 %v2870, %v2871
    %s2873 = sld [smem:[#allocation3 + $0x8]]
    %v2874 = vstv %s2873
    %v2875 = vadd.f32 %v2851, %v2874
    %v2876 = vadd.f32 %v2858, %v2874
    %v2877 = vadd.f32 %v2865, %v2874
    %v2878 = vadd.f32 %v2872, %v2874
    %v2879 = vmax.f32 %v2875, 0.0
    %v2880 = vmax.f32 %v2876, 0.0
    %v2881 = vmax.f32 %v2877, 0.0
    %v2882 = vmax.f32 %v2878, 0.0
    %2883 = vset.pattern.permute.xlu0 84
    %2884 = vperm.xlu0 %2883, %v57
    %v2885 = vpop.permute.xlu0 %2884
    %v2887 = vmul.f32 %v2879, %v2885
    %v2888 = vmul.f32 %v2880, %v2885
    %v2889 = vmul.f32 %v2881, %v2885
    %v2890 = vmul.f32 %v2882, %v2885
    %2895 = vrot.lane.b32.xlu0 %v2887, 34
    %v2896 = vpop.permute.xlu0 %2895
    %2897 = vrot.lane.b32.xlu0 %v2888, 34
    %v2898 = vpop.permute.xlu0 %2897
    %2899 = vrot.lane.b32.xlu0 %v2889, 34
    %v2900 = vpop.permute.xlu0 %2899
    %2901 = vrot.lane.b32.xlu0 %v2890, 34
    %v2902 = vpop.permute.xlu0 %2901
    %v2903 = vsel %vm43, %v2896, %v2898
    %v2904 = vsel %vm43, %v2900, %v2902
    %v2911 = vadd.f32 %v1806, %v2896
    %v2912 = vadd.f32 %v1807, %v2903
    %v2913 = vadd.f32 %v1808, %v2898
    %v2914 = vadd.f32 %v1809, %v2900
    %v2915 = vadd.f32 %v1810, %v2904
    %v2916 = vadd.f32 %v1811, %v2902
    %v2917 = vsel %vm163, %v2817, 0.0
    %v2918 = vrot.slane %v2917, 4
    %v2919 = vadd.f32 %v2917, %v2918
    %v2920 = vrot.slane %v2919, 2
    %v2921 = vadd.f32 %v2919, %v2920
    %v2922 = vrot.slane %v2921, 1
    %v2923 = vadd.f32 %v2921, %v2922
    %v2924 = vsel %vm163, %v2818, 0.0
    %v2925 = vrot.slane %v2924, 4
    %v2926 = vadd.f32 %v2924, %v2925
    %v2927 = vrot.slane %v2926, 2
    %v2928 = vadd.f32 %v2926, %v2927
    %v2929 = vrot.slane %v2928, 1
    %v2930 = vadd.f32 %v2928, %v2929
    %v2931 = vsel %vm163, %v2819, 0.0
    %v2932 = vrot.slane %v2931, 4
    %v2933 = vadd.f32 %v2931, %v2932
    %v2934 = vrot.slane %v2933, 2
    %v2935 = vadd.f32 %v2933, %v2934
    %v2936 = vrot.slane %v2935, 1
    %v2937 = vadd.f32 %v2935, %v2936
    %v2938 = vsel %vm163, %v2820, 0.0
    %v2939 = vrot.slane %v2938, 4
    %v2940 = vadd.f32 %v2938, %v2939
    %v2941 = vrot.slane %v2940, 2
    %v2942 = vadd.f32 %v2940, %v2941
    %v2943 = vrot.slane %v2942, 1
    %v2944 = vadd.f32 %v2942, %v2943
    %s2945 = sld [smem:[#allocation3 + $0x9]]
    %v2946 = vstv %s2945
    %v2947 = vadd.f32 %v2923, %v2946
    %v2948 = vadd.f32 %v2930, %v2946
    %v2949 = vadd.f32 %v2937, %v2946
    %v2950 = vadd.f32 %v2944, %v2946
    %v2951 = vmax.f32 %v2947, 0.0
    %v2952 = vmax.f32 %v2948, 0.0
    %v2953 = vmax.f32 %v2949, 0.0
    %v2954 = vmax.f32 %v2950, 0.0
    %2955 = vset.pattern.permute.xlu0 85
    %2956 = vperm.xlu0 %2955, %v57
    %v2957 = vpop.permute.xlu0 %2956
    %v2959 = vmul.f32 %v2951, %v2957
    %v2960 = vmul.f32 %v2952, %v2957
    %v2961 = vmul.f32 %v2953, %v2957
    %v2962 = vmul.f32 %v2954, %v2957
    %2967 = vrot.lane.b32.xlu0 %v2959, 34
    %v2968 = vpop.permute.xlu0 %2967
    %2969 = vrot.lane.b32.xlu0 %v2960, 34
    %v2970 = vpop.permute.xlu0 %2969
    %2971 = vrot.lane.b32.xlu0 %v2961, 34
    %v2972 = vpop.permute.xlu0 %2971
    %2973 = vrot.lane.b32.xlu0 %v2962, 34
    %v2974 = vpop.permute.xlu0 %2973
    %v2975 = vsel %vm43, %v2968, %v2970
    %v2976 = vsel %vm43, %v2972, %v2974
    %v2983 = vadd.f32 %v2911, %v2968
    %v2984 = vadd.f32 %v2912, %v2975
    %v2985 = vadd.f32 %v2913, %v2970
    %v2986 = vadd.f32 %v2914, %v2972
    %v2987 = vadd.f32 %v2915, %v2976
    %v2988 = vadd.f32 %v2916, %v2974
    %v2989 = vsel %vm163, %v2829, 0.0
    %v2990 = vrot.slane %v2989, 4
    %v2991 = vadd.f32 %v2989, %v2990
    %v2992 = vrot.slane %v2991, 2
    %v2993 = vadd.f32 %v2991, %v2992
    %v2994 = vrot.slane %v2993, 1
    %v2995 = vadd.f32 %v2993, %v2994
    %v2996 = vsel %vm163, %v2830, 0.0
    %v2997 = vrot.slane %v2996, 4
    %v2998 = vadd.f32 %v2996, %v2997
    %v2999 = vrot.slane %v2998, 2
    %v3000 = vadd.f32 %v2998, %v2999
    %v3001 = vrot.slane %v3000, 1
    %v3002 = vadd.f32 %v3000, %v3001
    %v3003 = vsel %vm163, %v2831, 0.0
    %v3004 = vrot.slane %v3003, 4
    %v3005 = vadd.f32 %v3003, %v3004
    %v3006 = vrot.slane %v3005, 2
    %v3007 = vadd.f32 %v3005, %v3006
    %v3008 = vrot.slane %v3007, 1
    %v3009 = vadd.f32 %v3007, %v3008
    %v3010 = vsel %vm163, %v2832, 0.0
    %v3011 = vrot.slane %v3010, 4
    %v3012 = vadd.f32 %v3010, %v3011
    %v3013 = vrot.slane %v3012, 2
    %v3014 = vadd.f32 %v3012, %v3013
    %v3015 = vrot.slane %v3014, 1
    %v3016 = vadd.f32 %v3014, %v3015
    %s3017 = sld [smem:[#allocation3 + $0xa]]
    %v3018 = vstv %s3017
    %v3019 = vadd.f32 %v2995, %v3018
    %v3020 = vadd.f32 %v3002, %v3018
    %v3021 = vadd.f32 %v3009, %v3018
    %v3022 = vadd.f32 %v3016, %v3018
    %v3023 = vmax.f32 %v3019, 0.0
    %v3024 = vmax.f32 %v3020, 0.0
    %v3025 = vmax.f32 %v3021, 0.0
    %v3026 = vmax.f32 %v3022, 0.0
    %3027 = vset.pattern.permute.xlu0 86
    %3028 = vperm.xlu0 %3027, %v57
    %v3029 = vpop.permute.xlu0 %3028
    %v3031 = vmul.f32 %v3023, %v3029
    %v3032 = vmul.f32 %v3024, %v3029
    %v3033 = vmul.f32 %v3025, %v3029
    %v3034 = vmul.f32 %v3026, %v3029
    %3039 = vrot.lane.b32.xlu0 %v3031, 34
    %v3040 = vpop.permute.xlu0 %3039
    %3041 = vrot.lane.b32.xlu0 %v3032, 34
    %v3042 = vpop.permute.xlu0 %3041
    %3043 = vrot.lane.b32.xlu0 %v3033, 34
    %v3044 = vpop.permute.xlu0 %3043
    %3045 = vrot.lane.b32.xlu0 %v3034, 34
    %v3046 = vpop.permute.xlu0 %3045
    %v3047 = vsel %vm43, %v3040, %v3042
    %v3048 = vsel %vm43, %v3044, %v3046
    %v3055 = vadd.f32 %v2983, %v3040
    %v3056 = vadd.f32 %v2984, %v3047
    %v3057 = vadd.f32 %v2985, %v3042
    %v3058 = vadd.f32 %v2986, %v3044
    %v3059 = vadd.f32 %v2987, %v3048
    %v3060 = vadd.f32 %v2988, %v3046
    %v3061 = vsel %vm163, %v2841, 0.0
    %v3062 = vrot.slane %v3061, 4
    %v3063 = vadd.f32 %v3061, %v3062
    %v3064 = vrot.slane %v3063, 2
    %v3065 = vadd.f32 %v3063, %v3064
    %v3066 = vrot.slane %v3065, 1
    %v3067 = vadd.f32 %v3065, %v3066
    %v3068 = vsel %vm163, %v2842, 0.0
    %v3069 = vrot.slane %v3068, 4
    %v3070 = vadd.f32 %v3068, %v3069
    %v3071 = vrot.slane %v3070, 2
    %v3072 = vadd.f32 %v3070, %v3071
    %v3073 = vrot.slane %v3072, 1
    %v3074 = vadd.f32 %v3072, %v3073
    %v3075 = vsel %vm163, %v2843, 0.0
    %v3076 = vrot.slane %v3075, 4
    %v3077 = vadd.f32 %v3075, %v3076
    %v3078 = vrot.slane %v3077, 2
    %v3079 = vadd.f32 %v3077, %v3078
    %v3080 = vrot.slane %v3079, 1
    %v3081 = vadd.f32 %v3079, %v3080
    %v3082 = vsel %vm163, %v2844, 0.0
    %v3083 = vrot.slane %v3082, 4
    %v3084 = vadd.f32 %v3082, %v3083
    %v3085 = vrot.slane %v3084, 2
    %v3086 = vadd.f32 %v3084, %v3085
    %v3087 = vrot.slane %v3086, 1
    %v3088 = vadd.f32 %v3086, %v3087
    %s3089 = sld [smem:[#allocation3 + $0xb]]
    %v3090 = vstv %s3089
    %v3091 = vadd.f32 %v3067, %v3090
    %v3092 = vadd.f32 %v3074, %v3090
    %v3093 = vadd.f32 %v3081, %v3090
    %v3094 = vadd.f32 %v3088, %v3090
    %v3095 = vmax.f32 %v3091, 0.0
    %v3096 = vmax.f32 %v3092, 0.0
    %v3097 = vmax.f32 %v3093, 0.0
    %v3098 = vmax.f32 %v3094, 0.0
    %3099 = vset.pattern.permute.xlu0 87
    %3100 = vperm.xlu0 %3099, %v57
    %v3101 = vpop.permute.xlu0 %3100
    %v3103 = vmul.f32 %v3095, %v3101
    %v3104 = vmul.f32 %v3096, %v3101
    %v3105 = vmul.f32 %v3097, %v3101
    %v3106 = vmul.f32 %v3098, %v3101
    %3111 = vrot.lane.b32.xlu0 %v3103, 34
    %v3112 = vpop.permute.xlu0 %3111
    %3113 = vrot.lane.b32.xlu0 %v3104, 34
    %v3114 = vpop.permute.xlu0 %3113
    %3115 = vrot.lane.b32.xlu0 %v3105, 34
    %v3116 = vpop.permute.xlu0 %3115
    %3117 = vrot.lane.b32.xlu0 %v3106, 34
    %v3118 = vpop.permute.xlu0 %3117
    %v3119 = vsel %vm43, %v3112, %v3114
    %v3120 = vsel %vm43, %v3116, %v3118
    %v3127 = vadd.f32 %v3055, %v3112
    %v3128 = vadd.f32 %v3056, %v3119
    %v3129 = vadd.f32 %v3057, %v3114
    %v3130 = vadd.f32 %v3058, %v3116
    %v3131 = vadd.f32 %v3059, %v3120
    %v3132 = vadd.f32 %v3060, %v3118
    %v3133 = vsub.f32 0.0, %v3127
    %v3134 = vsub.f32 0.0, %v3128
    %v3135 = vsub.f32 0.0, %v3129
    %v3136 = vsub.f32 0.0, %v3130
    %v3137 = vsub.f32 0.0, %v3131
    %v3138 = vsub.f32 0.0, %v3132
    %v3139 = vmul.f32 %v3133, 1.442695
    %v3140 = vpow.pop %v3139
    %v3141 = vmul.f32 %v3134, 1.442695
    %v3142 = vpow.pop %v3141
    %v3143 = vmul.f32 %v3135, 1.442695
    %v3144 = vpow.pop %v3143
    %v3145 = vmul.f32 %v3136, 1.442695
    %v3146 = vpow.pop %v3145
    %v3147 = vmul.f32 %v3137, 1.442695
    %v3148 = vpow.pop %v3147
    %v3149 = vmul.f32 %v3138, 1.442695
    %v3150 = vpow.pop %v3149
    %v3151 = vadd.f32 %v3140, 1.0
    %v3152 = vadd.f32 %v3142, 1.0
    %v3153 = vadd.f32 %v3144, 1.0
    %v3154 = vadd.f32 %v3146, 1.0
    %v3155 = vadd.f32 %v3148, 1.0
    %v3156 = vadd.f32 %v3150, 1.0
    %v3157 = vrcp.pop %v3151
    %v3158 = vrcp.pop %v3152
    %v3159 = vrcp.pop %v3153
    %v3160 = vrcp.pop %v3154
    %v3161 = vrcp.pop %v3155
    %v3162 = vrcp.pop %v3156
    %v3163 = vld [vmem:[%s0] sm:$0xff]
    %v3164 = vld [vmem:[%s0 + $0x8] sm:$0xff]
    %v3165 = vadd.f32 %v3157, 1.0
    %v3166 = vadd.f32 %v3158, 1.0
    %v3167 = vadd.f32 %v3159, 1.0
    %v3168 = vadd.f32 %v3160, 1.0
    %v3169 = vadd.f32 %v3161, 1.0
    %v3170 = vadd.f32 %v3162, 1.0
    %v3177 = vcombine.low %v3165, %v3166
    %v3178 = vcombine.low %v3168, %v3169
    %3179 = vrot.lane.b32.xlu0 %v3177, 94
    %v3180 = vpop.permute.xlu0 %3179
    %3181 = vrot.lane.b32.xlu0 %v3167, 94
    %v3182 = vpop.permute.xlu0 %3181
    %3183 = vrot.lane.b32.xlu0 %v3178, 94
    %v3184 = vpop.permute.xlu0 %3183
    %3185 = vrot.lane.b32.xlu0 %v3170, 94
    %v3186 = vpop.permute.xlu0 %3185
    %v3187 = vrot.slane %v3180, 4
    %v3188 = vrot.slane %v3182, 4
    %v3189 = vrot.slane %v3184, 4
    %v3190 = vrot.slane %v3186, 4
    %v3191 = vsel %vm163, %v3187, %v3188
    %v3192 = vsel %vm942, %v3180, %v3191
    %v3193 = vsel %vm163, %v3189, %v3190
    %v3194 = vsel %vm942, %v3184, %v3193
    %v3197 = vmul.f32 %v3163, %v3192
    %v3198 = vmul.f32 %v3164, %v3194
    %3199 = vst [vmem:[%s3] sm:$0xff] %v3197
    %3200 = vst [vmem:[%s3 + $0x8] sm:$0xff] %v3198
    // Predicated region
    $region18: #{msag_forward.1} parent=1 // pred_check
      _
    $region19: #{msag_forward.1} parent=1 // pred_check_branch
      %3202 = sbr.rel (0) target = $region21
    $region20: #{msag_forward.1} parent=1 // pred_region
      _
    $region21: #{msag_forward.1} parent=1 // pred_fallthru
      _
    // Predicated region
    $region22: #{msag_forward.1} parent=1 // pred_check
      _
    $region23: #{msag_forward.1} parent=1 // pred_check_branch
      %3204 = sbr.rel (0) target = $region25
    $region24: #{msag_forward.1} parent=1 // pred_region
      _
    $region25: #{msag_forward.1} parent=1 // pred_fallthru
      _
    %3205 = vsyncpa [#allocation4], 1

</llo_original>
